<compile_context>
chip_gen: v7x
topology: tpu7x:2x2x1
jax: 0.10.0
libtpu: 0.0.40
codegen_flags: <defaults>
</compile_context>

<pallas_src>
import functools

import jax
import jax.numpy as jnp
from jax.experimental import pallas as pl
from jax.experimental.pallas import tpu as pltpu

COUT_PAD = 128  # lane-dense output-channel padding (real cout <= 64 here)


# ---------------------------------------------------------------------------
# Pallas kernels (one GEMM per M tile; K fully flattened, weights resident)
# ---------------------------------------------------------------------------
def _conv_kernel(p_ref, w_ref, b_ref, o_ref, *, relu):
    """(tm, K) x (K, COUT_PAD) MXU GEMM + BN bias (+ ReLU) epilogue."""
    y = jnp.dot(p_ref[...], w_ref[...], preferred_element_type=jnp.float32)
    y = y + b_ref[...]
    if relu:
        y = jnp.maximum(y, 0.0)
    o_ref[...] = y.astype(o_ref.dtype)


def _conv_res_kernel(p_ref, w_ref, b_ref, r_ref, o_ref):
    """Second conv of a BasicBlock: GEMM + BN bias + residual add + ReLU."""
    y = jnp.dot(p_ref[...], w_ref[...], preferred_element_type=jnp.float32)
    y = y + b_ref[...] + r_ref[...].astype(jnp.float32)
    o_ref[...] = jnp.maximum(y, 0.0).astype(o_ref.dtype)


def _conv_ds_kernel(p_ref, w1_ref, b1_ref, wd_ref, bd_ref, o1_ref, od_ref):
    """Fused conv1(+BN+ReLU) and 1x1 downsample(+BN) sharing one patch tile.

    The downsample weights are packed into the rows of K corresponding to the
    centre tap of conv1's 3x3 window, so both branches reuse p_ref."""
    p = p_ref[...]
    y1 = jnp.dot(p, w1_ref[...], preferred_element_type=jnp.float32) + b1_ref[...]
    o1_ref[...] = jnp.maximum(y1, 0.0).astype(o1_ref.dtype)
    yd = jnp.dot(p, wd_ref[...], preferred_element_type=jnp.float32) + bd_ref[...]
    od_ref[...] = yd.astype(od_ref.dtype)


def _maxpool_kernel(x_ref, o_ref):
    """Running max over the KK window slabs of one resident (KK, tm, C) block."""
    kk = x_ref.shape[0]
    m = x_ref[0].astype(jnp.float32)
    for k in range(1, kk):
        m = jnp.maximum(m, x_ref[k].astype(jnp.float32))
    o_ref[...] = m.astype(o_ref.dtype)


# ---------------------------------------------------------------------------
# Glue: im2col views (JAX-side) + tiling utils
# ---------------------------------------------------------------------------
def _round_up(x, m):
    return ((x + m - 1) // m) * m


def _choose_tm(m_pad):
    # Largest M tile (<= 1024 rows) dividing m_pad: one grid step per tile;
    # with K <= 640 bf16 columns the double-buffered patch tile stays < 3 MiB,
    # safely inside v7x's 64 MiB VMEM (and trivially inside v5e/v6e's 128 MiB).
    for t in (1024, 512, 256, 128, 64, 32, 16, 8):
        if m_pad % t == 0:
            return t
    return m_pad


def _shifted_views(x, kh, kw, stride, pad, pad_value=0.0):
    """x: (N,H,W,C) -> list of KH*KW shifted strided views, each (N*OH*OW, C)."""
    n, h, w, c = x.shape
    xp = jnp.pad(x, ((0, 0), (pad, pad), (pad, pad), (0, 0)),
                 constant_values=pad_value)
    oh = (h + 2 * pad - kh) // stride + 1
    ow = (w + 2 * pad - kw) // stride + 1
    views = []
    for i in range(kh):
        for j in range(kw):
            views.append(
                xp[:, i:i + stride * oh:stride, j:j + stride * ow:stride, :]
                .reshape(n * oh * ow, c))
    return views, oh, ow


_COMPILER_PARAMS = pltpu.CompilerParams(
    dimension_semantics=("parallel",),
    vmem_limit_bytes=32 * 1024 * 1024,   # conservative; fits v5e/v6e/v7x
)


def conv_bn(x, p, *, stride, pad, relu=True, residual=None, p_ds=None):
    """Conv + folded-BN (+ReLU) as a single flattened-K GEMM.

    x: (N,H,W,Cin) real channels, any float dtype (cast to bf16 for the MXU).
    p: packed params {'w': (K_pad, COUT_PAD) bf16, 'bias': (1, COUT_PAD) f32,
       'ksize': int, 'cout': int}.
    residual: optional (N,OH,OW,Cout) identity branch (added before ReLU).
    p_ds: optional packed 1x1 downsample params sharing p's patch K-space;
          returns (main_out, downsample_out) when given.
    Returns bf16 NHWC activation(s) with real channel count."""
    w, b, ks, cout = p["w"], p["bias"], p["ksize"], p["cout"]
    k_pad, cout_pad = w.shape
    n = x.shape[0]

    views, oh, ow = _shifted_views(x.astype(jnp.bfloat16), ks, ks, stride, pad)
    patches = jnp.concatenate(views, axis=1)          # (M, KK*Cin_real)
    m, k_real = patches.shape
    m_pad = _round_up(m, 8)
    tm = _choose_tm(m_pad)
    patches = jnp.pad(patches, ((0, m_pad - m), (0, k_pad - k_real)))

    p_spec = pl.BlockSpec((tm, k_pad), lambda i: (i, 0))
    w_spec = pl.BlockSpec((k_pad, cout_pad), lambda i: (0, 0))
    b_spec = pl.BlockSpec((1, cout_pad), lambda i: (0, 0))
    o_spec = pl.BlockSpec((tm, cout_pad), lambda i: (i, 0))

    in_specs = [p_spec, w_spec, b_spec]
    args = [patches, w, b]
    out_shape = jax.ShapeDtypeStruct((m_pad, cout_pad), jnp.bfloat16)
    out_specs = o_spec
    n_mats = 1

    if p_ds is not None:
        in_specs += [w_spec, b_spec]
        args += [p_ds["w"], p_ds["bias"]]
        kernel = _conv_ds_kernel
        out_shape = (out_shape,
                     jax.ShapeDtypeStruct((m_pad, cout_pad), jnp.bfloat16))
        out_specs = (o_spec, o_spec)
        n_mats = 2
    elif residual is not None:
        r = residual.astype(jnp.bfloat16).reshape(m, -1)
        r = jnp.pad(r, ((0, m_pad - m), (0, cout_pad - r.shape[1])))
        in_specs.append(o_spec)
        args.append(r)
        kernel = _conv_res_kernel
    else:
        kernel = functools.partial(_conv_kernel, relu=relu)

    cost = pl.CostEstimate(
        flops=2 * m_pad * k_pad * cout_pad * n_mats,
        transcendentals=0,
        bytes_accessed=int(
            m_pad * k_pad * 2                               # bf16 patches
            + n_mats * k_pad * cout_pad * 2                 # bf16 weights
            + (n_mats + int(residual is not None)) * m_pad * cout_pad * 2),
    )

    outs = pl.pallas_call(
        kernel,
        out_shape=out_shape,
        grid_spec=pltpu.PrefetchScalarGridSpec(
            num_scalar_prefetch=0,
            grid=(m_pad // tm,),
            in_specs=in_specs,
            out_specs=out_specs,
        ),
        compiler_params=_COMPILER_PARAMS,
        cost_estimate=cost,
    )(*args)

    def _to_nhwc(o, c):
        return o[:m, :c].reshape(n, oh, ow, c)

    if p_ds is not None:
        return _to_nhwc(outs[0], cout), _to_nhwc(outs[1], p_ds["cout"])
    return _to_nhwc(outs, cout)


def maxpool(x, k=3, stride=2, pad=1):
    """3x3 / stride-2 max pool; all KK window slabs reduced in one grid step."""
    n, h, w, c = x.shape
    views, oh, ow = _shifted_views(x, k, k, stride, pad, pad_value=-jnp.inf)
    stack = jnp.stack(views, axis=0)                  # (KK, M, C)
    kk, m, _ = stack.shape
    m_pad = _round_up(m, 8)
    tm = _choose_tm(m_pad)
    if m_pad != m:
        stack = jnp.pad(stack, ((0, 0), (0, m_pad - m), (0, 0)),
                        constant_values=-jnp.inf)

    out = pl.pallas_call(
        _maxpool_kernel,
        out_shape=jax.ShapeDtypeStruct((m_pad, c), x.dtype),
        grid_spec=pltpu.PrefetchScalarGridSpec(
            num_scalar_prefetch=0,
            grid=(m_pad // tm,),
            in_specs=[pl.BlockSpec((kk, tm, c), lambda i: (0, i, 0))],
            out_specs=pl.BlockSpec((tm, c), lambda i: (i, 0)),
        ),
        compiler_params=_COMPILER_PARAMS,
    )(stack)
    return out[:m].reshape(n, oh, ow, c)


# ---------------------------------------------------------------------------
# Deterministic parameters (eval-mode BN scale folded into weights)
# ---------------------------------------------------------------------------
def _fold_bn_weights(key, ksize, cin, cout):
    k1, k2, k3 = jax.random.split(key, 3)
    fan_in = ksize * ksize * cin
    w = jax.random.normal(k1, (ksize, ksize, cin, cout), jnp.float32) / jnp.sqrt(
        jnp.float32(fan_in))
    gamma = 1.0 + 0.1 * jax.random.normal(k2, (cout,), jnp.float32)
    beta = 0.1 * jax.random.normal(k3, (cout,), jnp.float32)
    running_mean = jnp.zeros((cout,), jnp.float32)
    running_var = jnp.ones((cout,), jnp.float32)
    eps = 1e-5
    scale = gamma / jnp.sqrt(running_var + eps)
    bias = beta - running_mean * scale
    return w * scale, bias


def _pack_conv(key, ksize, cin, cout, *, row_offset=0, patch_ksize=None):
    """Pack a folded conv+BN into the flattened-K GEMM layout.

    K rows are ordered (ki, kj, cin).  `row_offset`/`patch_ksize` place a
    smaller kernel (the 1x1 downsample) inside a larger patch K-space so it
    can share conv1's patch matrix."""
    w, bias = _fold_bn_weights(key, ksize, cin, cout)
    pk = patch_ksize if patch_ksize is not None else ksize
    k_pad = _round_up(pk * pk * cin, 128)
    wm = jnp.zeros((k_pad, COUT_PAD), jnp.float32)
    wm = wm.at[row_offset:row_offset + ksize * ksize * cin, :cout].set(
        w.reshape(ksize * ksize * cin, cout))
    bp = jnp.zeros((1, COUT_PAD), jnp.float32).at[0, :cout].set(bias)
    return {"w": wm.astype(jnp.bfloat16), "bias": bp, "ksize": pk, "cout": cout}


def init_resnet_params(key, in_ch=3, base=8):
    keys = jax.random.split(key, 64)
    kit = iter(keys)
    params = {"conv1": _pack_conv(next(kit), 7, in_ch, base)}
    widths = [base, base * 2, base * 4, base * 8]
    layers = []
    cin = base
    for li, cout in enumerate(widths):
        blocks = []
        for bi in range(2):  # resnet18: 2 BasicBlocks per stage
            stride = 2 if (li > 0 and bi == 0) else 1
            block = {
                "stride": stride,
                "conv1": _pack_conv(next(kit), 3, cin, cout),
                "conv2": _pack_conv(next(kit), 3, cout, cout),
                "downsample": None,
            }
            if stride != 1 or cin != cout:
                # 1x1 downsample packed at the centre tap (i=1,j=1) of conv1's
                # 3x3 pad=1 patch K-space -> fused into conv1's pallas_call.
                block["downsample"] = _pack_conv(
                    next(kit), 1, cin, cout, row_offset=4 * cin, patch_ksize=3)
            blocks.append(block)
            cin = cout
        layers.append(blocks)
    params["layers"] = layers
    return params


# ---------------------------------------------------------------------------
# Forward pass (mirrors ResNet.forward: stem + 4 stages, returns 4 features)
# ---------------------------------------------------------------------------
def resnet_forward(params, x_nchw):
    x = jnp.transpose(x_nchw.astype(jnp.float32), (0, 2, 3, 1))  # NCHW -> NHWC

    # children[0:4]: conv1 (7x7/s2) + bn1 + relu, then 3x3/s2 maxpool
    x = conv_bn(x, params["conv1"], stride=2, pad=3, relu=True)
    x = maxpool(x, k=3, stride=2, pad=1)

    feats = []
    # children[4:8]: layer1..layer4 (BasicBlocks)
    for blocks in params["layers"]:
        for blk in blocks:
            stride = blk["stride"]
            if blk["downsample"] is not None:
                # conv1(+BN+ReLU) and 1x1 downsample(+BN) fused in one call.
                out1, identity = conv_bn(x, blk["conv1"], stride=stride, pad=1,
                                         relu=True, p_ds=blk["downsample"])
            else:
                identity = x
                out1 = conv_bn(x, blk["conv1"], stride=stride, pad=1, relu=True)
            # conv2 + BN + residual add + ReLU fused in one Pallas kernel.
            x = conv_bn(out1, blk["conv2"], stride=1, pad=1, relu=False,
                        residual=identity)
        feats.append(x)

    # Return features in PyTorch NCHW convention (f32, like the reference).
    return [jnp.transpose(f, (0, 3, 1, 2)).astype(jnp.float32) for f in feats]


if __name__ == "__main__":
    key = jax.random.PRNGKey(0)
    kx, kp = jax.random.split(key)

    # Small input consistent with a CNN backbone: NCHW (2, 3, 32, 32)
    x = jax.random.normal(kx, (2, 3, 32, 32), jnp.float32)
    params = init_resnet_params(kp, in_ch=3, base=8)

    fwd = jax.jit(lambda inp: resnet_forward(params, inp))
    r_feature = fwd(x)
    for f in r_feature:
        jax.block_until_ready(f)

    expected = [(2, 8, 8, 8), (2, 16, 4, 4), (2, 32, 2, 2), (2, 64, 1, 1)]
    got = [tuple(f.shape) for f in r_feature]
    assert got == expected, got
    assert all(bool(jnp.all(jnp.isfinite(f))) for f in r_feature)
    print("KERNEL_OK")
</pallas_src>

<mosaic_0001>
module attributes {stable_mosaic.version = 11 : i64} {
  func.func @_conv_kernel(%arg0: i32, %arg1: memref<512x256xbf16, #tpu.memory_space<vmem>>, %arg2: memref<256x128xbf16, #tpu.memory_space<vmem>>, %arg3: memref<1x128xf32, #tpu.memory_space<vmem>>, %arg4: memref<512x128xbf16, #tpu.memory_space<vmem>>) attributes {dimension_semantics = [#tpu.dimension_semantics<parallel>], iteration_bounds = array<i64: 1>, scalar_prefetch = 0 : i64, scratch_operands = 0 : i64, tpu.core_type = #tpu.core_type<tc>, window_params = [{transform_indices = @transform_0, window_bounds = array<i64: 512, 256>}, {pipeline_mode = #tpu.pipeline_mode<synchronous>, transform_indices = @transform_1, window_bounds = array<i64: 256, 128>}, {pipeline_mode = #tpu.pipeline_mode<synchronous>, transform_indices = @transform_2, window_bounds = array<i64: 1, 128>}, {transform_indices = @transform_3, window_bounds = array<i64: 512, 128>}]} {
    %c0 = arith.constant 0 : index
    %c0_0 = arith.constant 0 : index
    %0 = vector.load %arg1[%c0, %c0_0] : memref<512x256xbf16, #tpu.memory_space<vmem>>, vector<512x256xbf16>
    %c0_1 = arith.constant 0 : index
    %c0_2 = arith.constant 0 : index
    %1 = vector.load %arg2[%c0_1, %c0_2] : memref<256x128xbf16, #tpu.memory_space<vmem>>, vector<256x128xbf16>
    %cst = arith.constant dense<0.000000e+00> : vector<512x128xf32>
    %2 = tpu.matmul %0, %1, %cst {dimension_numbers = #tpu.dot_dimension_numbers<[1], [0], [0], [1], [0, 0, 1, 1], [], []>} : vector<512x256xbf16>, vector<256x128xbf16>, vector<512x128xf32> -> vector<512x128xf32>
    %c0_3 = arith.constant 0 : index
    %c0_4 = arith.constant 0 : index
    %3 = vector.load %arg3[%c0_3, %c0_4] : memref<1x128xf32, #tpu.memory_space<vmem>>, vector<1x128xf32>
    %4 = vector.broadcast %3 : vector<1x128xf32> to vector<512x128xf32>
    %5 = arith.addf %2, %4 : vector<512x128xf32>
    %cst_5 = arith.constant 0.000000e+00 : f32
    %6 = vector.broadcast %cst_5 : f32 to vector<512x128xf32>
    %7 = arith.maximumf %5, %6 : vector<512x128xf32>
    %8 = arith.truncf %7 : vector<512x128xf32> to vector<512x128xbf16>
    %c0_6 = arith.constant 0 : index
    %c0_7 = arith.constant 0 : index
    %9 = vector.load %arg4[%c0_6, %c0_7] : memref<512x128xbf16, #tpu.memory_space<vmem>>, vector<512x128xbf16>
    tpu.vector_store %arg4[%c0_6, %c0_7], %8 {strides = array<i32>} : memref<512x128xbf16, #tpu.memory_space<vmem>>, vector<512x128xbf16>,
    return
  }
  func.func @transform_0(%arg0: i32) -> (i32, i32) {
    %c0_i32 = arith.constant 0 : i32
    %c0_i32_0 = arith.constant 0 : i32
    return %arg0, %c0_i32 : i32, i32
  }
  func.func @transform_1(%arg0: i32) -> (i32, i32) {
    %c0_i32 = arith.constant 0 : i32
    %c0_i32_0 = arith.constant 0 : i32
    %c0_i32_1 = arith.constant 0 : i32
    return %c0_i32, %c0_i32_0 : i32, i32
  }
  func.func @transform_2(%arg0: i32) -> (i32, i32) {
    %c0_i32 = arith.constant 0 : i32
    %c0_i32_0 = arith.constant 0 : i32
    %c0_i32_1 = arith.constant 0 : i32
    return %c0_i32, %c0_i32_0 : i32, i32
  }
  func.func @transform_3(%arg0: i32) -> (i32, i32) {
    %c0_i32 = arith.constant 0 : i32
    %c0_i32_0 = arith.constant 0 : i32
    return %arg0, %c0_i32 : i32, i32
  }
}

module attributes {stable_mosaic.version = 11 : i64} {
  func.func @_maxpool_kernel(%arg0: i32, %arg1: memref<9x128x8xbf16, #tpu.memory_space<vmem>>, %arg2: memref<128x8xbf16, #tpu.memory_space<vmem>>) attributes {dimension_semantics = [#tpu.dimension_semantics<parallel>], iteration_bounds = array<i64: 1>, scalar_prefetch = 0 : i64, scratch_operands = 0 : i64, tpu.core_type = #tpu.core_type<tc>, window_params = [{transform_indices = @transform_0, window_bounds = array<i64: 9, 128, 8>}, {transform_indices = @transform_1, window_bounds = array<i64: 128, 8>}]} {
    %c0 = arith.constant 0 : index
    %c0_0 = arith.constant 0 : index
    %c0_1 = arith.constant 0 : index
    %0 = vector.load %arg1[%c0, %c0_0, %c0_1] : memref<9x128x8xbf16, #tpu.memory_space<vmem>>, vector<1x128x8xbf16>
    %1 = vector.shape_cast %0 : vector<1x128x8xbf16> to vector<128x8xbf16>
    %2 = arith.extf %1 : vector<128x8xbf16> to vector<128x8xf32>
    %c1 = arith.constant 1 : index
    %c0_2 = arith.constant 0 : index
    %c0_3 = arith.constant 0 : index
    %3 = vector.load %arg1[%c1, %c0_2, %c0_3] : memref<9x128x8xbf16, #tpu.memory_space<vmem>>, vector<1x128x8xbf16>
    %4 = vector.shape_cast %3 : vector<1x128x8xbf16> to vector<128x8xbf16>
    %5 = arith.extf %4 : vector<128x8xbf16> to vector<128x8xf32>
    %6 = arith.maximumf %2, %5 : vector<128x8xf32>
    %c2 = arith.constant 2 : index
    %c0_4 = arith.constant 0 : index
    %c0_5 = arith.constant 0 : index
    %7 = vector.load %arg1[%c2, %c0_4, %c0_5] : memref<9x128x8xbf16, #tpu.memory_space<vmem>>, vector<1x128x8xbf16>
    %8 = vector.shape_cast %7 : vector<1x128x8xbf16> to vector<128x8xbf16>
    %9 = arith.extf %8 : vector<128x8xbf16> to vector<128x8xf32>
    %10 = arith.maximumf %6, %9 : vector<128x8xf32>
    %c3 = arith.constant 3 : index
    %c0_6 = arith.constant 0 : index
    %c0_7 = arith.constant 0 : index
    %11 = vector.load %arg1[%c3, %c0_6, %c0_7] : memref<9x128x8xbf16, #tpu.memory_space<vmem>>, vector<1x128x8xbf16>
    %12 = vector.shape_cast %11 : vector<1x128x8xbf16> to vector<128x8xbf16>
    %13 = arith.extf %12 : vector<128x8xbf16> to vector<128x8xf32>
    %14 = arith.maximumf %10, %13 : vector<128x8xf32>
    %c4 = arith.constant 4 : index
    %c0_8 = arith.constant 0 : index
    %c0_9 = arith.constant 0 : index
    %15 = vector.load %arg1[%c4, %c0_8, %c0_9] : memref<9x128x8xbf16, #tpu.memory_space<vmem>>, vector<1x128x8xbf16>
    %16 = vector.shape_cast %15 : vector<1x128x8xbf16> to vector<128x8xbf16>
    %17 = arith.extf %16 : vector<128x8xbf16> to vector<128x8xf32>
    %18 = arith.maximumf %14, %17 : vector<128x8xf32>
    %c5 = arith.constant 5 : index
    %c0_10 = arith.constant 0 : index
    %c0_11 = arith.constant 0 : index
    %19 = vector.load %arg1[%c5, %c0_10, %c0_11] : memref<9x128x8xbf16, #tpu.memory_space<vmem>>, vector<1x128x8xbf16>
    %20 = vector.shape_cast %19 : vector<1x128x8xbf16> to vector<128x8xbf16>
    %21 = arith.extf %20 : vector<128x8xbf16> to vector<128x8xf32>
    %22 = arith.maximumf %18, %21 : vector<128x8xf32>
    %c6 = arith.constant 6 : index
    %c0_12 = arith.constant 0 : index
    %c0_13 = arith.constant 0 : index
    %23 = vector.load %arg1[%c6, %c0_12, %c0_13] : memref<9x128x8xbf16, #tpu.memory_space<vmem>>, vector<1x128x8xbf16>
    %24 = vector.shape_cast %23 : vector<1x128x8xbf16> to vector<128x8xbf16>
    %25 = arith.extf %24 : vector<128x8xbf16> to vector<128x8xf32>
    %26 = arith.maximumf %22, %25 : vector<128x8xf32>
    %c7 = arith.constant 7 : index
    %c0_14 = arith.constant 0 : index
    %c0_15 = arith.constant 0 : index
    %27 = vector.load %arg1[%c7, %c0_14, %c0_15] : memref<9x128x8xbf16, #tpu.memory_space<vmem>>, vector<1x128x8xbf16>
    %28 = vector.shape_cast %27 : vector<1x128x8xbf16> to vector<128x8xbf16>
    %29 = arith.extf %28 : vector<128x8xbf16> to vector<128x8xf32>
    %30 = arith.maximumf %26, %29 : vector<128x8xf32>
    %c8 = arith.constant 8 : index
    %c0_16 = arith.constant 0 : index
    %c0_17 = arith.constant 0 : index
    %31 = vector.load %arg1[%c8, %c0_16, %c0_17] : memref<9x128x8xbf16, #tpu.memory_space<vmem>>, vector<1x128x8xbf16>
    %32 = vector.shape_cast %31 : vector<1x128x8xbf16> to vector<128x8xbf16>
    %33 = arith.extf %32 : vector<128x8xbf16> to vector<128x8xf32>
    %34 = arith.maximumf %30, %33 : vector<128x8xf32>
    %35 = arith.truncf %34 : vector<128x8xf32> to vector<128x8xbf16>
    %c0_18 = arith.constant 0 : index
    %c0_19 = arith.constant 0 : index
    %36 = vector.load %arg2[%c0_18, %c0_19] : memref<128x8xbf16, #tpu.memory_space<vmem>>, vector<128x8xbf16>
    tpu.vector_store %arg2[%c0_18, %c0_19], %35 {strides = array<i32>} : memref<128x8xbf16, #tpu.memory_space<vmem>>, vector<128x8xbf16>,
    return
  }
  func.func @transform_0(%arg0: i32) -> (i32, i32, i32) {
    %c0_i32 = arith.constant 0 : i32
    %c0_i32_0 = arith.constant 0 : i32
    %c0_i32_1 = arith.constant 0 : i32
    return %c0_i32, %arg0, %c0_i32_0 : i32, i32, i32
  }
  func.func @transform_1(%arg0: i32) -> (i32, i32) {
    %c0_i32 = arith.constant 0 : i32
    %c0_i32_0 = arith.constant 0 : i32
    return %arg0, %c0_i32 : i32, i32
  }
}

module attributes {stable_mosaic.version = 11 : i64} {
  func.func @_conv_kernel(%arg0: i32, %arg1: memref<128x128xbf16, #tpu.memory_space<vmem>>, %arg2: memref<128x128xbf16, #tpu.memory_space<vmem>>, %arg3: memref<1x128xf32, #tpu.memory_space<vmem>>, %arg4: memref<128x128xbf16, #tpu.memory_space<vmem>>) attributes {dimension_semantics = [#tpu.dimension_semantics<parallel>], iteration_bounds = array<i64: 1>, scalar_prefetch = 0 : i64, scratch_operands = 0 : i64, tpu.core_type = #tpu.core_type<tc>, window_params = [{transform_indices = @transform_0, window_bounds = array<i64: 128, 128>}, {pipeline_mode = #tpu.pipeline_mode<synchronous>, transform_indices = @transform_1, window_bounds = array<i64: 128, 128>}, {pipeline_mode = #tpu.pipeline_mode<synchronous>, transform_indices = @transform_2, window_bounds = array<i64: 1, 128>}, {transform_indices = @transform_3, window_bounds = array<i64: 128, 128>}]} {
    %c0 = arith.constant 0 : index
    %c0_0 = arith.constant 0 : index
    %0 = vector.load %arg1[%c0, %c0_0] : memref<128x128xbf16, #tpu.memory_space<vmem>>, vector<128x128xbf16>
    %c0_1 = arith.constant 0 : index
    %c0_2 = arith.constant 0 : index
    %1 = vector.load %arg2[%c0_1, %c0_2] : memref<128x128xbf16, #tpu.memory_space<vmem>>, vector<128x128xbf16>
    %cst = arith.constant dense<0.000000e+00> : vector<128x128xf32>
    %2 = tpu.matmul %0, %1, %cst {dimension_numbers = #tpu.dot_dimension_numbers<[1], [0], [0], [1], [0, 0, 1, 1], [], []>} : vector<128x128xbf16>, vector<128x128xbf16>, vector<128x128xf32> -> vector<128x128xf32>
    %c0_3 = arith.constant 0 : index
    %c0_4 = arith.constant 0 : index
    %3 = vector.load %arg3[%c0_3, %c0_4] : memref<1x128xf32, #tpu.memory_space<vmem>>, vector<1x128xf32>
    %4 = vector.broadcast %3 : vector<1x128xf32> to vector<128x128xf32>
    %5 = arith.addf %2, %4 : vector<128x128xf32>
    %cst_5 = arith.constant 0.000000e+00 : f32
    %6 = vector.broadcast %cst_5 : f32 to vector<128x128xf32>
    %7 = arith.maximumf %5, %6 : vector<128x128xf32>
    %8 = arith.truncf %7 : vector<128x128xf32> to vector<128x128xbf16>
    %c0_6 = arith.constant 0 : index
    %c0_7 = arith.constant 0 : index
    %9 = vector.load %arg4[%c0_6, %c0_7] : memref<128x128xbf16, #tpu.memory_space<vmem>>, vector<128x128xbf16>
    tpu.vector_store %arg4[%c0_6, %c0_7], %8 {strides = array<i32>} : memref<128x128xbf16, #tpu.memory_space<vmem>>, vector<128x128xbf16>,
    return
  }
  func.func @transform_0(%arg0: i32) -> (i32, i32) {
    %c0_i32 = arith.constant 0 : i32
    %c0_i32_0 = arith.constant 0 : i32
    return %arg0, %c0_i32 : i32, i32
  }
  func.func @transform_1(%arg0: i32) -> (i32, i32) {
    %c0_i32 = arith.constant 0 : i32
    %c0_i32_0 = arith.constant 0 : i32
    %c0_i32_1 = arith.constant 0 : i32
    return %c0_i32, %c0_i32_0 : i32, i32
  }
  func.func @transform_2(%arg0: i32) -> (i32, i32) {
    %c0_i32 = arith.constant 0 : i32
    %c0_i32_0 = arith.constant 0 : i32
    %c0_i32_1 = arith.constant 0 : i32
    return %c0_i32, %c0_i32_0 : i32, i32
  }
  func.func @transform_3(%arg0: i32) -> (i32, i32) {
    %c0_i32 = arith.constant 0 : i32
    %c0_i32_0 = arith.constant 0 : i32
    return %arg0, %c0_i32 : i32, i32
  }
}

module attributes {stable_mosaic.version = 11 : i64} {
  func.func @_conv_res_kernel(%arg0: i32, %arg1: memref<128x128xbf16, #tpu.memory_space<vmem>>, %arg2: memref<128x128xbf16, #tpu.memory_space<vmem>>, %arg3: memref<1x128xf32, #tpu.memory_space<vmem>>, %arg4: memref<128x128xbf16, #tpu.memory_space<vmem>>, %arg5: memref<128x128xbf16, #tpu.memory_space<vmem>>) attributes {dimension_semantics = [#tpu.dimension_semantics<parallel>], iteration_bounds = array<i64: 1>, scalar_prefetch = 0 : i64, scratch_operands = 0 : i64, tpu.core_type = #tpu.core_type<tc>, window_params = [{transform_indices = @transform_0, window_bounds = array<i64: 128, 128>}, {pipeline_mode = #tpu.pipeline_mode<synchronous>, transform_indices = @transform_1, window_bounds = array<i64: 128, 128>}, {pipeline_mode = #tpu.pipeline_mode<synchronous>, transform_indices = @transform_2, window_bounds = array<i64: 1, 128>}, {transform_indices = @transform_3, window_bounds = array<i64: 128, 128>}, {transform_indices = @transform_4, window_bounds = array<i64: 128, 128>}]} {
    %c0 = arith.constant 0 : index
    %c0_0 = arith.constant 0 : index
    %0 = vector.load %arg1[%c0, %c0_0] : memref<128x128xbf16, #tpu.memory_space<vmem>>, vector<128x128xbf16>
    %c0_1 = arith.constant 0 : index
    %c0_2 = arith.constant 0 : index
    %1 = vector.load %arg2[%c0_1, %c0_2] : memref<128x128xbf16, #tpu.memory_space<vmem>>, vector<128x128xbf16>
    %cst = arith.constant dense<0.000000e+00> : vector<128x128xf32>
    %2 = tpu.matmul %0, %1, %cst {dimension_numbers = #tpu.dot_dimension_numbers<[1], [0], [0], [1], [0, 0, 1, 1], [], []>} : vector<128x128xbf16>, vector<128x128xbf16>, vector<128x128xf32> -> vector<128x128xf32>
    %c0_3 = arith.constant 0 : index
    %c0_4 = arith.constant 0 : index
    %3 = vector.load %arg3[%c0_3, %c0_4] : memref<1x128xf32, #tpu.memory_space<vmem>>, vector<1x128xf32>
    %4 = vector.broadcast %3 : vector<1x128xf32> to vector<128x128xf32>
    %5 = arith.addf %2, %4 : vector<128x128xf32>
    %c0_5 = arith.constant 0 : index
    %c0_6 = arith.constant 0 : index
    %6 = vector.load %arg4[%c0_5, %c0_6] : memref<128x128xbf16, #tpu.memory_space<vmem>>, vector<128x128xbf16>
    %7 = arith.extf %6 : vector<128x128xbf16> to vector<128x128xf32>
    %8 = arith.addf %5, %7 : vector<128x128xf32>
    %cst_7 = arith.constant 0.000000e+00 : f32
    %9 = vector.broadcast %cst_7 : f32 to vector<128x128xf32>
    %10 = arith.maximumf %8, %9 : vector<128x128xf32>
    %11 = arith.truncf %10 : vector<128x128xf32> to vector<128x128xbf16>
    %c0_8 = arith.constant 0 : index
    %c0_9 = arith.constant 0 : index
    %12 = vector.load %arg5[%c0_8, %c0_9] : memref<128x128xbf16, #tpu.memory_space<vmem>>, vector<128x128xbf16>
    tpu.vector_store %arg5[%c0_8, %c0_9], %11 {strides = array<i32>} : memref<128x128xbf16, #tpu.memory_space<vmem>>, vector<128x128xbf16>,
    return
  }
  func.func @transform_0(%arg0: i32) -> (i32, i32) {
    %c0_i32 = arith.constant 0 : i32
    %c0_i32_0 = arith.constant 0 : i32
    return %arg0, %c0_i32 : i32, i32
  }
  func.func @transform_1(%arg0: i32) -> (i32, i32) {
    %c0_i32 = arith.constant 0 : i32
    %c0_i32_0 = arith.constant 0 : i32
    %c0_i32_1 = arith.constant 0 : i32
    return %c0_i32, %c0_i32_0 : i32, i32
  }
  func.func @transform_2(%arg0: i32) -> (i32, i32) {
    %c0_i32 = arith.constant 0 : i32
    %c0_i32_0 = arith.constant 0 : i32
    %c0_i32_1 = arith.constant 0 : i32
    return %c0_i32, %c0_i32_0 : i32, i32
  }
  func.func @transform_3(%arg0: i32) -> (i32, i32) {
    %c0_i32 = arith.constant 0 : i32
    %c0_i32_0 = arith.constant 0 : i32
    return %arg0, %c0_i32 : i32, i32
  }
  func.func @transform_4(%arg0: i32) -> (i32, i32) {
    %c0_i32 = arith.constant 0 : i32
    %c0_i32_0 = arith.constant 0 : i32
    return %arg0, %c0_i32 : i32, i32
  }
}

module attributes {stable_mosaic.version = 11 : i64} {
  func.func @_conv_ds_kernel(%arg0: i32, %arg1: memref<32x128xbf16, #tpu.memory_space<vmem>>, %arg2: memref<128x128xbf16, #tpu.memory_space<vmem>>, %arg3: memref<1x128xf32, #tpu.memory_space<vmem>>, %arg4: memref<128x128xbf16, #tpu.memory_space<vmem>>, %arg5: memref<1x128xf32, #tpu.memory_space<vmem>>, %arg6: memref<32x128xbf16, #tpu.memory_space<vmem>>, %arg7: memref<32x128xbf16, #tpu.memory_space<vmem>>) attributes {dimension_semantics = [#tpu.dimension_semantics<parallel>], iteration_bounds = array<i64: 1>, scalar_prefetch = 0 : i64, scratch_operands = 0 : i64, tpu.core_type = #tpu.core_type<tc>, window_params = [{transform_indices = @transform_0, window_bounds = array<i64: 32, 128>}, {pipeline_mode = #tpu.pipeline_mode<synchronous>, transform_indices = @transform_1, window_bounds = array<i64: 128, 128>}, {pipeline_mode = #tpu.pipeline_mode<synchronous>, transform_indices = @transform_2, window_bounds = array<i64: 1, 128>}, {pipeline_mode = #tpu.pipeline_mode<synchronous>, transform_indices = @transform_3, window_bounds = array<i64: 128, 128>}, {pipeline_mode = #tpu.pipeline_mode<synchronous>, transform_indices = @transform_4, window_bounds = array<i64: 1, 128>}, {transform_indices = @transform_5, window_bounds = array<i64: 32, 128>}, {transform_indices = @transform_6, window_bounds = array<i64: 32, 128>}]} {
    %c0 = arith.constant 0 : index
    %c0_0 = arith.constant 0 : index
    %0 = vector.load %arg1[%c0, %c0_0] : memref<32x128xbf16, #tpu.memory_space<vmem>>, vector<32x128xbf16>
    %c0_1 = arith.constant 0 : index
    %c0_2 = arith.constant 0 : index
    %1 = vector.load %arg2[%c0_1, %c0_2] : memref<128x128xbf16, #tpu.memory_space<vmem>>, vector<128x128xbf16>
    %cst = arith.constant dense<0.000000e+00> : vector<32x128xf32>
    %2 = tpu.matmul %0, %1, %cst {dimension_numbers = #tpu.dot_dimension_numbers<[1], [0], [0], [1], [0, 0, 1, 1], [], []>} : vector<32x128xbf16>, vector<128x128xbf16>, vector<32x128xf32> -> vector<32x128xf32>
    %c0_3 = arith.constant 0 : index
    %c0_4 = arith.constant 0 : index
    %3 = vector.load %arg3[%c0_3, %c0_4] : memref<1x128xf32, #tpu.memory_space<vmem>>, vector<1x128xf32>
    %4 = vector.broadcast %3 : vector<1x128xf32> to vector<32x128xf32>
    %5 = arith.addf %2, %4 : vector<32x128xf32>
    %cst_5 = arith.constant 0.000000e+00 : f32
    %6 = vector.broadcast %cst_5 : f32 to vector<32x128xf32>
    %7 = arith.maximumf %5, %6 : vector<32x128xf32>
    %8 = arith.truncf %7 : vector<32x128xf32> to vector<32x128xbf16>
    %c0_6 = arith.constant 0 : index
    %c0_7 = arith.constant 0 : index
    %9 = vector.load %arg6[%c0_6, %c0_7] : memref<32x128xbf16, #tpu.memory_space<vmem>>, vector<32x128xbf16>
    tpu.vector_store %arg6[%c0_6, %c0_7], %8 {strides = array<i32>} : memref<32x128xbf16, #tpu.memory_space<vmem>>, vector<32x128xbf16>,
    %c0_8 = arith.constant 0 : index
    %c0_9 = arith.constant 0 : index
    %10 = vector.load %arg4[%c0_8, %c0_9] : memref<128x128xbf16, #tpu.memory_space<vmem>>, vector<128x128xbf16>
    %cst_10 = arith.constant dense<0.000000e+00> : vector<32x128xf32>
    %11 = tpu.matmul %0, %10, %cst_10 {dimension_numbers = #tpu.dot_dimension_numbers<[1], [0], [0], [1], [0, 0, 1, 1], [], []>} : vector<32x128xbf16>, vector<128x128xbf16>, vector<32x128xf32> -> vector<32x128xf32>
    %c0_11 = arith.constant 0 : index
    %c0_12 = arith.constant 0 : index
    %12 = vector.load %arg5[%c0_11, %c0_12] : memref<1x128xf32, #tpu.memory_space<vmem>>, vector<1x128xf32>
    %13 = vector.broadcast %12 : vector<1x128xf32> to vector<32x128xf32>
    %14 = arith.addf %11, %13 : vector<32x128xf32>
    %15 = arith.truncf %14 : vector<32x128xf32> to vector<32x128xbf16>
    %c0_13 = arith.constant 0 : index
    %c0_14 = arith.constant 0 : index
    %16 = vector.load %arg7[%c0_13, %c0_14] : memref<32x128xbf16, #tpu.memory_space<vmem>>, vector<32x128xbf16>
    tpu.vector_store %arg7[%c0_13, %c0_14], %15 {strides = array<i32>} : memref<32x128xbf16, #tpu.memory_space<vmem>>, vector<32x128xbf16>,
    return
  }
  func.func @transform_0(%arg0: i32) -> (i32, i32) {
    %c0_i32 = arith.constant 0 : i32
    %c0_i32_0 = arith.constant 0 : i32
    return %arg0, %c0_i32 : i32, i32
  }
  func.func @transform_1(%arg0: i32) -> (i32, i32) {
    %c0_i32 = arith.constant 0 : i32
    %c0_i32_0 = arith.constant 0 : i32
    %c0_i32_1 = arith.constant 0 : i32
    return %c0_i32, %c0_i32_0 : i32, i32
  }
  func.func @transform_2(%arg0: i32) -> (i32, i32) {
    %c0_i32 = arith.constant 0 : i32
    %c0_i32_0 = arith.constant 0 : i32
    %c0_i32_1 = arith.constant 0 : i32
    return %c0_i32, %c0_i32_0 : i32, i32
  }
  func.func @transform_3(%arg0: i32) -> (i32, i32) {
    %c0_i32 = arith.constant 0 : i32
    %c0_i32_0 = arith.constant 0 : i32
    %c0_i32_1 = arith.constant 0 : i32
    return %c0_i32, %c0_i32_0 : i32, i32
  }
  func.func @transform_4(%arg0: i32) -> (i32, i32) {
    %c0_i32 = arith.constant 0 : i32
    %c0_i32_0 = arith.constant 0 : i32
    %c0_i32_1 = arith.constant 0 : i32
    return %c0_i32, %c0_i32_0 : i32, i32
  }
  func.func @transform_5(%arg0: i32) -> (i32, i32) {
    %c0_i32 = arith.constant 0 : i32
    %c0_i32_0 = arith.constant 0 : i32
    return %arg0, %c0_i32 : i32, i32
  }
  func.func @transform_6(%arg0: i32) -> (i32, i32) {
    %c0_i32 = arith.constant 0 : i32
    %c0_i32_0 = arith.constant 0 : i32
    return %arg0, %c0_i32 : i32, i32
  }
}

module attributes {stable_mosaic.version = 11 : i64} {
  func.func @_conv_res_kernel(%arg0: i32, %arg1: memref<32x256xbf16, #tpu.memory_space<vmem>>, %arg2: memref<256x128xbf16, #tpu.memory_space<vmem>>, %arg3: memref<1x128xf32, #tpu.memory_space<vmem>>, %arg4: memref<32x128xbf16, #tpu.memory_space<vmem>>, %arg5: memref<32x128xbf16, #tpu.memory_space<vmem>>) attributes {dimension_semantics = [#tpu.dimension_semantics<parallel>], iteration_bounds = array<i64: 1>, scalar_prefetch = 0 : i64, scratch_operands = 0 : i64, tpu.core_type = #tpu.core_type<tc>, window_params = [{transform_indices = @transform_0, window_bounds = array<i64: 32, 256>}, {pipeline_mode = #tpu.pipeline_mode<synchronous>, transform_indices = @transform_1, window_bounds = array<i64: 256, 128>}, {pipeline_mode = #tpu.pipeline_mode<synchronous>, transform_indices = @transform_2, window_bounds = array<i64: 1, 128>}, {transform_indices = @transform_3, window_bounds = array<i64: 32, 128>}, {transform_indices = @transform_4, window_bounds = array<i64: 32, 128>}]} {
    %c0 = arith.constant 0 : index
    %c0_0 = arith.constant 0 : index
    %0 = vector.load %arg1[%c0, %c0_0] : memref<32x256xbf16, #tpu.memory_space<vmem>>, vector<32x256xbf16>
    %c0_1 = arith.constant 0 : index
    %c0_2 = arith.constant 0 : index
    %1 = vector.load %arg2[%c0_1, %c0_2] : memref<256x128xbf16, #tpu.memory_space<vmem>>, vector<256x128xbf16>
    %cst = arith.constant dense<0.000000e+00> : vector<32x128xf32>
    %2 = tpu.matmul %0, %1, %cst {dimension_numbers = #tpu.dot_dimension_numbers<[1], [0], [0], [1], [0, 0, 1, 1], [], []>} : vector<32x256xbf16>, vector<256x128xbf16>, vector<32x128xf32> -> vector<32x128xf32>
    %c0_3 = arith.constant 0 : index
    %c0_4 = arith.constant 0 : index
    %3 = vector.load %arg3[%c0_3, %c0_4] : memref<1x128xf32, #tpu.memory_space<vmem>>, vector<1x128xf32>
    %4 = vector.broadcast %3 : vector<1x128xf32> to vector<32x128xf32>
    %5 = arith.addf %2, %4 : vector<32x128xf32>
    %c0_5 = arith.constant 0 : index
    %c0_6 = arith.constant 0 : index
    %6 = vector.load %arg4[%c0_5, %c0_6] : memref<32x128xbf16, #tpu.memory_space<vmem>>, vector<32x128xbf16>
    %7 = arith.extf %6 : vector<32x128xbf16> to vector<32x128xf32>
    %8 = arith.addf %5, %7 : vector<32x128xf32>
    %cst_7 = arith.constant 0.000000e+00 : f32
    %9 = vector.broadcast %cst_7 : f32 to vector<32x128xf32>
    %10 = arith.maximumf %8, %9 : vector<32x128xf32>
    %11 = arith.truncf %10 : vector<32x128xf32> to vector<32x128xbf16>
    %c0_8 = arith.constant 0 : index
    %c0_9 = arith.constant 0 : index
    %12 = vector.load %arg5[%c0_8, %c0_9] : memref<32x128xbf16, #tpu.memory_space<vmem>>, vector<32x128xbf16>
    tpu.vector_store %arg5[%c0_8, %c0_9], %11 {strides = array<i32>} : memref<32x128xbf16, #tpu.memory_space<vmem>>, vector<32x128xbf16>,
    return
  }
  func.func @transform_0(%arg0: i32) -> (i32, i32) {
    %c0_i32 = arith.constant 0 : i32
    %c0_i32_0 = arith.constant 0 : i32
    return %arg0, %c0_i32 : i32, i32
  }
  func.func @transform_1(%arg0: i32) -> (i32, i32) {
    %c0_i32 = arith.constant 0 : i32
    %c0_i32_0 = arith.constant 0 : i32
    %c0_i32_1 = arith.constant 0 : i32
    return %c0_i32, %c0_i32_0 : i32, i32
  }
  func.func @transform_2(%arg0: i32) -> (i32, i32) {
    %c0_i32 = arith.constant 0 : i32
    %c0_i32_0 = arith.constant 0 : i32
    %c0_i32_1 = arith.constant 0 : i32
    return %c0_i32, %c0_i32_0 : i32, i32
  }
  func.func @transform_3(%arg0: i32) -> (i32, i32) {
    %c0_i32 = arith.constant 0 : i32
    %c0_i32_0 = arith.constant 0 : i32
    return %arg0, %c0_i32 : i32, i32
  }
  func.func @transform_4(%arg0: i32) -> (i32, i32) {
    %c0_i32 = arith.constant 0 : i32
    %c0_i32_0 = arith.constant 0 : i32
    return %arg0, %c0_i32 : i32, i32
  }
}

module attributes {stable_mosaic.version = 11 : i64} {
  func.func @_conv_kernel(%arg0: i32, %arg1: memref<32x256xbf16, #tpu.memory_space<vmem>>, %arg2: memref<256x128xbf16, #tpu.memory_space<vmem>>, %arg3: memref<1x128xf32, #tpu.memory_space<vmem>>, %arg4: memref<32x128xbf16, #tpu.memory_space<vmem>>) attributes {dimension_semantics = [#tpu.dimension_semantics<parallel>], iteration_bounds = array<i64: 1>, scalar_prefetch = 0 : i64, scratch_operands = 0 : i64, tpu.core_type = #tpu.core_type<tc>, window_params = [{transform_indices = @transform_0, window_bounds = array<i64: 32, 256>}, {pipeline_mode = #tpu.pipeline_mode<synchronous>, transform_indices = @transform_1, window_bounds = array<i64: 256, 128>}, {pipeline_mode = #tpu.pipeline_mode<synchronous>, transform_indices = @transform_2, window_bounds = array<i64: 1, 128>}, {transform_indices = @transform_3, window_bounds = array<i64: 32, 128>}]} {
    %c0 = arith.constant 0 : index
    %c0_0 = arith.constant 0 : index
    %0 = vector.load %arg1[%c0, %c0_0] : memref<32x256xbf16, #tpu.memory_space<vmem>>, vector<32x256xbf16>
    %c0_1 = arith.constant 0 : index
    %c0_2 = arith.constant 0 : index
    %1 = vector.load %arg2[%c0_1, %c0_2] : memref<256x128xbf16, #tpu.memory_space<vmem>>, vector<256x128xbf16>
    %cst = arith.constant dense<0.000000e+00> : vector<32x128xf32>
    %2 = tpu.matmul %0, %1, %cst {dimension_numbers = #tpu.dot_dimension_numbers<[1], [0], [0], [1], [0, 0, 1, 1], [], []>} : vector<32x256xbf16>, vector<256x128xbf16>, vector<32x128xf32> -> vector<32x128xf32>
    %c0_3 = arith.constant 0 : index
    %c0_4 = arith.constant 0 : index
    %3 = vector.load %arg3[%c0_3, %c0_4] : memref<1x128xf32, #tpu.memory_space<vmem>>, vector<1x128xf32>
    %4 = vector.broadcast %3 : vector<1x128xf32> to vector<32x128xf32>
    %5 = arith.addf %2, %4 : vector<32x128xf32>
    %cst_5 = arith.constant 0.000000e+00 : f32
    %6 = vector.broadcast %cst_5 : f32 to vector<32x128xf32>
    %7 = arith.maximumf %5, %6 : vector<32x128xf32>
    %8 = arith.truncf %7 : vector<32x128xf32> to vector<32x128xbf16>
    %c0_6 = arith.constant 0 : index
    %c0_7 = arith.constant 0 : index
    %9 = vector.load %arg4[%c0_6, %c0_7] : memref<32x128xbf16, #tpu.memory_space<vmem>>, vector<32x128xbf16>
    tpu.vector_store %arg4[%c0_6, %c0_7], %8 {strides = array<i32>} : memref<32x128xbf16, #tpu.memory_space<vmem>>, vector<32x128xbf16>,
    return
  }
  func.func @transform_0(%arg0: i32) -> (i32, i32) {
    %c0_i32 = arith.constant 0 : i32
    %c0_i32_0 = arith.constant 0 : i32
    return %arg0, %c0_i32 : i32, i32
  }
  func.func @transform_1(%arg0: i32) -> (i32, i32) {
    %c0_i32 = arith.constant 0 : i32
    %c0_i32_0 = arith.constant 0 : i32
    %c0_i32_1 = arith.constant 0 : i32
    return %c0_i32, %c0_i32_0 : i32, i32
  }
  func.func @transform_2(%arg0: i32) -> (i32, i32) {
    %c0_i32 = arith.constant 0 : i32
    %c0_i32_0 = arith.constant 0 : i32
    %c0_i32_1 = arith.constant 0 : i32
    return %c0_i32, %c0_i32_0 : i32, i32
  }
  func.func @transform_3(%arg0: i32) -> (i32, i32) {
    %c0_i32 = arith.constant 0 : i32
    %c0_i32_0 = arith.constant 0 : i32
    return %arg0, %c0_i32 : i32, i32
  }
}

module attributes {stable_mosaic.version = 11 : i64} {
  func.func @_conv_res_kernel(%arg0: i32, %arg1: memref<8x384xbf16, #tpu.memory_space<vmem>>, %arg2: memref<384x128xbf16, #tpu.memory_space<vmem>>, %arg3: memref<1x128xf32, #tpu.memory_space<vmem>>, %arg4: memref<8x128xbf16, #tpu.memory_space<vmem>>, %arg5: memref<8x128xbf16, #tpu.memory_space<vmem>>) attributes {dimension_semantics = [#tpu.dimension_semantics<parallel>], iteration_bounds = array<i64: 1>, scalar_prefetch = 0 : i64, scratch_operands = 0 : i64, tpu.core_type = #tpu.core_type<tc>, window_params = [{transform_indices = @transform_0, window_bounds = array<i64: 8, 384>}, {pipeline_mode = #tpu.pipeline_mode<synchronous>, transform_indices = @transform_1, window_bounds = array<i64: 384, 128>}, {pipeline_mode = #tpu.pipeline_mode<synchronous>, transform_indices = @transform_2, window_bounds = array<i64: 1, 128>}, {transform_indices = @transform_3, window_bounds = array<i64: 8, 128>}, {transform_indices = @transform_4, window_bounds = array<i64: 8, 128>}]} {
    %c0 = arith.constant 0 : index
    %c0_0 = arith.constant 0 : index
    %0 = vector.load %arg1[%c0, %c0_0] : memref<8x384xbf16, #tpu.memory_space<vmem>>, vector<8x384xbf16>
    %c0_1 = arith.constant 0 : index
    %c0_2 = arith.constant 0 : index
    %1 = vector.load %arg2[%c0_1, %c0_2] : memref<384x128xbf16, #tpu.memory_space<vmem>>, vector<384x128xbf16>
    %cst = arith.constant dense<0.000000e+00> : vector<8x128xf32>
    %2 = tpu.matmul %0, %1, %cst {dimension_numbers = #tpu.dot_dimension_numbers<[1], [0], [0], [1], [0, 0, 1, 1], [], []>} : vector<8x384xbf16>, vector<384x128xbf16>, vector<8x128xf32> -> vector<8x128xf32>
    %c0_3 = arith.constant 0 : index
    %c0_4 = arith.constant 0 : index
    %3 = vector.load %arg3[%c0_3, %c0_4] : memref<1x128xf32, #tpu.memory_space<vmem>>, vector<1x128xf32>
    %4 = vector.broadcast %3 : vector<1x128xf32> to vector<8x128xf32>
    %5 = arith.addf %2, %4 : vector<8x128xf32>
    %c0_5 = arith.constant 0 : index
    %c0_6 = arith.constant 0 : index
    %6 = vector.load %arg4[%c0_5, %c0_6] : memref<8x128xbf16, #tpu.memory_space<vmem>>, vector<8x128xbf16>
    %7 = arith.extf %6 : vector<8x128xbf16> to vector<8x128xf32>
    %8 = arith.addf %5, %7 : vector<8x128xf32>
    %cst_7 = arith.constant 0.000000e+00 : f32
    %9 = vector.broadcast %cst_7 : f32 to vector<8x128xf32>
    %10 = arith.maximumf %8, %9 : vector<8x128xf32>
    %11 = arith.truncf %10 : vector<8x128xf32> to vector<8x128xbf16>
    %c0_8 = arith.constant 0 : index
    %c0_9 = arith.constant 0 : index
    %12 = vector.load %arg5[%c0_8, %c0_9] : memref<8x128xbf16, #tpu.memory_space<vmem>>, vector<8x128xbf16>
    tpu.vector_store %arg5[%c0_8, %c0_9], %11 {strides = array<i32>} : memref<8x128xbf16, #tpu.memory_space<vmem>>, vector<8x128xbf16>,
    return
  }
  func.func @transform_0(%arg0: i32) -> (i32, i32) {
    %c0_i32 = arith.constant 0 : i32
    %c0_i32_0 = arith.constant 0 : i32
    return %arg0, %c0_i32 : i32, i32
  }
  func.func @transform_1(%arg0: i32) -> (i32, i32) {
    %c0_i32 = arith.constant 0 : i32
    %c0_i32_0 = arith.constant 0 : i32
    %c0_i32_1 = arith.constant 0 : i32
    return %c0_i32, %c0_i32_0 : i32, i32
  }
  func.func @transform_2(%arg0: i32) -> (i32, i32) {
    %c0_i32 = arith.constant 0 : i32
    %c0_i32_0 = arith.constant 0 : i32
    %c0_i32_1 = arith.constant 0 : i32
    return %c0_i32, %c0_i32_0 : i32, i32
  }
  func.func @transform_3(%arg0: i32) -> (i32, i32) {
    %c0_i32 = arith.constant 0 : i32
    %c0_i32_0 = arith.constant 0 : i32
    return %arg0, %c0_i32 : i32, i32
  }
  func.func @transform_4(%arg0: i32) -> (i32, i32) {
    %c0_i32 = arith.constant 0 : i32
    %c0_i32_0 = arith.constant 0 : i32
    return %arg0, %c0_i32 : i32, i32
  }
}

module attributes {stable_mosaic.version = 11 : i64} {
  func.func @_conv_ds_kernel(%arg0: i32, %arg1: memref<8x256xbf16, #tpu.memory_space<vmem>>, %arg2: memref<256x128xbf16, #tpu.memory_space<vmem>>, %arg3: memref<1x128xf32, #tpu.memory_space<vmem>>, %arg4: memref<256x128xbf16, #tpu.memory_space<vmem>>, %arg5: memref<1x128xf32, #tpu.memory_space<vmem>>, %arg6: memref<8x128xbf16, #tpu.memory_space<vmem>>, %arg7: memref<8x128xbf16, #tpu.memory_space<vmem>>) attributes {dimension_semantics = [#tpu.dimension_semantics<parallel>], iteration_bounds = array<i64: 1>, scalar_prefetch = 0 : i64, scratch_operands = 0 : i64, tpu.core_type = #tpu.core_type<tc>, window_params = [{transform_indices = @transform_0, window_bounds = array<i64: 8, 256>}, {pipeline_mode = #tpu.pipeline_mode<synchronous>, transform_indices = @transform_1, window_bounds = array<i64: 256, 128>}, {pipeline_mode = #tpu.pipeline_mode<synchronous>, transform_indices = @transform_2, window_bounds = array<i64: 1, 128>}, {pipeline_mode = #tpu.pipeline_mode<synchronous>, transform_indices = @transform_3, window_bounds = array<i64: 256, 128>}, {pipeline_mode = #tpu.pipeline_mode<synchronous>, transform_indices = @transform_4, window_bounds = array<i64: 1, 128>}, {transform_indices = @transform_5, window_bounds = array<i64: 8, 128>}, {transform_indices = @transform_6, window_bounds = array<i64: 8, 128>}]} {
    %c0 = arith.constant 0 : index
    %c0_0 = arith.constant 0 : index
    %0 = vector.load %arg1[%c0, %c0_0] : memref<8x256xbf16, #tpu.memory_space<vmem>>, vector<8x256xbf16>
    %c0_1 = arith.constant 0 : index
    %c0_2 = arith.constant 0 : index
    %1 = vector.load %arg2[%c0_1, %c0_2] : memref<256x128xbf16, #tpu.memory_space<vmem>>, vector<256x128xbf16>
    %cst = arith.constant dense<0.000000e+00> : vector<8x128xf32>
    %2 = tpu.matmul %0, %1, %cst {dimension_numbers = #tpu.dot_dimension_numbers<[1], [0], [0], [1], [0, 0, 1, 1], [], []>} : vector<8x256xbf16>, vector<256x128xbf16>, vector<8x128xf32> -> vector<8x128xf32>
    %c0_3 = arith.constant 0 : index
    %c0_4 = arith.constant 0 : index
    %3 = vector.load %arg3[%c0_3, %c0_4] : memref<1x128xf32, #tpu.memory_space<vmem>>, vector<1x128xf32>
    %4 = vector.broadcast %3 : vector<1x128xf32> to vector<8x128xf32>
    %5 = arith.addf %2, %4 : vector<8x128xf32>
    %cst_5 = arith.constant 0.000000e+00 : f32
    %6 = vector.broadcast %cst_5 : f32 to vector<8x128xf32>
    %7 = arith.maximumf %5, %6 : vector<8x128xf32>
    %8 = arith.truncf %7 : vector<8x128xf32> to vector<8x128xbf16>
    %c0_6 = arith.constant 0 : index
    %c0_7 = arith.constant 0 : index
    %9 = vector.load %arg6[%c0_6, %c0_7] : memref<8x128xbf16, #tpu.memory_space<vmem>>, vector<8x128xbf16>
    tpu.vector_store %arg6[%c0_6, %c0_7], %8 {strides = array<i32>} : memref<8x128xbf16, #tpu.memory_space<vmem>>, vector<8x128xbf16>,
    %c0_8 = arith.constant 0 : index
    %c0_9 = arith.constant 0 : index
    %10 = vector.load %arg4[%c0_8, %c0_9] : memref<256x128xbf16, #tpu.memory_space<vmem>>, vector<256x128xbf16>
    %cst_10 = arith.constant dense<0.000000e+00> : vector<8x128xf32>
    %11 = tpu.matmul %0, %10, %cst_10 {dimension_numbers = #tpu.dot_dimension_numbers<[1], [0], [0], [1], [0, 0, 1, 1], [], []>} : vector<8x256xbf16>, vector<256x128xbf16>, vector<8x128xf32> -> vector<8x128xf32>
    %c0_11 = arith.constant 0 : index
    %c0_12 = arith.constant 0 : index
    %12 = vector.load %arg5[%c0_11, %c0_12] : memref<1x128xf32, #tpu.memory_space<vmem>>, vector<1x128xf32>
    %13 = vector.broadcast %12 : vector<1x128xf32> to vector<8x128xf32>
    %14 = arith.addf %11, %13 : vector<8x128xf32>
    %15 = arith.truncf %14 : vector<8x128xf32> to vector<8x128xbf16>
    %c0_13 = arith.constant 0 : index
    %c0_14 = arith.constant 0 : index
    %16 = vector.load %arg7[%c0_13, %c0_14] : memref<8x128xbf16, #tpu.memory_space<vmem>>, vector<8x128xbf16>
    tpu.vector_store %arg7[%c0_13, %c0_14], %15 {strides = array<i32>} : memref<8x128xbf16, #tpu.memory_space<vmem>>, vector<8x128xbf16>,
    return
  }
  func.func @transform_0(%arg0: i32) -> (i32, i32) {
    %c0_i32 = arith.constant 0 : i32
    %c0_i32_0 = arith.constant 0 : i32
    return %arg0, %c0_i32 : i32, i32
  }
  func.func @transform_1(%arg0: i32) -> (i32, i32) {
    %c0_i32 = arith.constant 0 : i32
    %c0_i32_0 = arith.constant 0 : i32
    %c0_i32_1 = arith.constant 0 : i32
    return %c0_i32, %c0_i32_0 : i32, i32
  }
  func.func @transform_2(%arg0: i32) -> (i32, i32) {
    %c0_i32 = arith.constant 0 : i32
    %c0_i32_0 = arith.constant 0 : i32
    %c0_i32_1 = arith.constant 0 : i32
    return %c0_i32, %c0_i32_0 : i32, i32
  }
  func.func @transform_3(%arg0: i32) -> (i32, i32) {
    %c0_i32 = arith.constant 0 : i32
    %c0_i32_0 = arith.constant 0 : i32
    %c0_i32_1 = arith.constant 0 : i32
    return %c0_i32, %c0_i32_0 : i32, i32
  }
  func.func @transform_4(%arg0: i32) -> (i32, i32) {
    %c0_i32 = arith.constant 0 : i32
    %c0_i32_0 = arith.constant 0 : i32
    %c0_i32_1 = arith.constant 0 : i32
    return %c0_i32, %c0_i32_0 : i32, i32
  }
  func.func @transform_5(%arg0: i32) -> (i32, i32) {
    %c0_i32 = arith.constant 0 : i32
    %c0_i32_0 = arith.constant 0 : i32
    return %arg0, %c0_i32 : i32, i32
  }
  func.func @transform_6(%arg0: i32) -> (i32, i32) {
    %c0_i32 = arith.constant 0 : i32
    %c0_i32_0 = arith.constant 0 : i32
    return %arg0, %c0_i32 : i32, i32
  }
}

module attributes {stable_mosaic.version = 11 : i64} {
  func.func @_conv_kernel(%arg0: i32, %arg1: memref<8x384xbf16, #tpu.memory_space<vmem>>, %arg2: memref<384x128xbf16, #tpu.memory_space<vmem>>, %arg3: memref<1x128xf32, #tpu.memory_space<vmem>>, %arg4: memref<8x128xbf16, #tpu.memory_space<vmem>>) attributes {dimension_semantics = [#tpu.dimension_semantics<parallel>], iteration_bounds = array<i64: 1>, scalar_prefetch = 0 : i64, scratch_operands = 0 : i64, tpu.core_type = #tpu.core_type<tc>, window_params = [{transform_indices = @transform_0, window_bounds = array<i64: 8, 384>}, {pipeline_mode = #tpu.pipeline_mode<synchronous>, transform_indices = @transform_1, window_bounds = array<i64: 384, 128>}, {pipeline_mode = #tpu.pipeline_mode<synchronous>, transform_indices = @transform_2, window_bounds = array<i64: 1, 128>}, {transform_indices = @transform_3, window_bounds = array<i64: 8, 128>}]} {
    %c0 = arith.constant 0 : index
    %c0_0 = arith.constant 0 : index
    %0 = vector.load %arg1[%c0, %c0_0] : memref<8x384xbf16, #tpu.memory_space<vmem>>, vector<8x384xbf16>
    %c0_1 = arith.constant 0 : index
    %c0_2 = arith.constant 0 : index
    %1 = vector.load %arg2[%c0_1, %c0_2] : memref<384x128xbf16, #tpu.memory_space<vmem>>, vector<384x128xbf16>
    %cst = arith.constant dense<0.000000e+00> : vector<8x128xf32>
    %2 = tpu.matmul %0, %1, %cst {dimension_numbers = #tpu.dot_dimension_numbers<[1], [0], [0], [1], [0, 0, 1, 1], [], []>} : vector<8x384xbf16>, vector<384x128xbf16>, vector<8x128xf32> -> vector<8x128xf32>
    %c0_3 = arith.constant 0 : index
    %c0_4 = arith.constant 0 : index
    %3 = vector.load %arg3[%c0_3, %c0_4] : memref<1x128xf32, #tpu.memory_space<vmem>>, vector<1x128xf32>
    %4 = vector.broadcast %3 : vector<1x128xf32> to vector<8x128xf32>
    %5 = arith.addf %2, %4 : vector<8x128xf32>
    %cst_5 = arith.constant 0.000000e+00 : f32
    %6 = vector.broadcast %cst_5 : f32 to vector<8x128xf32>
    %7 = arith.maximumf %5, %6 : vector<8x128xf32>
    %8 = arith.truncf %7 : vector<8x128xf32> to vector<8x128xbf16>
    %c0_6 = arith.constant 0 : index
    %c0_7 = arith.constant 0 : index
    %9 = vector.load %arg4[%c0_6, %c0_7] : memref<8x128xbf16, #tpu.memory_space<vmem>>, vector<8x128xbf16>
    tpu.vector_store %arg4[%c0_6, %c0_7], %8 {strides = array<i32>} : memref<8x128xbf16, #tpu.memory_space<vmem>>, vector<8x128xbf16>,
    return
  }
  func.func @transform_0(%arg0: i32) -> (i32, i32) {
    %c0_i32 = arith.constant 0 : i32
    %c0_i32_0 = arith.constant 0 : i32
    return %arg0, %c0_i32 : i32, i32
  }
  func.func @transform_1(%arg0: i32) -> (i32, i32) {
    %c0_i32 = arith.constant 0 : i32
    %c0_i32_0 = arith.constant 0 : i32
    %c0_i32_1 = arith.constant 0 : i32
    return %c0_i32, %c0_i32_0 : i32, i32
  }
  func.func @transform_2(%arg0: i32) -> (i32, i32) {
    %c0_i32 = arith.constant 0 : i32
    %c0_i32_0 = arith.constant 0 : i32
    %c0_i32_1 = arith.constant 0 : i32
    return %c0_i32, %c0_i32_0 : i32, i32
  }
  func.func @transform_3(%arg0: i32) -> (i32, i32) {
    %c0_i32 = arith.constant 0 : i32
    %c0_i32_0 = arith.constant 0 : i32
    return %arg0, %c0_i32 : i32, i32
  }
}

module attributes {stable_mosaic.version = 11 : i64} {
  func.func @_conv_ds_kernel(%arg0: i32, %arg1: memref<8x384xbf16, #tpu.memory_space<vmem>>, %arg2: memref<384x128xbf16, #tpu.memory_space<vmem>>, %arg3: memref<1x128xf32, #tpu.memory_space<vmem>>, %arg4: memref<384x128xbf16, #tpu.memory_space<vmem>>, %arg5: memref<1x128xf32, #tpu.memory_space<vmem>>, %arg6: memref<8x128xbf16, #tpu.memory_space<vmem>>, %arg7: memref<8x128xbf16, #tpu.memory_space<vmem>>) attributes {dimension_semantics = [#tpu.dimension_semantics<parallel>], iteration_bounds = array<i64: 1>, scalar_prefetch = 0 : i64, scratch_operands = 0 : i64, tpu.core_type = #tpu.core_type<tc>, window_params = [{transform_indices = @transform_0, window_bounds = array<i64: 8, 384>}, {pipeline_mode = #tpu.pipeline_mode<synchronous>, transform_indices = @transform_1, window_bounds = array<i64: 384, 128>}, {pipeline_mode = #tpu.pipeline_mode<synchronous>, transform_indices = @transform_2, window_bounds = array<i64: 1, 128>}, {pipeline_mode = #tpu.pipeline_mode<synchronous>, transform_indices = @transform_3, window_bounds = array<i64: 384, 128>}, {pipeline_mode = #tpu.pipeline_mode<synchronous>, transform_indices = @transform_4, window_bounds = array<i64: 1, 128>}, {transform_indices = @transform_5, window_bounds = array<i64: 8, 128>}, {transform_indices = @transform_6, window_bounds = array<i64: 8, 128>}]} {
    %c0 = arith.constant 0 : index
    %c0_0 = arith.constant 0 : index
    %0 = vector.load %arg1[%c0, %c0_0] : memref<8x384xbf16, #tpu.memory_space<vmem>>, vector<8x384xbf16>
    %c0_1 = arith.constant 0 : index
    %c0_2 = arith.constant 0 : index
    %1 = vector.load %arg2[%c0_1, %c0_2] : memref<384x128xbf16, #tpu.memory_space<vmem>>, vector<384x128xbf16>
    %cst = arith.constant dense<0.000000e+00> : vector<8x128xf32>
    %2 = tpu.matmul %0, %1, %cst {dimension_numbers = #tpu.dot_dimension_numbers<[1], [0], [0], [1], [0, 0, 1, 1], [], []>} : vector<8x384xbf16>, vector<384x128xbf16>, vector<8x128xf32> -> vector<8x128xf32>
    %c0_3 = arith.constant 0 : index
    %c0_4 = arith.constant 0 : index
    %3 = vector.load %arg3[%c0_3, %c0_4] : memref<1x128xf32, #tpu.memory_space<vmem>>, vector<1x128xf32>
    %4 = vector.broadcast %3 : vector<1x128xf32> to vector<8x128xf32>
    %5 = arith.addf %2, %4 : vector<8x128xf32>
    %cst_5 = arith.constant 0.000000e+00 : f32
    %6 = vector.broadcast %cst_5 : f32 to vector<8x128xf32>
    %7 = arith.maximumf %5, %6 : vector<8x128xf32>
    %8 = arith.truncf %7 : vector<8x128xf32> to vector<8x128xbf16>
    %c0_6 = arith.constant 0 : index
    %c0_7 = arith.constant 0 : index
    %9 = vector.load %arg6[%c0_6, %c0_7] : memref<8x128xbf16, #tpu.memory_space<vmem>>, vector<8x128xbf16>
    tpu.vector_store %arg6[%c0_6, %c0_7], %8 {strides = array<i32>} : memref<8x128xbf16, #tpu.memory_space<vmem>>, vector<8x128xbf16>,
    %c0_8 = arith.constant 0 : index
    %c0_9 = arith.constant 0 : index
    %10 = vector.load %arg4[%c0_8, %c0_9] : memref<384x128xbf16, #tpu.memory_space<vmem>>, vector<384x128xbf16>
    %cst_10 = arith.constant dense<0.000000e+00> : vector<8x128xf32>
    %11 = tpu.matmul %0, %10, %cst_10 {dimension_numbers = #tpu.dot_dimension_numbers<[1], [0], [0], [1], [0, 0, 1, 1], [], []>} : vector<8x384xbf16>, vector<384x128xbf16>, vector<8x128xf32> -> vector<8x128xf32>
    %c0_11 = arith.constant 0 : index
    %c0_12 = arith.constant 0 : index
    %12 = vector.load %arg5[%c0_11, %c0_12] : memref<1x128xf32, #tpu.memory_space<vmem>>, vector<1x128xf32>
    %13 = vector.broadcast %12 : vector<1x128xf32> to vector<8x128xf32>
    %14 = arith.addf %11, %13 : vector<8x128xf32>
    %15 = arith.truncf %14 : vector<8x128xf32> to vector<8x128xbf16>
    %c0_13 = arith.constant 0 : index
    %c0_14 = arith.constant 0 : index
    %16 = vector.load %arg7[%c0_13, %c0_14] : memref<8x128xbf16, #tpu.memory_space<vmem>>, vector<8x128xbf16>
    tpu.vector_store %arg7[%c0_13, %c0_14], %15 {strides = array<i32>} : memref<8x128xbf16, #tpu.memory_space<vmem>>, vector<8x128xbf16>,
    return
  }
  func.func @transform_0(%arg0: i32) -> (i32, i32) {
    %c0_i32 = arith.constant 0 : i32
    %c0_i32_0 = arith.constant 0 : i32
    return %arg0, %c0_i32 : i32, i32
  }
  func.func @transform_1(%arg0: i32) -> (i32, i32) {
    %c0_i32 = arith.constant 0 : i32
    %c0_i32_0 = arith.constant 0 : i32
    %c0_i32_1 = arith.constant 0 : i32
    return %c0_i32, %c0_i32_0 : i32, i32
  }
  func.func @transform_2(%arg0: i32) -> (i32, i32) {
    %c0_i32 = arith.constant 0 : i32
    %c0_i32_0 = arith.constant 0 : i32
    %c0_i32_1 = arith.constant 0 : i32
    return %c0_i32, %c0_i32_0 : i32, i32
  }
  func.func @transform_3(%arg0: i32) -> (i32, i32) {
    %c0_i32 = arith.constant 0 : i32
    %c0_i32_0 = arith.constant 0 : i32
    %c0_i32_1 = arith.constant 0 : i32
    return %c0_i32, %c0_i32_0 : i32, i32
  }
  func.func @transform_4(%arg0: i32) -> (i32, i32) {
    %c0_i32 = arith.constant 0 : i32
    %c0_i32_0 = arith.constant 0 : i32
    %c0_i32_1 = arith.constant 0 : i32
    return %c0_i32, %c0_i32_0 : i32, i32
  }
  func.func @transform_5(%arg0: i32) -> (i32, i32) {
    %c0_i32 = arith.constant 0 : i32
    %c0_i32_0 = arith.constant 0 : i32
    return %arg0, %c0_i32 : i32, i32
  }
  func.func @transform_6(%arg0: i32) -> (i32, i32) {
    %c0_i32 = arith.constant 0 : i32
    %c0_i32_0 = arith.constant 0 : i32
    return %arg0, %c0_i32 : i32, i32
  }
}

module attributes {stable_mosaic.version = 11 : i64} {
  func.func @_conv_res_kernel(%arg0: i32, %arg1: memref<8x640xbf16, #tpu.memory_space<vmem>>, %arg2: memref<640x128xbf16, #tpu.memory_space<vmem>>, %arg3: memref<1x128xf32, #tpu.memory_space<vmem>>, %arg4: memref<8x128xbf16, #tpu.memory_space<vmem>>, %arg5: memref<8x128xbf16, #tpu.memory_space<vmem>>) attributes {dimension_semantics = [#tpu.dimension_semantics<parallel>], iteration_bounds = array<i64: 1>, scalar_prefetch = 0 : i64, scratch_operands = 0 : i64, tpu.core_type = #tpu.core_type<tc>, window_params = [{transform_indices = @transform_0, window_bounds = array<i64: 8, 640>}, {pipeline_mode = #tpu.pipeline_mode<synchronous>, transform_indices = @transform_1, window_bounds = array<i64: 640, 128>}, {pipeline_mode = #tpu.pipeline_mode<synchronous>, transform_indices = @transform_2, window_bounds = array<i64: 1, 128>}, {transform_indices = @transform_3, window_bounds = array<i64: 8, 128>}, {transform_indices = @transform_4, window_bounds = array<i64: 8, 128>}]} {
    %c0 = arith.constant 0 : index
    %c0_0 = arith.constant 0 : index
    %0 = vector.load %arg1[%c0, %c0_0] : memref<8x640xbf16, #tpu.memory_space<vmem>>, vector<8x640xbf16>
    %c0_1 = arith.constant 0 : index
    %c0_2 = arith.constant 0 : index
    %1 = vector.load %arg2[%c0_1, %c0_2] : memref<640x128xbf16, #tpu.memory_space<vmem>>, vector<640x128xbf16>
    %cst = arith.constant dense<0.000000e+00> : vector<8x128xf32>
    %2 = tpu.matmul %0, %1, %cst {dimension_numbers = #tpu.dot_dimension_numbers<[1], [0], [0], [1], [0, 0, 1, 1], [], []>} : vector<8x640xbf16>, vector<640x128xbf16>, vector<8x128xf32> -> vector<8x128xf32>
    %c0_3 = arith.constant 0 : index
    %c0_4 = arith.constant 0 : index
    %3 = vector.load %arg3[%c0_3, %c0_4] : memref<1x128xf32, #tpu.memory_space<vmem>>, vector<1x128xf32>
    %4 = vector.broadcast %3 : vector<1x128xf32> to vector<8x128xf32>
    %5 = arith.addf %2, %4 : vector<8x128xf32>
    %c0_5 = arith.constant 0 : index
    %c0_6 = arith.constant 0 : index
    %6 = vector.load %arg4[%c0_5, %c0_6] : memref<8x128xbf16, #tpu.memory_space<vmem>>, vector<8x128xbf16>
    %7 = arith.extf %6 : vector<8x128xbf16> to vector<8x128xf32>
    %8 = arith.addf %5, %7 : vector<8x128xf32>
    %cst_7 = arith.constant 0.000000e+00 : f32
    %9 = vector.broadcast %cst_7 : f32 to vector<8x128xf32>
    %10 = arith.maximumf %8, %9 : vector<8x128xf32>
    %11 = arith.truncf %10 : vector<8x128xf32> to vector<8x128xbf16>
    %c0_8 = arith.constant 0 : index
    %c0_9 = arith.constant 0 : index
    %12 = vector.load %arg5[%c0_8, %c0_9] : memref<8x128xbf16, #tpu.memory_space<vmem>>, vector<8x128xbf16>
    tpu.vector_store %arg5[%c0_8, %c0_9], %11 {strides = array<i32>} : memref<8x128xbf16, #tpu.memory_space<vmem>>, vector<8x128xbf16>,
    return
  }
  func.func @transform_0(%arg0: i32) -> (i32, i32) {
    %c0_i32 = arith.constant 0 : i32
    %c0_i32_0 = arith.constant 0 : i32
    return %arg0, %c0_i32 : i32, i32
  }
  func.func @transform_1(%arg0: i32) -> (i32, i32) {
    %c0_i32 = arith.constant 0 : i32
    %c0_i32_0 = arith.constant 0 : i32
    %c0_i32_1 = arith.constant 0 : i32
    return %c0_i32, %c0_i32_0 : i32, i32
  }
  func.func @transform_2(%arg0: i32) -> (i32, i32) {
    %c0_i32 = arith.constant 0 : i32
    %c0_i32_0 = arith.constant 0 : i32
    %c0_i32_1 = arith.constant 0 : i32
    return %c0_i32, %c0_i32_0 : i32, i32
  }
  func.func @transform_3(%arg0: i32) -> (i32, i32) {
    %c0_i32 = arith.constant 0 : i32
    %c0_i32_0 = arith.constant 0 : i32
    return %arg0, %c0_i32 : i32, i32
  }
  func.func @transform_4(%arg0: i32) -> (i32, i32) {
    %c0_i32 = arith.constant 0 : i32
    %c0_i32_0 = arith.constant 0 : i32
    return %arg0, %c0_i32 : i32, i32
  }
}

module attributes {stable_mosaic.version = 11 : i64} {
  func.func @_conv_kernel(%arg0: i32, %arg1: memref<8x640xbf16, #tpu.memory_space<vmem>>, %arg2: memref<640x128xbf16, #tpu.memory_space<vmem>>, %arg3: memref<1x128xf32, #tpu.memory_space<vmem>>, %arg4: memref<8x128xbf16, #tpu.memory_space<vmem>>) attributes {dimension_semantics = [#tpu.dimension_semantics<parallel>], iteration_bounds = array<i64: 1>, scalar_prefetch = 0 : i64, scratch_operands = 0 : i64, tpu.core_type = #tpu.core_type<tc>, window_params = [{transform_indices = @transform_0, window_bounds = array<i64: 8, 640>}, {pipeline_mode = #tpu.pipeline_mode<synchronous>, transform_indices = @transform_1, window_bounds = array<i64: 640, 128>}, {pipeline_mode = #tpu.pipeline_mode<synchronous>, transform_indices = @transform_2, window_bounds = array<i64: 1, 128>}, {transform_indices = @transform_3, window_bounds = array<i64: 8, 128>}]} {
    %c0 = arith.constant 0 : index
    %c0_0 = arith.constant 0 : index
    %0 = vector.load %arg1[%c0, %c0_0] : memref<8x640xbf16, #tpu.memory_space<vmem>>, vector<8x640xbf16>
    %c0_1 = arith.constant 0 : index
    %c0_2 = arith.constant 0 : index
    %1 = vector.load %arg2[%c0_1, %c0_2] : memref<640x128xbf16, #tpu.memory_space<vmem>>, vector<640x128xbf16>
    %cst = arith.constant dense<0.000000e+00> : vector<8x128xf32>
    %2 = tpu.matmul %0, %1, %cst {dimension_numbers = #tpu.dot_dimension_numbers<[1], [0], [0], [1], [0, 0, 1, 1], [], []>} : vector<8x640xbf16>, vector<640x128xbf16>, vector<8x128xf32> -> vector<8x128xf32>
    %c0_3 = arith.constant 0 : index
    %c0_4 = arith.constant 0 : index
    %3 = vector.load %arg3[%c0_3, %c0_4] : memref<1x128xf32, #tpu.memory_space<vmem>>, vector<1x128xf32>
    %4 = vector.broadcast %3 : vector<1x128xf32> to vector<8x128xf32>
    %5 = arith.addf %2, %4 : vector<8x128xf32>
    %cst_5 = arith.constant 0.000000e+00 : f32
    %6 = vector.broadcast %cst_5 : f32 to vector<8x128xf32>
    %7 = arith.maximumf %5, %6 : vector<8x128xf32>
    %8 = arith.truncf %7 : vector<8x128xf32> to vector<8x128xbf16>
    %c0_6 = arith.constant 0 : index
    %c0_7 = arith.constant 0 : index
    %9 = vector.load %arg4[%c0_6, %c0_7] : memref<8x128xbf16, #tpu.memory_space<vmem>>, vector<8x128xbf16>
    tpu.vector_store %arg4[%c0_6, %c0_7], %8 {strides = array<i32>} : memref<8x128xbf16, #tpu.memory_space<vmem>>, vector<8x128xbf16>,
    return
  }
  func.func @transform_0(%arg0: i32) -> (i32, i32) {
    %c0_i32 = arith.constant 0 : i32
    %c0_i32_0 = arith.constant 0 : i32
    return %arg0, %c0_i32 : i32, i32
  }
  func.func @transform_1(%arg0: i32) -> (i32, i32) {
    %c0_i32 = arith.constant 0 : i32
    %c0_i32_0 = arith.constant 0 : i32
    %c0_i32_1 = arith.constant 0 : i32
    return %c0_i32, %c0_i32_0 : i32, i32
  }
  func.func @transform_2(%arg0: i32) -> (i32, i32) {
    %c0_i32 = arith.constant 0 : i32
    %c0_i32_0 = arith.constant 0 : i32
    %c0_i32_1 = arith.constant 0 : i32
    return %c0_i32, %c0_i32_0 : i32, i32
  }
  func.func @transform_3(%arg0: i32) -> (i32, i32) {
    %c0_i32 = arith.constant 0 : i32
    %c0_i32_0 = arith.constant 0 : i32
    return %arg0, %c0_i32 : i32, i32
  }
}

</mosaic_0001>

<llo_original>
// kernel: _lambda_.19
$region0: #{_lambda_.19}
  #allocation0 [shape = 'u32[]', space=smem, size = 0x4, offset = 0x4, fixed_abs, tag = 'smem constant byte address 0x4 - core index']
  #allocation1 [shape = 'u32[144,128]{1,0:T(1,128)}', space=vmem, size = 0x12000, scoped, tag = 'internal scratch']
  %s0 = inlined_call_operand.vmem [shape: bf16[9,128,8], index: 0, kind: input, shape index: {}]
  %s1 = inlined_call_operand.vmem [shape: bf16[128,8], index: 1, kind: output, shape index: {}]
  %s2 = sld [smem:[#allocation0]]
  $region14: #{_lambda_.19} parent=0
    _
  %s4 = ssub.s32 1, %s2
  %s5 = scalar_select 0, %s4, %s2
  // Predicated region
  $region2: #{_lambda_.19} parent=0 // pred_check
    _
  $region3: #{_lambda_.19} parent=0 // pred_check_branch
    %7 = sbr.rel (0) target = $region5
  $region4: #{_lambda_.19} parent=0 // pred_region
    _
  $region5: #{_lambda_.19} parent=0 // pred_fallthru
    _
  %v8 = vld [vmem:[%s0] sm:$0xf]
  %v9 = vld [vmem:[%s0 + $0x4] sm:$0xf]
  %v10 = vld [vmem:[%s0 + $0x8] sm:$0xf]
  %v11 = vld [vmem:[%s0 + $0xc] sm:$0xf]
  %v12 = vld [vmem:[%s0 + $0x10] sm:$0xf]
  %v13 = vld [vmem:[%s0 + $0x14] sm:$0xf]
  %v14 = vld [vmem:[%s0 + $0x18] sm:$0xf]
  %v15 = vld [vmem:[%s0 + $0x1c] sm:$0xf]
  %v16 = vld [vmem:[%s0 + $0x20] sm:$0xf]
  %v17 = vld [vmem:[%s0 + $0x24] sm:$0xf]
  %v18 = vld [vmem:[%s0 + $0x28] sm:$0xf]
  %v19 = vld [vmem:[%s0 + $0x2c] sm:$0xf]
  %v20 = vld [vmem:[%s0 + $0x30] sm:$0xf]
  %v21 = vld [vmem:[%s0 + $0x34] sm:$0xf]
  %v22 = vld [vmem:[%s0 + $0x38] sm:$0xf]
  %v23 = vld [vmem:[%s0 + $0x3c] sm:$0xf]
  %v24 = vunpack.c.l.bf16 %v8
  %v25 = vunpack.c.l.bf16 %v9
  %v26 = vunpack.c.l.bf16 %v10
  %v27 = vunpack.c.l.bf16 %v11
  %v28 = vunpack.c.l.bf16 %v12
  %v29 = vunpack.c.l.bf16 %v13
  %v30 = vunpack.c.l.bf16 %v14
  %v31 = vunpack.c.l.bf16 %v15
  %v32 = vunpack.c.l.bf16 %v16
  %v33 = vunpack.c.l.bf16 %v17
  %v34 = vunpack.c.l.bf16 %v18
  %v35 = vunpack.c.l.bf16 %v19
  %v36 = vunpack.c.l.bf16 %v20
  %v37 = vunpack.c.l.bf16 %v21
  %v38 = vunpack.c.l.bf16 %v22
  %v39 = vunpack.c.l.bf16 %v23
  %s40 = scalar_lea.vmem %s0, 64
  %v41 = vld [vmem:[%s40] sm:$0xf]
  %v42 = vld [vmem:[%s40 + $0x4] sm:$0xf]
  %v43 = vld [vmem:[%s40 + $0x8] sm:$0xf]
  %v44 = vld [vmem:[%s40 + $0xc] sm:$0xf]
  %v45 = vld [vmem:[%s40 + $0x10] sm:$0xf]
  %v46 = vld [vmem:[%s40 + $0x14] sm:$0xf]
  %v47 = vld [vmem:[%s40 + $0x18] sm:$0xf]
  %v48 = vld [vmem:[%s40 + $0x1c] sm:$0xf]
  %v49 = vld [vmem:[%s40 + $0x20] sm:$0xf]
  %v50 = vld [vmem:[%s40 + $0x24] sm:$0xf]
  %v51 = vld [vmem:[%s40 + $0x28] sm:$0xf]
  %v52 = vld [vmem:[%s40 + $0x2c] sm:$0xf]
  %v53 = vld [vmem:[%s40 + $0x30] sm:$0xf]
  %v54 = vld [vmem:[%s40 + $0x34] sm:$0xf]
  %v55 = vld [vmem:[%s40 + $0x38] sm:$0xf]
  %v56 = vld [vmem:[%s40 + $0x3c] sm:$0xf]
  %v57 = vunpack.c.l.bf16 %v41
  %v58 = vunpack.c.l.bf16 %v42
  %v59 = vunpack.c.l.bf16 %v43
  %v60 = vunpack.c.l.bf16 %v44
  %v61 = vunpack.c.l.bf16 %v45
  %v62 = vunpack.c.l.bf16 %v46
  %v63 = vunpack.c.l.bf16 %v47
  %v64 = vunpack.c.l.bf16 %v48
  %v65 = vunpack.c.l.bf16 %v49
  %v66 = vunpack.c.l.bf16 %v50
  %v67 = vunpack.c.l.bf16 %v51
  %v68 = vunpack.c.l.bf16 %v52
  %v69 = vunpack.c.l.bf16 %v53
  %v70 = vunpack.c.l.bf16 %v54
  %v71 = vunpack.c.l.bf16 %v55
  %v72 = vunpack.c.l.bf16 %v56
  %v73 = vmax.f32 %v24, %v57
  %v74 = vmax.f32 %v25, %v58
  %v75 = vmax.f32 %v26, %v59
  %v76 = vmax.f32 %v27, %v60
  %v77 = vmax.f32 %v28, %v61
  %v78 = vmax.f32 %v29, %v62
  %v79 = vmax.f32 %v30, %v63
  %v80 = vmax.f32 %v31, %v64
  %v81 = vmax.f32 %v32, %v65
  %v82 = vmax.f32 %v33, %v66
  %v83 = vmax.f32 %v34, %v67
  %v84 = vmax.f32 %v35, %v68
  %v85 = vmax.f32 %v36, %v69
  %v86 = vmax.f32 %v37, %v70
  %v87 = vmax.f32 %v38, %v71
  %v88 = vmax.f32 %v39, %v72
  %s89 = scalar_lea.vmem %s0, 128
  %v90 = vld [vmem:[%s89] sm:$0xf]
  %v91 = vld [vmem:[%s89 + $0x4] sm:$0xf]
  %v92 = vld [vmem:[%s89 + $0x8] sm:$0xf]
  %v93 = vld [vmem:[%s89 + $0xc] sm:$0xf]
  %v94 = vld [vmem:[%s89 + $0x10] sm:$0xf]
  %v95 = vld [vmem:[%s89 + $0x14] sm:$0xf]
  %v96 = vld [vmem:[%s89 + $0x18] sm:$0xf]
  %v97 = vld [vmem:[%s89 + $0x1c] sm:$0xf]
  %v98 = vld [vmem:[%s89 + $0x20] sm:$0xf]
  %v99 = vld [vmem:[%s89 + $0x24] sm:$0xf]
  %v100 = vld [vmem:[%s89 + $0x28] sm:$0xf]
  %v101 = vld [vmem:[%s89 + $0x2c] sm:$0xf]
  %v102 = vld [vmem:[%s89 + $0x30] sm:$0xf]
  %v103 = vld [vmem:[%s89 + $0x34] sm:$0xf]
  %v104 = vld [vmem:[%s89 + $0x38] sm:$0xf]
  %v105 = vld [vmem:[%s89 + $0x3c] sm:$0xf]
  %v106 = vunpack.c.l.bf16 %v90
  %v107 = vunpack.c.l.bf16 %v91
  %v108 = vunpack.c.l.bf16 %v92
  %v109 = vunpack.c.l.bf16 %v93
  %v110 = vunpack.c.l.bf16 %v94
  %v111 = vunpack.c.l.bf16 %v95
  %v112 = vunpack.c.l.bf16 %v96
  %v113 = vunpack.c.l.bf16 %v97
  %v114 = vunpack.c.l.bf16 %v98
  %v115 = vunpack.c.l.bf16 %v99
  %v116 = vunpack.c.l.bf16 %v100
  %v117 = vunpack.c.l.bf16 %v101
  %v118 = vunpack.c.l.bf16 %v102
  %v119 = vunpack.c.l.bf16 %v103
  %v120 = vunpack.c.l.bf16 %v104
  %v121 = vunpack.c.l.bf16 %v105
  %v122 = vmax.f32 %v73, %v106
  %v123 = vmax.f32 %v74, %v107
  %v124 = vmax.f32 %v75, %v108
  %v125 = vmax.f32 %v76, %v109
  %v126 = vmax.f32 %v77, %v110
  %v127 = vmax.f32 %v78, %v111
  %v128 = vmax.f32 %v79, %v112
  %v129 = vmax.f32 %v80, %v113
  %v130 = vmax.f32 %v81, %v114
  %v131 = vmax.f32 %v82, %v115
  %v132 = vmax.f32 %v83, %v116
  %v133 = vmax.f32 %v84, %v117
  %v134 = vmax.f32 %v85, %v118
  %v135 = vmax.f32 %v86, %v119
  %v136 = vmax.f32 %v87, %v120
  %v137 = vmax.f32 %v88, %v121
  %s138 = scalar_lea.vmem %s0, 192
  %v139 = vld [vmem:[%s138] sm:$0xf]
  %v140 = vld [vmem:[%s138 + $0x4] sm:$0xf]
  %v141 = vld [vmem:[%s138 + $0x8] sm:$0xf]
  %v142 = vld [vmem:[%s138 + $0xc] sm:$0xf]
  %v143 = vld [vmem:[%s138 + $0x10] sm:$0xf]
  %v144 = vld [vmem:[%s138 + $0x14] sm:$0xf]
  %v145 = vld [vmem:[%s138 + $0x18] sm:$0xf]
  %v146 = vld [vmem:[%s138 + $0x1c] sm:$0xf]
  %v147 = vld [vmem:[%s138 + $0x20] sm:$0xf]
  %v148 = vld [vmem:[%s138 + $0x24] sm:$0xf]
  %v149 = vld [vmem:[%s138 + $0x28] sm:$0xf]
  %v150 = vld [vmem:[%s138 + $0x2c] sm:$0xf]
  %v151 = vld [vmem:[%s138 + $0x30] sm:$0xf]
  %v152 = vld [vmem:[%s138 + $0x34] sm:$0xf]
  %v153 = vld [vmem:[%s138 + $0x38] sm:$0xf]
  %v154 = vld [vmem:[%s138 + $0x3c] sm:$0xf]
  %v155 = vunpack.c.l.bf16 %v139
  %v156 = vunpack.c.l.bf16 %v140
  %v157 = vunpack.c.l.bf16 %v141
  %v158 = vunpack.c.l.bf16 %v142
  %v159 = vunpack.c.l.bf16 %v143
  %v160 = vunpack.c.l.bf16 %v144
  %v161 = vunpack.c.l.bf16 %v145
  %v162 = vunpack.c.l.bf16 %v146
  %v163 = vunpack.c.l.bf16 %v147
  %v164 = vunpack.c.l.bf16 %v148
  %v165 = vunpack.c.l.bf16 %v149
  %v166 = vunpack.c.l.bf16 %v150
  %v167 = vunpack.c.l.bf16 %v151
  %v168 = vunpack.c.l.bf16 %v152
  %v169 = vunpack.c.l.bf16 %v153
  %v170 = vunpack.c.l.bf16 %v154
  %v171 = vmax.f32 %v122, %v155
  %v172 = vmax.f32 %v123, %v156
  %v173 = vmax.f32 %v124, %v157
  %v174 = vmax.f32 %v125, %v158
  %v175 = vmax.f32 %v126, %v159
  %v176 = vmax.f32 %v127, %v160
  %v177 = vmax.f32 %v128, %v161
  %v178 = vmax.f32 %v129, %v162
  %v179 = vmax.f32 %v130, %v163
  %v180 = vmax.f32 %v131, %v164
  %v181 = vmax.f32 %v132, %v165
  %v182 = vmax.f32 %v133, %v166
  %v183 = vmax.f32 %v134, %v167
  %v184 = vmax.f32 %v135, %v168
  %v185 = vmax.f32 %v136, %v169
  %v186 = vmax.f32 %v137, %v170
  %s187 = scalar_lea.vmem %s0, 256
  %v188 = vld [vmem:[%s187] sm:$0xf]
  %v189 = vld [vmem:[%s187 + $0x4] sm:$0xf]
  %v190 = vld [vmem:[%s187 + $0x8] sm:$0xf]
  %v191 = vld [vmem:[%s187 + $0xc] sm:$0xf]
  %v192 = vld [vmem:[%s187 + $0x10] sm:$0xf]
  %v193 = vld [vmem:[%s187 + $0x14] sm:$0xf]
  %v194 = vld [vmem:[%s187 + $0x18] sm:$0xf]
  %v195 = vld [vmem:[%s187 + $0x1c] sm:$0xf]
  %v196 = vld [vmem:[%s187 + $0x20] sm:$0xf]
  %v197 = vld [vmem:[%s187 + $0x24] sm:$0xf]
  %v198 = vld [vmem:[%s187 + $0x28] sm:$0xf]
  %v199 = vld [vmem:[%s187 + $0x2c] sm:$0xf]
  %v200 = vld [vmem:[%s187 + $0x30] sm:$0xf]
  %v201 = vld [vmem:[%s187 + $0x34] sm:$0xf]
  %v202 = vld [vmem:[%s187 + $0x38] sm:$0xf]
  %v203 = vld [vmem:[%s187 + $0x3c] sm:$0xf]
  %v204 = vunpack.c.l.bf16 %v188
  %v205 = vunpack.c.l.bf16 %v189
  %v206 = vunpack.c.l.bf16 %v190
  %v207 = vunpack.c.l.bf16 %v191
  %v208 = vunpack.c.l.bf16 %v192
  %v209 = vunpack.c.l.bf16 %v193
  %v210 = vunpack.c.l.bf16 %v194
  %v211 = vunpack.c.l.bf16 %v195
  %v212 = vunpack.c.l.bf16 %v196
  %v213 = vunpack.c.l.bf16 %v197
  %v214 = vunpack.c.l.bf16 %v198
  %v215 = vunpack.c.l.bf16 %v199
  %v216 = vunpack.c.l.bf16 %v200
  %v217 = vunpack.c.l.bf16 %v201
  %v218 = vunpack.c.l.bf16 %v202
  %v219 = vunpack.c.l.bf16 %v203
  %v220 = vmax.f32 %v171, %v204
  %v221 = vmax.f32 %v172, %v205
  %v222 = vmax.f32 %v173, %v206
  %v223 = vmax.f32 %v174, %v207
  %v224 = vmax.f32 %v175, %v208
  %v225 = vmax.f32 %v176, %v209
  %v226 = vmax.f32 %v177, %v210
  %v227 = vmax.f32 %v178, %v211
  %v228 = vmax.f32 %v179, %v212
  %v229 = vmax.f32 %v180, %v213
  %v230 = vmax.f32 %v181, %v214
  %v231 = vmax.f32 %v182, %v215
  %v232 = vmax.f32 %v183, %v216
  %v233 = vmax.f32 %v184, %v217
  %v234 = vmax.f32 %v185, %v218
  %v235 = vmax.f32 %v186, %v219
  %s236 = scalar_lea.vmem %s0, 320
  %v237 = vld [vmem:[%s236] sm:$0xf]
  %v238 = vld [vmem:[%s236 + $0x4] sm:$0xf]
  %v239 = vld [vmem:[%s236 + $0x8] sm:$0xf]
  %v240 = vld [vmem:[%s236 + $0xc] sm:$0xf]
  %v241 = vld [vmem:[%s236 + $0x10] sm:$0xf]
  %v242 = vld [vmem:[%s236 + $0x14] sm:$0xf]
  %v243 = vld [vmem:[%s236 + $0x18] sm:$0xf]
  %v244 = vld [vmem:[%s236 + $0x1c] sm:$0xf]
  %v245 = vld [vmem:[%s236 + $0x20] sm:$0xf]
  %v246 = vld [vmem:[%s236 + $0x24] sm:$0xf]
  %v247 = vld [vmem:[%s236 + $0x28] sm:$0xf]
  %v248 = vld [vmem:[%s236 + $0x2c] sm:$0xf]
  %v249 = vld [vmem:[%s236 + $0x30] sm:$0xf]
  %v250 = vld [vmem:[%s236 + $0x34] sm:$0xf]
  %v251 = vld [vmem:[%s236 + $0x38] sm:$0xf]
  %v252 = vld [vmem:[%s236 + $0x3c] sm:$0xf]
  %v253 = vunpack.c.l.bf16 %v237
  %v254 = vunpack.c.l.bf16 %v238
  %v255 = vunpack.c.l.bf16 %v239
  %v256 = vunpack.c.l.bf16 %v240
  %v257 = vunpack.c.l.bf16 %v241
  %v258 = vunpack.c.l.bf16 %v242
  %v259 = vunpack.c.l.bf16 %v243
  %v260 = vunpack.c.l.bf16 %v244
  %v261 = vunpack.c.l.bf16 %v245
  %v262 = vunpack.c.l.bf16 %v246
  %v263 = vunpack.c.l.bf16 %v247
  %v264 = vunpack.c.l.bf16 %v248
  %v265 = vunpack.c.l.bf16 %v249
  %v266 = vunpack.c.l.bf16 %v250
  %v267 = vunpack.c.l.bf16 %v251
  %v268 = vunpack.c.l.bf16 %v252
  %v269 = vmax.f32 %v220, %v253
  %v270 = vmax.f32 %v221, %v254
  %v271 = vmax.f32 %v222, %v255
  %v272 = vmax.f32 %v223, %v256
  %v273 = vmax.f32 %v224, %v257
  %v274 = vmax.f32 %v225, %v258
  %v275 = vmax.f32 %v226, %v259
  %v276 = vmax.f32 %v227, %v260
  %v277 = vmax.f32 %v228, %v261
  %v278 = vmax.f32 %v229, %v262
  %v279 = vmax.f32 %v230, %v263
  %v280 = vmax.f32 %v231, %v264
  %v281 = vmax.f32 %v232, %v265
  %v282 = vmax.f32 %v233, %v266
  %v283 = vmax.f32 %v234, %v267
  %v284 = vmax.f32 %v235, %v268
  %s285 = scalar_lea.vmem %s0, 384
  %v286 = vld [vmem:[%s285] sm:$0xf]
  %v287 = vld [vmem:[%s285 + $0x4] sm:$0xf]
  %v288 = vld [vmem:[%s285 + $0x8] sm:$0xf]
  %v289 = vld [vmem:[%s285 + $0xc] sm:$0xf]
  %v290 = vld [vmem:[%s285 + $0x10] sm:$0xf]
  %v291 = vld [vmem:[%s285 + $0x14] sm:$0xf]
  %v292 = vld [vmem:[%s285 + $0x18] sm:$0xf]
  %v293 = vld [vmem:[%s285 + $0x1c] sm:$0xf]
  %v294 = vld [vmem:[%s285 + $0x20] sm:$0xf]
  %v295 = vld [vmem:[%s285 + $0x24] sm:$0xf]
  %v296 = vld [vmem:[%s285 + $0x28] sm:$0xf]
  %v297 = vld [vmem:[%s285 + $0x2c] sm:$0xf]
  %v298 = vld [vmem:[%s285 + $0x30] sm:$0xf]
  %v299 = vld [vmem:[%s285 + $0x34] sm:$0xf]
  %v300 = vld [vmem:[%s285 + $0x38] sm:$0xf]
  %v301 = vld [vmem:[%s285 + $0x3c] sm:$0xf]
  %v302 = vunpack.c.l.bf16 %v286
  %v303 = vunpack.c.l.bf16 %v287
  %v304 = vunpack.c.l.bf16 %v288
  %v305 = vunpack.c.l.bf16 %v289
  %v306 = vunpack.c.l.bf16 %v290
  %v307 = vunpack.c.l.bf16 %v291
  %v308 = vunpack.c.l.bf16 %v292
  %v309 = vunpack.c.l.bf16 %v293
  %v310 = vunpack.c.l.bf16 %v294
  %v311 = vunpack.c.l.bf16 %v295
  %v312 = vunpack.c.l.bf16 %v296
  %v313 = vunpack.c.l.bf16 %v297
  %v314 = vunpack.c.l.bf16 %v298
  %v315 = vunpack.c.l.bf16 %v299
  %v316 = vunpack.c.l.bf16 %v300
  %v317 = vunpack.c.l.bf16 %v301
  %v318 = vmax.f32 %v269, %v302
  %v319 = vmax.f32 %v270, %v303
  %v320 = vmax.f32 %v271, %v304
  %v321 = vmax.f32 %v272, %v305
  %v322 = vmax.f32 %v273, %v306
  %v323 = vmax.f32 %v274, %v307
  %v324 = vmax.f32 %v275, %v308
  %v325 = vmax.f32 %v276, %v309
  %v326 = vmax.f32 %v277, %v310
  %v327 = vmax.f32 %v278, %v311
  %v328 = vmax.f32 %v279, %v312
  %v329 = vmax.f32 %v280, %v313
  %v330 = vmax.f32 %v281, %v314
  %v331 = vmax.f32 %v282, %v315
  %v332 = vmax.f32 %v283, %v316
  %v333 = vmax.f32 %v284, %v317
  %s334 = scalar_lea.vmem %s0, 448
  %v335 = vld [vmem:[%s334] sm:$0xf]
  %v336 = vld [vmem:[%s334 + $0x4] sm:$0xf]
  %v337 = vld [vmem:[%s334 + $0x8] sm:$0xf]
  %v338 = vld [vmem:[%s334 + $0xc] sm:$0xf]
  %v339 = vld [vmem:[%s334 + $0x10] sm:$0xf]
  %v340 = vld [vmem:[%s334 + $0x14] sm:$0xf]
  %v341 = vld [vmem:[%s334 + $0x18] sm:$0xf]
  %v342 = vld [vmem:[%s334 + $0x1c] sm:$0xf]
  %v343 = vld [vmem:[%s334 + $0x20] sm:$0xf]
  %v344 = vld [vmem:[%s334 + $0x24] sm:$0xf]
  %v345 = vld [vmem:[%s334 + $0x28] sm:$0xf]
  %v346 = vld [vmem:[%s334 + $0x2c] sm:$0xf]
  %v347 = vld [vmem:[%s334 + $0x30] sm:$0xf]
  %v348 = vld [vmem:[%s334 + $0x34] sm:$0xf]
  %v349 = vld [vmem:[%s334 + $0x38] sm:$0xf]
  %v350 = vld [vmem:[%s334 + $0x3c] sm:$0xf]
  %v351 = vunpack.c.l.bf16 %v335
  %v352 = vunpack.c.l.bf16 %v336
  %v353 = vunpack.c.l.bf16 %v337
  %v354 = vunpack.c.l.bf16 %v338
  %v355 = vunpack.c.l.bf16 %v339
  %v356 = vunpack.c.l.bf16 %v340
  %v357 = vunpack.c.l.bf16 %v341
  %v358 = vunpack.c.l.bf16 %v342
  %v359 = vunpack.c.l.bf16 %v343
  %v360 = vunpack.c.l.bf16 %v344
  %v361 = vunpack.c.l.bf16 %v345
  %v362 = vunpack.c.l.bf16 %v346
  %v363 = vunpack.c.l.bf16 %v347
  %v364 = vunpack.c.l.bf16 %v348
  %v365 = vunpack.c.l.bf16 %v349
  %v366 = vunpack.c.l.bf16 %v350
  %v367 = vmax.f32 %v318, %v351
  %v368 = vmax.f32 %v319, %v352
  %v369 = vmax.f32 %v320, %v353
  %v370 = vmax.f32 %v321, %v354
  %v371 = vmax.f32 %v322, %v355
  %v372 = vmax.f32 %v323, %v356
  %v373 = vmax.f32 %v324, %v357
  %v374 = vmax.f32 %v325, %v358
  %v375 = vmax.f32 %v326, %v359
  %v376 = vmax.f32 %v327, %v360
  %v377 = vmax.f32 %v328, %v361
  %v378 = vmax.f32 %v329, %v362
  %v379 = vmax.f32 %v330, %v363
  %v380 = vmax.f32 %v331, %v364
  %v381 = vmax.f32 %v332, %v365
  %v382 = vmax.f32 %v333, %v366
  %s383 = scalar_lea.vmem %s0, 512
  %v384 = vld [vmem:[%s383] sm:$0xf]
  %v385 = vld [vmem:[%s383 + $0x4] sm:$0xf]
  %v386 = vld [vmem:[%s383 + $0x8] sm:$0xf]
  %v387 = vld [vmem:[%s383 + $0xc] sm:$0xf]
  %v388 = vld [vmem:[%s383 + $0x10] sm:$0xf]
  %v389 = vld [vmem:[%s383 + $0x14] sm:$0xf]
  %v390 = vld [vmem:[%s383 + $0x18] sm:$0xf]
  %v391 = vld [vmem:[%s383 + $0x1c] sm:$0xf]
  %v392 = vld [vmem:[%s383 + $0x20] sm:$0xf]
  %v393 = vld [vmem:[%s383 + $0x24] sm:$0xf]
  %v394 = vld [vmem:[%s383 + $0x28] sm:$0xf]
  %v395 = vld [vmem:[%s383 + $0x2c] sm:$0xf]
  %v396 = vld [vmem:[%s383 + $0x30] sm:$0xf]
  %v397 = vld [vmem:[%s383 + $0x34] sm:$0xf]
  %v398 = vld [vmem:[%s383 + $0x38] sm:$0xf]
  %v399 = vld [vmem:[%s383 + $0x3c] sm:$0xf]
  %v400 = vunpack.c.l.bf16 %v384
  %v401 = vunpack.c.l.bf16 %v385
  %v402 = vunpack.c.l.bf16 %v386
  %v403 = vunpack.c.l.bf16 %v387
  %v404 = vunpack.c.l.bf16 %v388
  %v405 = vunpack.c.l.bf16 %v389
  %v406 = vunpack.c.l.bf16 %v390
  %v407 = vunpack.c.l.bf16 %v391
  %v408 = vunpack.c.l.bf16 %v392
  %v409 = vunpack.c.l.bf16 %v393
  %v410 = vunpack.c.l.bf16 %v394
  %v411 = vunpack.c.l.bf16 %v395
  %v412 = vunpack.c.l.bf16 %v396
  %v413 = vunpack.c.l.bf16 %v397
  %v414 = vunpack.c.l.bf16 %v398
  %v415 = vunpack.c.l.bf16 %v399
  %v416 = vmax.f32 %v367, %v400
  %v417 = vmax.f32 %v368, %v401
  %v418 = vmax.f32 %v369, %v402
  %v419 = vmax.f32 %v370, %v403
  %v420 = vmax.f32 %v371, %v404
  %v421 = vmax.f32 %v372, %v405
  %v422 = vmax.f32 %v373, %v406
  %v423 = vmax.f32 %v374, %v407
  %v424 = vmax.f32 %v375, %v408
  %v425 = vmax.f32 %v376, %v409
  %v426 = vmax.f32 %v377, %v410
  %v427 = vmax.f32 %v378, %v411
  %v428 = vmax.f32 %v379, %v412
  %v429 = vmax.f32 %v380, %v413
  %v430 = vmax.f32 %v381, %v414
  %v431 = vmax.f32 %v382, %v415
  %v432 = vpack.c.bf16 %v417, %v416
  %v433 = vpack.c.bf16 %v419, %v418
  %v434 = vpack.c.bf16 %v421, %v420
  %v435 = vpack.c.bf16 %v423, %v422
  %v436 = vpack.c.bf16 %v425, %v424
  %v437 = vpack.c.bf16 %v427, %v426
  %v438 = vpack.c.bf16 %v429, %v428
  %v439 = vpack.c.bf16 %v431, %v430
  %v448 = vunpack.c.l.b16 %v432
  %v449 = vunpack.c.h.b16 %v432
  %v450 = vunpack.c.l.b16 %v433
  %v451 = vunpack.c.h.b16 %v433
  %v452 = vunpack.c.l.b16 %v434
  %v453 = vunpack.c.h.b16 %v434
  %v454 = vunpack.c.l.b16 %v435
  %v455 = vunpack.c.h.b16 %v435
  %v456 = vunpack.c.l.b16 %v436
  %v457 = vunpack.c.h.b16 %v436
  %v458 = vunpack.c.l.b16 %v437
  %v459 = vunpack.c.h.b16 %v437
  %v460 = vunpack.c.l.b16 %v438
  %v461 = vunpack.c.h.b16 %v438
  %v462 = vunpack.c.l.b16 %v439
  %v463 = vunpack.c.h.b16 %v439
  %v464 = vpack.c.b16 %v448, %v448
  %v465 = vpack.c.b16 %v449, %v449
  %v466 = vpack.c.b16 %v450, %v450
  %v467 = vpack.c.b16 %v451, %v451
  %v468 = vpack.c.b16 %v452, %v452
  %v469 = vpack.c.b16 %v453, %v453
  %v470 = vpack.c.b16 %v454, %v454
  %v471 = vpack.c.b16 %v455, %v455
  %v472 = vpack.c.b16 %v456, %v456
  %v473 = vpack.c.b16 %v457, %v457
  %v474 = vpack.c.b16 %v458, %v458
  %v475 = vpack.c.b16 %v459, %v459
  %v476 = vpack.c.b16 %v460, %v460
  %v477 = vpack.c.b16 %v461, %v461
  %v478 = vpack.c.b16 %v462, %v462
  %v479 = vpack.c.b16 %v463, %v463
  %vm496 = vcmask 60416
  %497 = vst.msk [vmem:[%s1] sm:$0xf] %vm496, %v464
  %498 = vst.msk [vmem:[%s1 + $0x4] sm:$0xf] %vm496, %v465
  %499 = vst.msk [vmem:[%s1 + $0x8] sm:$0xf] %vm496, %v466
  %500 = vst.msk [vmem:[%s1 + $0xc] sm:$0xf] %vm496, %v467
  %501 = vst.msk [vmem:[%s1 + $0x10] sm:$0xf] %vm496, %v468
  %502 = vst.msk [vmem:[%s1 + $0x14] sm:$0xf] %vm496, %v469
  %503 = vst.msk [vmem:[%s1 + $0x18] sm:$0xf] %vm496, %v470
  %504 = vst.msk [vmem:[%s1 + $0x1c] sm:$0xf] %vm496, %v471
  %505 = vst.msk [vmem:[%s1 + $0x20] sm:$0xf] %vm496, %v472
  %506 = vst.msk [vmem:[%s1 + $0x24] sm:$0xf] %vm496, %v473
  %507 = vst.msk [vmem:[%s1 + $0x28] sm:$0xf] %vm496, %v474
  %508 = vst.msk [vmem:[%s1 + $0x2c] sm:$0xf] %vm496, %v475
  %509 = vst.msk [vmem:[%s1 + $0x30] sm:$0xf] %vm496, %v476
  %510 = vst.msk [vmem:[%s1 + $0x34] sm:$0xf] %vm496, %v477
  %511 = vst.msk [vmem:[%s1 + $0x38] sm:$0xf] %vm496, %v478
  %512 = vst.msk [vmem:[%s1 + $0x3c] sm:$0xf] %vm496, %v479
  // Predicated region
  $region6: #{_lambda_.19} parent=0 // pred_check
    _
  $region7: #{_lambda_.19} parent=0 // pred_check_branch
    %514 = sbr.rel (0) target = $region9
  $region8: #{_lambda_.19} parent=0 // pred_region
    _
  $region9: #{_lambda_.19} parent=0 // pred_fallthru
    _
  // Predicated region
  $region10: #{_lambda_.19} parent=0 // pred_check
    _
  $region11: #{_lambda_.19} parent=0 // pred_check_branch
    %516 = sbr.rel (0) target = $region13
  $region12: #{_lambda_.19} parent=0 // pred_region
    _
  $region13: #{_lambda_.19} parent=0 // pred_fallthru
    _

// kernel: _lambda_.20
$region0: #{_lambda_.20}
  #allocation0 [shape = 'u32[]', space=smem, size = 0x4, offset = 0x4, fixed_abs, tag = 'smem constant byte address 0x4 - core index']
  #allocation1 [shape = 'u32[144,128]{1,0:T(1,128)}', space=vmem, size = 0x12000, scoped, tag = 'internal scratch']
  %s0 = inlined_call_operand.vmem [shape: bf16[128,128], index: 0, kind: input, shape index: {}]
  %s1 = inlined_call_operand.vmem [shape: bf16[128,128], index: 1, kind: input, shape index: {}]
  %s2 = inlined_call_operand.vmem [shape: f32[1,128], index: 2, kind: input, shape index: {}]
  %s3 = inlined_call_operand.vmem [shape: bf16[128,128], index: 3, kind: output, shape index: {}]
  %s4 = sld [smem:[#allocation0]]
  $region22: #{_lambda_.20} parent=0
    _
  %s6 = ssub.s32 1, %s4
  %s7 = scalar_select 0, %s6, %s4
  // Predicated region
  $region2: #{_lambda_.20} parent=0 // pred_check
    _
  $region3: #{_lambda_.20} parent=0 // pred_check_branch
    %9 = sbr.rel (0) target = $region5
  $region4: #{_lambda_.20} parent=0 // pred_region
    _
  $region5: #{_lambda_.20} parent=0 // pred_fallthru
    _
  // Predicated region
  $region6: #{_lambda_.20} parent=0 // pred_check
    _
  $region7: #{_lambda_.20} parent=0 // pred_check_branch
    %11 = sbr.rel (0) target = $region9
  $region8: #{_lambda_.20} parent=0 // pred_region
    _
  $region9: #{_lambda_.20} parent=0 // pred_fallthru
    _
  // Predicated region
  $region10: #{_lambda_.20} parent=0 // pred_check
    _
  $region11: #{_lambda_.20} parent=0 // pred_check_branch
    %13 = sbr.rel (0) target = $region13
  $region12: #{_lambda_.20} parent=0 // pred_region
    _
  $region13: #{_lambda_.20} parent=0 // pred_fallthru
    _
  %v15 = vld [vmem:[%s0] sm:$0xf]
  %v16 = vld [vmem:[%s0 + $0x4] sm:$0xf]
  %v17 = vld [vmem:[%s0 + $0x8] sm:$0xf]
  %v18 = vld [vmem:[%s0 + $0xc] sm:$0xf]
  %v19 = vld [vmem:[%s0 + $0x10] sm:$0xf]
  %v20 = vld [vmem:[%s0 + $0x14] sm:$0xf]
  %v21 = vld [vmem:[%s0 + $0x18] sm:$0xf]
  %v22 = vld [vmem:[%s0 + $0x1c] sm:$0xf]
  %v23 = vld [vmem:[%s0 + $0x20] sm:$0xf]
  %v24 = vld [vmem:[%s0 + $0x24] sm:$0xf]
  %v25 = vld [vmem:[%s0 + $0x28] sm:$0xf]
  %v26 = vld [vmem:[%s0 + $0x2c] sm:$0xf]
  %v27 = vld [vmem:[%s0 + $0x30] sm:$0xf]
  %v28 = vld [vmem:[%s0 + $0x34] sm:$0xf]
  %v29 = vld [vmem:[%s0 + $0x38] sm:$0xf]
  %v30 = vld [vmem:[%s0 + $0x3c] sm:$0xf]
  %v31 = vld [vmem:[%s1] sm:$0xf]
  %v32 = vld [vmem:[%s1 + $0x4] sm:$0xf]
  %v33 = vld [vmem:[%s1 + $0x8] sm:$0xf]
  %v34 = vld [vmem:[%s1 + $0xc] sm:$0xf]
  %v35 = vld [vmem:[%s1 + $0x10] sm:$0xf]
  %v36 = vld [vmem:[%s1 + $0x14] sm:$0xf]
  %v37 = vld [vmem:[%s1 + $0x18] sm:$0xf]
  %v38 = vld [vmem:[%s1 + $0x1c] sm:$0xf]
  %v39 = vld [vmem:[%s1 + $0x20] sm:$0xf]
  %v40 = vld [vmem:[%s1 + $0x24] sm:$0xf]
  %v41 = vld [vmem:[%s1 + $0x28] sm:$0xf]
  %v42 = vld [vmem:[%s1 + $0x2c] sm:$0xf]
  %v43 = vld [vmem:[%s1 + $0x30] sm:$0xf]
  %v44 = vld [vmem:[%s1 + $0x34] sm:$0xf]
  %v45 = vld [vmem:[%s1 + $0x38] sm:$0xf]
  %v46 = vld [vmem:[%s1 + $0x3c] sm:$0xf]
  %v47 = vld [vmem:[%s2] sm:$0x1]
  %v49 = vlaneseq
  %v50 = vshrl.u32 %v49, 7
  %v51 = vsub.s32 0, %v50
  %v52 = vrot.slane %v47, %v51
  %v70 = vunpack.c.l.b16 %v15
  %v71 = vunpack.c.l.b16 %v16
  %v72 = vunpack.c.l.b16 %v17
  %v73 = vunpack.c.l.b16 %v18
  %v74 = vunpack.c.l.b16 %v19
  %v75 = vunpack.c.l.b16 %v20
  %v76 = vunpack.c.l.b16 %v21
  %v77 = vunpack.c.l.b16 %v22
  %v78 = vunpack.c.l.b16 %v23
  %v79 = vunpack.c.l.b16 %v24
  %v80 = vunpack.c.l.b16 %v25
  %v81 = vunpack.c.l.b16 %v26
  %v82 = vunpack.c.l.b16 %v27
  %v83 = vunpack.c.l.b16 %v28
  %v84 = vunpack.c.l.b16 %v29
  %v85 = vunpack.c.l.b16 %v30
  %v86 = vpack.c.b16 %v71, %v70
  %v87 = vpack.c.b16 %v73, %v72
  %v88 = vpack.c.b16 %v75, %v74
  %v89 = vpack.c.b16 %v77, %v76
  %v90 = vpack.c.b16 %v79, %v78
  %v91 = vpack.c.b16 %v81, %v80
  %v92 = vpack.c.b16 %v83, %v82
  %v93 = vpack.c.b16 %v85, %v84
  %v118 = vunpack.c.l.b16 %v31
  %v119 = vunpack.c.l.b16 %v32
  %v120 = vunpack.c.l.b16 %v33
  %v121 = vunpack.c.l.b16 %v34
  %v122 = vunpack.c.l.b16 %v35
  %v123 = vunpack.c.l.b16 %v36
  %v124 = vunpack.c.l.b16 %v37
  %v125 = vunpack.c.l.b16 %v38
  %v126 = vunpack.c.l.b16 %v39
  %v127 = vunpack.c.l.b16 %v40
  %v128 = vunpack.c.l.b16 %v41
  %v129 = vunpack.c.l.b16 %v42
  %v130 = vunpack.c.l.b16 %v43
  %v131 = vunpack.c.l.b16 %v44
  %v132 = vunpack.c.l.b16 %v45
  %v133 = vunpack.c.l.b16 %v46
  %v134 = vpack.c.b16 %v119, %v118
  %v135 = vpack.c.b16 %v121, %v120
  %v136 = vpack.c.b16 %v123, %v122
  %v137 = vpack.c.b16 %v125, %v124
  %v138 = vpack.c.b16 %v127, %v126
  %v139 = vpack.c.b16 %v129, %v128
  %v140 = vpack.c.b16 %v131, %v130
  %v141 = vpack.c.b16 %v133, %v132
  %150 = vmatprep.subr.bf16.mxu0 0
  %151 = vmatpush1.bf16.msra.mxu0 %v134
  %152 = vmatprep.subr.bf16.mxu0 0
  %153 = vmatpush1.bf16.msra.mxu0 %v135
  %154 = vmatprep.subr.bf16.mxu0 0
  %155 = vmatpush1.bf16.msra.mxu0 %v136
  %156 = vmatprep.subr.bf16.mxu0 0
  %157 = vmatpush1.bf16.msra.mxu0 %v137
  %158 = vmatprep.subr.bf16.mxu0 0
  %159 = vmatpush1.bf16.msra.mxu0 %v138
  %160 = vmatprep.subr.bf16.mxu0 0
  %161 = vmatpush1.bf16.msra.mxu0 %v139
  %162 = vmatprep.subr.bf16.mxu0 0
  %163 = vmatpush1.bf16.msra.mxu0 %v140
  %164 = vmatprep.subr.bf16.mxu0 0
  %165 = vmatpush1.bf16.msra.mxu0 %v141
  %166 = vmatprep.subr.bf16.mxu0 0
  %167 = vmatpush1.bf16.msra.mxu0 0
  %168 = vmatprep.subr.bf16.mxu0 0
  %169 = vmatpush1.bf16.msra.mxu0 0
  %170 = vmatprep.subr.bf16.mxu0 0
  %171 = vmatpush1.bf16.msra.mxu0 0
  %172 = vmatprep.subr.bf16.mxu0 0
  %173 = vmatpush1.bf16.msra.mxu0 0
  %174 = vmatprep.subr.bf16.mxu0 0
  %175 = vmatpush1.bf16.msra.mxu0 0
  %176 = vmatprep.subr.bf16.mxu0 0
  %177 = vmatpush1.bf16.msra.mxu0 0
  %178 = vmatprep.subr.bf16.mxu0 0
  %179 = vmatpush1.bf16.msra.mxu0 0
  %180 = vmatprep.subr.bf16.mxu0 0
  %181 = vmatpush1.bf16.msra.mxu0 0
  %182 = vmatprep.mubr.bf16.mxu0 0
  %183 = vmatmul.mubr.bf16.gmra.mrb[0].mxu0 %v86
  %v184 = vpop.f32.mrb[0].mxu0
  %v185 = vadd.f32 %v52, %v184
  %v186 = vpop.f32.mrb[0].mxu0
  %v187 = vpop.f32.mrb[0].mxu0
  %v188 = vadd.f32 %v52, %v187
  %v189 = vpop.f32.mrb[0].mxu0
  %190 = vmatprep.mubr.bf16.mxu0 0
  %191 = vmatmul.mubr.bf16.gmra.mrb[0].mxu0 %v87
  %v192 = vpop.f32.mrb[0].mxu0
  %v193 = vadd.f32 %v52, %v192
  %v194 = vpop.f32.mrb[0].mxu0
  %v195 = vpop.f32.mrb[0].mxu0
  %v196 = vadd.f32 %v52, %v195
  %v197 = vpop.f32.mrb[0].mxu0
  %198 = vmatprep.mubr.bf16.mxu0 0
  %199 = vmatmul.mubr.bf16.gmra.mrb[0].mxu0 %v88
  %v200 = vpop.f32.mrb[0].mxu0
  %v201 = vadd.f32 %v52, %v200
  %v202 = vpop.f32.mrb[0].mxu0
  %v203 = vpop.f32.mrb[0].mxu0
  %v204 = vadd.f32 %v52, %v203
  %v205 = vpop.f32.mrb[0].mxu0
  %206 = vmatprep.mubr.bf16.mxu0 0
  %207 = vmatmul.mubr.bf16.gmra.mrb[0].mxu0 %v89
  %v208 = vpop.f32.mrb[0].mxu0
  %v209 = vadd.f32 %v52, %v208
  %v210 = vpop.f32.mrb[0].mxu0
  %v211 = vpop.f32.mrb[0].mxu0
  %v212 = vadd.f32 %v52, %v211
  %v213 = vpop.f32.mrb[0].mxu0
  %214 = vmatprep.mubr.bf16.mxu0 0
  %215 = vmatmul.mubr.bf16.gmra.mrb[0].mxu0 %v90
  %v216 = vpop.f32.mrb[0].mxu0
  %v217 = vadd.f32 %v52, %v216
  %v218 = vpop.f32.mrb[0].mxu0
  %v219 = vpop.f32.mrb[0].mxu0
  %v220 = vadd.f32 %v52, %v219
  %v221 = vpop.f32.mrb[0].mxu0
  %222 = vmatprep.mubr.bf16.mxu0 0
  %223 = vmatmul.mubr.bf16.gmra.mrb[0].mxu0 %v91
  %v224 = vpop.f32.mrb[0].mxu0
  %v225 = vadd.f32 %v52, %v224
  %v226 = vpop.f32.mrb[0].mxu0
  %v227 = vpop.f32.mrb[0].mxu0
  %v228 = vadd.f32 %v52, %v227
  %v229 = vpop.f32.mrb[0].mxu0
  %230 = vmatprep.mubr.bf16.mxu0 0
  %231 = vmatmul.mubr.bf16.gmra.mrb[0].mxu0 %v92
  %v232 = vpop.f32.mrb[0].mxu0
  %v233 = vadd.f32 %v52, %v232
  %v234 = vpop.f32.mrb[0].mxu0
  %v235 = vpop.f32.mrb[0].mxu0
  %v236 = vadd.f32 %v52, %v235
  %v237 = vpop.f32.mrb[0].mxu0
  %238 = vmatprep.mubr.bf16.mxu0 0
  %239 = vmatmul.mubr.bf16.gmra.mrb[0].mxu0 %v93
  %v240 = vpop.f32.mrb[0].mxu0
  %v241 = vadd.f32 %v52, %v240
  %v242 = vpop.f32.mrb[0].mxu0
  %v243 = vpop.f32.mrb[0].mxu0
  %v244 = vadd.f32 %v52, %v243
  %v245 = vpop.f32.mrb[0].mxu0
  %246 = vdwg.mxu0
  %v247 = vmax.f32 %v185, 0.0
  %v248 = vmax.f32 %v188, 0.0
  %v249 = vmax.f32 %v193, 0.0
  %v250 = vmax.f32 %v196, 0.0
  %v251 = vmax.f32 %v201, 0.0
  %v252 = vmax.f32 %v204, 0.0
  %v253 = vmax.f32 %v209, 0.0
  %v254 = vmax.f32 %v212, 0.0
  %v255 = vmax.f32 %v217, 0.0
  %v256 = vmax.f32 %v220, 0.0
  %v257 = vmax.f32 %v225, 0.0
  %v258 = vmax.f32 %v228, 0.0
  %v259 = vmax.f32 %v233, 0.0
  %v260 = vmax.f32 %v236, 0.0
  %v261 = vmax.f32 %v241, 0.0
  %v262 = vmax.f32 %v244, 0.0
  %v263 = vpack.c.bf16 %v248, %v247
  %v264 = vpack.c.bf16 %v250, %v249
  %v265 = vpack.c.bf16 %v252, %v251
  %v266 = vpack.c.bf16 %v254, %v253
  %v267 = vpack.c.bf16 %v256, %v255
  %v268 = vpack.c.bf16 %v258, %v257
  %v269 = vpack.c.bf16 %v260, %v259
  %v270 = vpack.c.bf16 %v262, %v261
  %v279 = vunpack.c.l.b16 %v263
  %v280 = vunpack.c.h.b16 %v263
  %v281 = vunpack.c.l.b16 %v264
  %v282 = vunpack.c.h.b16 %v264
  %v283 = vunpack.c.l.b16 %v265
  %v284 = vunpack.c.h.b16 %v265
  %v285 = vunpack.c.l.b16 %v266
  %v286 = vunpack.c.h.b16 %v266
  %v287 = vunpack.c.l.b16 %v267
  %v288 = vunpack.c.h.b16 %v267
  %v289 = vunpack.c.l.b16 %v268
  %v290 = vunpack.c.h.b16 %v268
  %v291 = vunpack.c.l.b16 %v269
  %v292 = vunpack.c.h.b16 %v269
  %v293 = vunpack.c.l.b16 %v270
  %v294 = vunpack.c.h.b16 %v270
  %v295 = vpack.c.b16 %v279, %v279
  %v296 = vpack.c.b16 %v280, %v280
  %v297 = vpack.c.b16 %v281, %v281
  %v298 = vpack.c.b16 %v282, %v282
  %v299 = vpack.c.b16 %v283, %v283
  %v300 = vpack.c.b16 %v284, %v284
  %v301 = vpack.c.b16 %v285, %v285
  %v302 = vpack.c.b16 %v286, %v286
  %v303 = vpack.c.b16 %v287, %v287
  %v304 = vpack.c.b16 %v288, %v288
  %v305 = vpack.c.b16 %v289, %v289
  %v306 = vpack.c.b16 %v290, %v290
  %v307 = vpack.c.b16 %v291, %v291
  %v308 = vpack.c.b16 %v292, %v292
  %v309 = vpack.c.b16 %v293, %v293
  %v310 = vpack.c.b16 %v294, %v294
  %327 = vst [vmem:[%s3] sm:$0xf] %v295
  %328 = vst [vmem:[%s3 + $0x4] sm:$0xf] %v296
  %329 = vst [vmem:[%s3 + $0x8] sm:$0xf] %v297
  %330 = vst [vmem:[%s3 + $0xc] sm:$0xf] %v298
  %331 = vst [vmem:[%s3 + $0x10] sm:$0xf] %v299
  %332 = vst [vmem:[%s3 + $0x14] sm:$0xf] %v300
  %333 = vst [vmem:[%s3 + $0x18] sm:$0xf] %v301
  %334 = vst [vmem:[%s3 + $0x1c] sm:$0xf] %v302
  %335 = vst [vmem:[%s3 + $0x20] sm:$0xf] %v303
  %336 = vst [vmem:[%s3 + $0x24] sm:$0xf] %v304
  %337 = vst [vmem:[%s3 + $0x28] sm:$0xf] %v305
  %338 = vst [vmem:[%s3 + $0x2c] sm:$0xf] %v306
  %339 = vst [vmem:[%s3 + $0x30] sm:$0xf] %v307
  %340 = vst [vmem:[%s3 + $0x34] sm:$0xf] %v308
  %341 = vst [vmem:[%s3 + $0x38] sm:$0xf] %v309
  %342 = vst [vmem:[%s3 + $0x3c] sm:$0xf] %v310
  // Predicated region
  $region14: #{_lambda_.20} parent=0 // pred_check
    _
  $region15: #{_lambda_.20} parent=0 // pred_check_branch
    %344 = sbr.rel (0) target = $region17
  $region16: #{_lambda_.20} parent=0 // pred_region
    _
  $region17: #{_lambda_.20} parent=0 // pred_fallthru
    _
  // Predicated region
  $region18: #{_lambda_.20} parent=0 // pred_check
    _
  $region19: #{_lambda_.20} parent=0 // pred_check_branch
    %346 = sbr.rel (0) target = $region21
  $region20: #{_lambda_.20} parent=0 // pred_region
    _
  $region21: #{_lambda_.20} parent=0 // pred_fallthru
    _

// kernel: _lambda_.18
$region0: #{_lambda_.18}
  #allocation0 [shape = 'u32[]', space=smem, size = 0x4, offset = 0x4, fixed_abs, tag = 'smem constant byte address 0x4 - core index']
  #allocation1 [shape = 'u32[144,128]{1,0:T(1,128)}', space=vmem, size = 0x12000, scoped, tag = 'internal scratch']
  %s0 = inlined_call_operand.vmem [shape: bf16[512,256], index: 0, kind: input, shape index: {}]
  %s1 = inlined_call_operand.vmem [shape: bf16[256,128], index: 1, kind: input, shape index: {}]
  %s2 = inlined_call_operand.vmem [shape: f32[1,128], index: 2, kind: input, shape index: {}]
  %s3 = inlined_call_operand.vmem [shape: bf16[512,128], index: 3, kind: output, shape index: {}]
  %s4 = sld [smem:[#allocation0]]
  $region22: #{_lambda_.18} parent=0
    _
  %s6 = ssub.s32 1, %s4
  %s7 = scalar_select 0, %s6, %s4
  // Predicated region
  $region2: #{_lambda_.18} parent=0 // pred_check
    _
  $region3: #{_lambda_.18} parent=0 // pred_check_branch
    %9 = sbr.rel (0) target = $region5
  $region4: #{_lambda_.18} parent=0 // pred_region
    _
  $region5: #{_lambda_.18} parent=0 // pred_fallthru
    _
  // Predicated region
  $region6: #{_lambda_.18} parent=0 // pred_check
    _
  $region7: #{_lambda_.18} parent=0 // pred_check_branch
    %11 = sbr.rel (0) target = $region9
  $region8: #{_lambda_.18} parent=0 // pred_region
    _
  $region9: #{_lambda_.18} parent=0 // pred_fallthru
    _
  // Predicated region
  $region10: #{_lambda_.18} parent=0 // pred_check
    _
  $region11: #{_lambda_.18} parent=0 // pred_check_branch
    %13 = sbr.rel (0) target = $region13
  $region12: #{_lambda_.18} parent=0 // pred_region
    _
  $region13: #{_lambda_.18} parent=0 // pred_fallthru
    _
  %v15 = vld [vmem:[%s0] sm:$0xff]
  %v16 = vld [vmem:[%s0 + $0x8] sm:$0xff]
  %v17 = vld [vmem:[%s0 + $0x10] sm:$0xff]
  %v18 = vld [vmem:[%s0 + $0x18] sm:$0xff]
  %v19 = vld [vmem:[%s0 + $0x20] sm:$0xff]
  %v20 = vld [vmem:[%s0 + $0x28] sm:$0xff]
  %v21 = vld [vmem:[%s0 + $0x30] sm:$0xff]
  %v22 = vld [vmem:[%s0 + $0x38] sm:$0xff]
  %v23 = vld [vmem:[%s0 + $0x40] sm:$0xff]
  %v24 = vld [vmem:[%s0 + $0x48] sm:$0xff]
  %v25 = vld [vmem:[%s0 + $0x50] sm:$0xff]
  %v26 = vld [vmem:[%s0 + $0x58] sm:$0xff]
  %v27 = vld [vmem:[%s0 + $0x60] sm:$0xff]
  %v28 = vld [vmem:[%s0 + $0x68] sm:$0xff]
  %v29 = vld [vmem:[%s0 + $0x70] sm:$0xff]
  %v30 = vld [vmem:[%s0 + $0x78] sm:$0xff]
  %v31 = vld [vmem:[%s0 + $0x80] sm:$0xff]
  %v32 = vld [vmem:[%s0 + $0x88] sm:$0xff]
  %v33 = vld [vmem:[%s0 + $0x90] sm:$0xff]
  %v34 = vld [vmem:[%s0 + $0x98] sm:$0xff]
  %v35 = vld [vmem:[%s0 + $0xa0] sm:$0xff]
  %v36 = vld [vmem:[%s0 + $0xa8] sm:$0xff]
  %v37 = vld [vmem:[%s0 + $0xb0] sm:$0xff]
  %v38 = vld [vmem:[%s0 + $0xb8] sm:$0xff]
  %v39 = vld [vmem:[%s0 + $0xc0] sm:$0xff]
  %v40 = vld [vmem:[%s0 + $0xc8] sm:$0xff]
  %v41 = vld [vmem:[%s0 + $0xd0] sm:$0xff]
  %v42 = vld [vmem:[%s0 + $0xd8] sm:$0xff]
  %v43 = vld [vmem:[%s0 + $0xe0] sm:$0xff]
  %v44 = vld [vmem:[%s0 + $0xe8] sm:$0xff]
  %v45 = vld [vmem:[%s0 + $0xf0] sm:$0xff]
  %v46 = vld [vmem:[%s0 + $0xf8] sm:$0xff]
  %v47 = vld [vmem:[%s0 + $0x100] sm:$0xff]
  %v48 = vld [vmem:[%s0 + $0x108] sm:$0xff]
  %v49 = vld [vmem:[%s0 + $0x110] sm:$0xff]
  %v50 = vld [vmem:[%s0 + $0x118] sm:$0xff]
  %v51 = vld [vmem:[%s0 + $0x120] sm:$0xff]
  %v52 = vld [vmem:[%s0 + $0x128] sm:$0xff]
  %v53 = vld [vmem:[%s0 + $0x130] sm:$0xff]
  %v54 = vld [vmem:[%s0 + $0x138] sm:$0xff]
  %v55 = vld [vmem:[%s0 + $0x140] sm:$0xff]
  %v56 = vld [vmem:[%s0 + $0x148] sm:$0xff]
  %v57 = vld [vmem:[%s0 + $0x150] sm:$0xff]
  %v58 = vld [vmem:[%s0 + $0x158] sm:$0xff]
  %v59 = vld [vmem:[%s0 + $0x160] sm:$0xff]
  %v60 = vld [vmem:[%s0 + $0x168] sm:$0xff]
  %v61 = vld [vmem:[%s0 + $0x170] sm:$0xff]
  %v62 = vld [vmem:[%s0 + $0x178] sm:$0xff]
  %v63 = vld [vmem:[%s0 + $0x180] sm:$0xff]
  %v64 = vld [vmem:[%s0 + $0x188] sm:$0xff]
  %v65 = vld [vmem:[%s0 + $0x190] sm:$0xff]
  %v66 = vld [vmem:[%s0 + $0x198] sm:$0xff]
  %v67 = vld [vmem:[%s0 + $0x1a0] sm:$0xff]
  %v68 = vld [vmem:[%s0 + $0x1a8] sm:$0xff]
  %v69 = vld [vmem:[%s0 + $0x1b0] sm:$0xff]
  %v70 = vld [vmem:[%s0 + $0x1b8] sm:$0xff]
  %v71 = vld [vmem:[%s0 + $0x1c0] sm:$0xff]
  %v72 = vld [vmem:[%s0 + $0x1c8] sm:$0xff]
  %v73 = vld [vmem:[%s0 + $0x1d0] sm:$0xff]
  %v74 = vld [vmem:[%s0 + $0x1d8] sm:$0xff]
  %v75 = vld [vmem:[%s0 + $0x1e0] sm:$0xff]
  %v76 = vld [vmem:[%s0 + $0x1e8] sm:$0xff]
  %v77 = vld [vmem:[%s0 + $0x1f0] sm:$0xff]
  %v78 = vld [vmem:[%s0 + $0x1f8] sm:$0xff]
  %v79 = vld [vmem:[%s1] sm:$0xf]
  %v80 = vld [vmem:[%s1 + $0x4] sm:$0xf]
  %v81 = vld [vmem:[%s1 + $0x8] sm:$0xf]
  %v82 = vld [vmem:[%s1 + $0xc] sm:$0xf]
  %v83 = vld [vmem:[%s1 + $0x10] sm:$0xf]
  %v84 = vld [vmem:[%s1 + $0x14] sm:$0xf]
  %v85 = vld [vmem:[%s1 + $0x18] sm:$0xf]
  %v86 = vld [vmem:[%s1 + $0x1c] sm:$0xf]
  %v87 = vld [vmem:[%s1 + $0x20] sm:$0xf]
  %v88 = vld [vmem:[%s1 + $0x24] sm:$0xf]
  %v89 = vld [vmem:[%s1 + $0x28] sm:$0xf]
  %v90 = vld [vmem:[%s1 + $0x2c] sm:$0xf]
  %v91 = vld [vmem:[%s1 + $0x30] sm:$0xf]
  %v92 = vld [vmem:[%s1 + $0x34] sm:$0xf]
  %v93 = vld [vmem:[%s1 + $0x38] sm:$0xf]
  %v94 = vld [vmem:[%s1 + $0x3c] sm:$0xf]
  %v95 = vld [vmem:[%s1 + $0x40] sm:$0xf]
  %v96 = vld [vmem:[%s1 + $0x44] sm:$0xf]
  %v97 = vld [vmem:[%s1 + $0x48] sm:$0xf]
  %v98 = vld [vmem:[%s1 + $0x4c] sm:$0xf]
  %v99 = vld [vmem:[%s1 + $0x50] sm:$0xf]
  %v100 = vld [vmem:[%s1 + $0x54] sm:$0xf]
  %v101 = vld [vmem:[%s1 + $0x58] sm:$0xf]
  %v102 = vld [vmem:[%s1 + $0x5c] sm:$0xf]
  %v103 = vld [vmem:[%s1 + $0x60] sm:$0xf]
  %v104 = vld [vmem:[%s1 + $0x64] sm:$0xf]
  %v105 = vld [vmem:[%s1 + $0x68] sm:$0xf]
  %v106 = vld [vmem:[%s1 + $0x6c] sm:$0xf]
  %v107 = vld [vmem:[%s1 + $0x70] sm:$0xf]
  %v108 = vld [vmem:[%s1 + $0x74] sm:$0xf]
  %v109 = vld [vmem:[%s1 + $0x78] sm:$0xf]
  %v110 = vld [vmem:[%s1 + $0x7c] sm:$0xf]
  %v111 = vld [vmem:[%s2] sm:$0x1]
  %v113 = vlaneseq
  %v114 = vshrl.u32 %v113, 7
  %v115 = vsub.s32 0, %v114
  %v116 = vrot.slane %v111, %v115
  %v182 = vunpack.c.l.b16 %v15
  %v183 = vunpack.c.h.b16 %v15
  %v184 = vunpack.c.l.b16 %v16
  %v185 = vunpack.c.h.b16 %v16
  %v186 = vunpack.c.l.b16 %v17
  %v187 = vunpack.c.h.b16 %v17
  %v188 = vunpack.c.l.b16 %v18
  %v189 = vunpack.c.h.b16 %v18
  %v190 = vunpack.c.l.b16 %v19
  %v191 = vunpack.c.h.b16 %v19
  %v192 = vunpack.c.l.b16 %v20
  %v193 = vunpack.c.h.b16 %v20
  %v194 = vunpack.c.l.b16 %v21
  %v195 = vunpack.c.h.b16 %v21
  %v196 = vunpack.c.l.b16 %v22
  %v197 = vunpack.c.h.b16 %v22
  %v198 = vunpack.c.l.b16 %v23
  %v199 = vunpack.c.h.b16 %v23
  %v200 = vunpack.c.l.b16 %v24
  %v201 = vunpack.c.h.b16 %v24
  %v202 = vunpack.c.l.b16 %v25
  %v203 = vunpack.c.h.b16 %v25
  %v204 = vunpack.c.l.b16 %v26
  %v205 = vunpack.c.h.b16 %v26
  %v206 = vunpack.c.l.b16 %v27
  %v207 = vunpack.c.h.b16 %v27
  %v208 = vunpack.c.l.b16 %v28
  %v209 = vunpack.c.h.b16 %v28
  %v210 = vunpack.c.l.b16 %v29
  %v211 = vunpack.c.h.b16 %v29
  %v212 = vunpack.c.l.b16 %v30
  %v213 = vunpack.c.h.b16 %v30
  %v214 = vunpack.c.l.b16 %v31
  %v215 = vunpack.c.h.b16 %v31
  %v216 = vunpack.c.l.b16 %v32
  %v217 = vunpack.c.h.b16 %v32
  %v218 = vunpack.c.l.b16 %v33
  %v219 = vunpack.c.h.b16 %v33
  %v220 = vunpack.c.l.b16 %v34
  %v221 = vunpack.c.h.b16 %v34
  %v222 = vunpack.c.l.b16 %v35
  %v223 = vunpack.c.h.b16 %v35
  %v224 = vunpack.c.l.b16 %v36
  %v225 = vunpack.c.h.b16 %v36
  %v226 = vunpack.c.l.b16 %v37
  %v227 = vunpack.c.h.b16 %v37
  %v228 = vunpack.c.l.b16 %v38
  %v229 = vunpack.c.h.b16 %v38
  %v230 = vunpack.c.l.b16 %v39
  %v231 = vunpack.c.h.b16 %v39
  %v232 = vunpack.c.l.b16 %v40
  %v233 = vunpack.c.h.b16 %v40
  %v234 = vunpack.c.l.b16 %v41
  %v235 = vunpack.c.h.b16 %v41
  %v236 = vunpack.c.l.b16 %v42
  %v237 = vunpack.c.h.b16 %v42
  %v238 = vunpack.c.l.b16 %v43
  %v239 = vunpack.c.h.b16 %v43
  %v240 = vunpack.c.l.b16 %v44
  %v241 = vunpack.c.h.b16 %v44
  %v242 = vunpack.c.l.b16 %v45
  %v243 = vunpack.c.h.b16 %v45
  %v244 = vunpack.c.l.b16 %v46
  %v245 = vunpack.c.h.b16 %v46
  %v246 = vunpack.c.l.b16 %v47
  %v247 = vunpack.c.h.b16 %v47
  %v248 = vunpack.c.l.b16 %v48
  %v249 = vunpack.c.h.b16 %v48
  %v250 = vunpack.c.l.b16 %v49
  %v251 = vunpack.c.h.b16 %v49
  %v252 = vunpack.c.l.b16 %v50
  %v253 = vunpack.c.h.b16 %v50
  %v254 = vunpack.c.l.b16 %v51
  %v255 = vunpack.c.h.b16 %v51
  %v256 = vunpack.c.l.b16 %v52
  %v257 = vunpack.c.h.b16 %v52
  %v258 = vunpack.c.l.b16 %v53
  %v259 = vunpack.c.h.b16 %v53
  %v260 = vunpack.c.l.b16 %v54
  %v261 = vunpack.c.h.b16 %v54
  %v262 = vunpack.c.l.b16 %v55
  %v263 = vunpack.c.h.b16 %v55
  %v264 = vunpack.c.l.b16 %v56
  %v265 = vunpack.c.h.b16 %v56
  %v266 = vunpack.c.l.b16 %v57
  %v267 = vunpack.c.h.b16 %v57
  %v268 = vunpack.c.l.b16 %v58
  %v269 = vunpack.c.h.b16 %v58
  %v270 = vunpack.c.l.b16 %v59
  %v271 = vunpack.c.h.b16 %v59
  %v272 = vunpack.c.l.b16 %v60
  %v273 = vunpack.c.h.b16 %v60
  %v274 = vunpack.c.l.b16 %v61
  %v275 = vunpack.c.h.b16 %v61
  %v276 = vunpack.c.l.b16 %v62
  %v277 = vunpack.c.h.b16 %v62
  %v278 = vunpack.c.l.b16 %v63
  %v279 = vunpack.c.h.b16 %v63
  %v280 = vunpack.c.l.b16 %v64
  %v281 = vunpack.c.h.b16 %v64
  %v282 = vunpack.c.l.b16 %v65
  %v283 = vunpack.c.h.b16 %v65
  %v284 = vunpack.c.l.b16 %v66
  %v285 = vunpack.c.h.b16 %v66
  %v286 = vunpack.c.l.b16 %v67
  %v287 = vunpack.c.h.b16 %v67
  %v288 = vunpack.c.l.b16 %v68
  %v289 = vunpack.c.h.b16 %v68
  %v290 = vunpack.c.l.b16 %v69
  %v291 = vunpack.c.h.b16 %v69
  %v292 = vunpack.c.l.b16 %v70
  %v293 = vunpack.c.h.b16 %v70
  %v294 = vunpack.c.l.b16 %v71
  %v295 = vunpack.c.h.b16 %v71
  %v296 = vunpack.c.l.b16 %v72
  %v297 = vunpack.c.h.b16 %v72
  %v298 = vunpack.c.l.b16 %v73
  %v299 = vunpack.c.h.b16 %v73
  %v300 = vunpack.c.l.b16 %v74
  %v301 = vunpack.c.h.b16 %v74
  %v302 = vunpack.c.l.b16 %v75
  %v303 = vunpack.c.h.b16 %v75
  %v304 = vunpack.c.l.b16 %v76
  %v305 = vunpack.c.h.b16 %v76
  %v306 = vunpack.c.l.b16 %v77
  %v307 = vunpack.c.h.b16 %v77
  %v308 = vunpack.c.l.b16 %v78
  %v309 = vunpack.c.h.b16 %v78
  %v310 = vpack.c.b16 %v184, %v182
  %v311 = vpack.c.b16 %v185, %v183
  %v312 = vpack.c.b16 %v188, %v186
  %v313 = vpack.c.b16 %v189, %v187
  %v314 = vpack.c.b16 %v192, %v190
  %v315 = vpack.c.b16 %v193, %v191
  %v316 = vpack.c.b16 %v196, %v194
  %v317 = vpack.c.b16 %v197, %v195
  %v318 = vpack.c.b16 %v200, %v198
  %v319 = vpack.c.b16 %v201, %v199
  %v320 = vpack.c.b16 %v204, %v202
  %v321 = vpack.c.b16 %v205, %v203
  %v322 = vpack.c.b16 %v208, %v206
  %v323 = vpack.c.b16 %v209, %v207
  %v324 = vpack.c.b16 %v212, %v210
  %v325 = vpack.c.b16 %v213, %v211
  %v326 = vpack.c.b16 %v216, %v214
  %v327 = vpack.c.b16 %v217, %v215
  %v328 = vpack.c.b16 %v220, %v218
  %v329 = vpack.c.b16 %v221, %v219
  %v330 = vpack.c.b16 %v224, %v222
  %v331 = vpack.c.b16 %v225, %v223
  %v332 = vpack.c.b16 %v228, %v226
  %v333 = vpack.c.b16 %v229, %v227
  %v334 = vpack.c.b16 %v232, %v230
  %v335 = vpack.c.b16 %v233, %v231
  %v336 = vpack.c.b16 %v236, %v234
  %v337 = vpack.c.b16 %v237, %v235
  %v338 = vpack.c.b16 %v240, %v238
  %v339 = vpack.c.b16 %v241, %v239
  %v340 = vpack.c.b16 %v244, %v242
  %v341 = vpack.c.b16 %v245, %v243
  %v342 = vpack.c.b16 %v248, %v246
  %v343 = vpack.c.b16 %v249, %v247
  %v344 = vpack.c.b16 %v252, %v250
  %v345 = vpack.c.b16 %v253, %v251
  %v346 = vpack.c.b16 %v256, %v254
  %v347 = vpack.c.b16 %v257, %v255
  %v348 = vpack.c.b16 %v260, %v258
  %v349 = vpack.c.b16 %v261, %v259
  %v350 = vpack.c.b16 %v264, %v262
  %v351 = vpack.c.b16 %v265, %v263
  %v352 = vpack.c.b16 %v268, %v266
  %v353 = vpack.c.b16 %v269, %v267
  %v354 = vpack.c.b16 %v272, %v270
  %v355 = vpack.c.b16 %v273, %v271
  %v356 = vpack.c.b16 %v276, %v274
  %v357 = vpack.c.b16 %v277, %v275
  %v358 = vpack.c.b16 %v280, %v278
  %v359 = vpack.c.b16 %v281, %v279
  %v360 = vpack.c.b16 %v284, %v282
  %v361 = vpack.c.b16 %v285, %v283
  %v362 = vpack.c.b16 %v288, %v286
  %v363 = vpack.c.b16 %v289, %v287
  %v364 = vpack.c.b16 %v292, %v290
  %v365 = vpack.c.b16 %v293, %v291
  %v366 = vpack.c.b16 %v296, %v294
  %v367 = vpack.c.b16 %v297, %v295
  %v368 = vpack.c.b16 %v300, %v298
  %v369 = vpack.c.b16 %v301, %v299
  %v370 = vpack.c.b16 %v304, %v302
  %v371 = vpack.c.b16 %v305, %v303
  %v372 = vpack.c.b16 %v308, %v306
  %v373 = vpack.c.b16 %v309, %v307
  %v470 = vunpack.c.l.b16 %v79
  %v471 = vunpack.c.l.b16 %v80
  %v472 = vunpack.c.l.b16 %v81
  %v473 = vunpack.c.l.b16 %v82
  %v474 = vunpack.c.l.b16 %v83
  %v475 = vunpack.c.l.b16 %v84
  %v476 = vunpack.c.l.b16 %v85
  %v477 = vunpack.c.l.b16 %v86
  %v478 = vunpack.c.l.b16 %v87
  %v479 = vunpack.c.l.b16 %v88
  %v480 = vunpack.c.l.b16 %v89
  %v481 = vunpack.c.l.b16 %v90
  %v482 = vunpack.c.l.b16 %v91
  %v483 = vunpack.c.l.b16 %v92
  %v484 = vunpack.c.l.b16 %v93
  %v485 = vunpack.c.l.b16 %v94
  %v486 = vunpack.c.l.b16 %v95
  %v487 = vunpack.c.l.b16 %v96
  %v488 = vunpack.c.l.b16 %v97
  %v489 = vunpack.c.l.b16 %v98
  %v490 = vunpack.c.l.b16 %v99
  %v491 = vunpack.c.l.b16 %v100
  %v492 = vunpack.c.l.b16 %v101
  %v493 = vunpack.c.l.b16 %v102
  %v494 = vunpack.c.l.b16 %v103
  %v495 = vunpack.c.l.b16 %v104
  %v496 = vunpack.c.l.b16 %v105
  %v497 = vunpack.c.l.b16 %v106
  %v498 = vunpack.c.l.b16 %v107
  %v499 = vunpack.c.l.b16 %v108
  %v500 = vunpack.c.l.b16 %v109
  %v501 = vunpack.c.l.b16 %v110
  %v502 = vpack.c.b16 %v471, %v470
  %v503 = vpack.c.b16 %v473, %v472
  %v504 = vpack.c.b16 %v475, %v474
  %v505 = vpack.c.b16 %v477, %v476
  %v506 = vpack.c.b16 %v479, %v478
  %v507 = vpack.c.b16 %v481, %v480
  %v508 = vpack.c.b16 %v483, %v482
  %v509 = vpack.c.b16 %v485, %v484
  %v510 = vpack.c.b16 %v487, %v486
  %v511 = vpack.c.b16 %v489, %v488
  %v512 = vpack.c.b16 %v491, %v490
  %v513 = vpack.c.b16 %v493, %v492
  %v514 = vpack.c.b16 %v495, %v494
  %v515 = vpack.c.b16 %v497, %v496
  %v516 = vpack.c.b16 %v499, %v498
  %v517 = vpack.c.b16 %v501, %v500
  %534 = vmatprep.subr.bf16.mxu0 0
  %535 = vmatpush1.bf16.msra.mxu0 %v502
  %536 = vmatprep.subr.bf16.mxu0 0
  %537 = vmatpush1.bf16.msra.mxu0 %v503
  %538 = vmatprep.subr.bf16.mxu0 0
  %539 = vmatpush1.bf16.msra.mxu0 %v504
  %540 = vmatprep.subr.bf16.mxu0 0
  %541 = vmatpush1.bf16.msra.mxu0 %v505
  %542 = vmatprep.subr.bf16.mxu0 0
  %543 = vmatpush1.bf16.msra.mxu0 %v506
  %544 = vmatprep.subr.bf16.mxu0 0
  %545 = vmatpush1.bf16.msra.mxu0 %v507
  %546 = vmatprep.subr.bf16.mxu0 0
  %547 = vmatpush1.bf16.msra.mxu0 %v508
  %548 = vmatprep.subr.bf16.mxu0 0
  %549 = vmatpush1.bf16.msra.mxu0 %v509
  %550 = vmatprep.subr.bf16.mxu0 0
  %551 = vmatpush1.bf16.msra.mxu0 %v510
  %552 = vmatprep.subr.bf16.mxu0 0
  %553 = vmatpush1.bf16.msra.mxu0 %v511
  %554 = vmatprep.subr.bf16.mxu0 0
  %555 = vmatpush1.bf16.msra.mxu0 %v512
  %556 = vmatprep.subr.bf16.mxu0 0
  %557 = vmatpush1.bf16.msra.mxu0 %v513
  %558 = vmatprep.subr.bf16.mxu0 0
  %559 = vmatpush1.bf16.msra.mxu0 %v514
  %560 = vmatprep.subr.bf16.mxu0 0
  %561 = vmatpush1.bf16.msra.mxu0 %v515
  %562 = vmatprep.subr.bf16.mxu0 0
  %563 = vmatpush1.bf16.msra.mxu0 %v516
  %564 = vmatprep.subr.bf16.mxu0 0
  %565 = vmatpush1.bf16.msra.mxu0 %v517
  %566 = vmatprep.mubr.bf16.mxu0 %v311
  %567 = vmatmul.mubr.bf16.gmra.mrb[0].mxu0 %v310
  %v568 = vpop.f32.mrb[0].mxu0
  %v569 = vadd.f32 %v116, %v568
  %v570 = vpop.f32.mrb[0].mxu0
  %v571 = vpop.f32.mrb[0].mxu0
  %v572 = vadd.f32 %v116, %v571
  %v573 = vpop.f32.mrb[0].mxu0
  %574 = vmatprep.mubr.bf16.mxu0 %v313
  %575 = vmatmul.mubr.bf16.gmra.mrb[0].mxu0 %v312
  %v576 = vpop.f32.mrb[0].mxu0
  %v577 = vadd.f32 %v116, %v576
  %v578 = vpop.f32.mrb[0].mxu0
  %v579 = vpop.f32.mrb[0].mxu0
  %v580 = vadd.f32 %v116, %v579
  %v581 = vpop.f32.mrb[0].mxu0
  %582 = vmatprep.mubr.bf16.mxu0 %v315
  %583 = vmatmul.mubr.bf16.gmra.mrb[0].mxu0 %v314
  %v584 = vpop.f32.mrb[0].mxu0
  %v585 = vadd.f32 %v116, %v584
  %v586 = vpop.f32.mrb[0].mxu0
  %v587 = vpop.f32.mrb[0].mxu0
  %v588 = vadd.f32 %v116, %v587
  %v589 = vpop.f32.mrb[0].mxu0
  %590 = vmatprep.mubr.bf16.mxu0 %v317
  %591 = vmatmul.mubr.bf16.gmra.mrb[0].mxu0 %v316
  %v592 = vpop.f32.mrb[0].mxu0
  %v593 = vadd.f32 %v116, %v592
  %v594 = vpop.f32.mrb[0].mxu0
  %v595 = vpop.f32.mrb[0].mxu0
  %v596 = vadd.f32 %v116, %v595
  %v597 = vpop.f32.mrb[0].mxu0
  %598 = vmatprep.mubr.bf16.mxu0 %v319
  %599 = vmatmul.mubr.bf16.gmra.mrb[0].mxu0 %v318
  %v600 = vpop.f32.mrb[0].mxu0
  %v601 = vadd.f32 %v116, %v600
  %v602 = vpop.f32.mrb[0].mxu0
  %v603 = vpop.f32.mrb[0].mxu0
  %v604 = vadd.f32 %v116, %v603
  %v605 = vpop.f32.mrb[0].mxu0
  %606 = vmatprep.mubr.bf16.mxu0 %v321
  %607 = vmatmul.mubr.bf16.gmra.mrb[0].mxu0 %v320
  %v608 = vpop.f32.mrb[0].mxu0
  %v609 = vadd.f32 %v116, %v608
  %v610 = vpop.f32.mrb[0].mxu0
  %v611 = vpop.f32.mrb[0].mxu0
  %v612 = vadd.f32 %v116, %v611
  %v613 = vpop.f32.mrb[0].mxu0
  %614 = vmatprep.mubr.bf16.mxu0 %v323
  %615 = vmatmul.mubr.bf16.gmra.mrb[0].mxu0 %v322
  %v616 = vpop.f32.mrb[0].mxu0
  %v617 = vadd.f32 %v116, %v616
  %v618 = vpop.f32.mrb[0].mxu0
  %v619 = vpop.f32.mrb[0].mxu0
  %v620 = vadd.f32 %v116, %v619
  %v621 = vpop.f32.mrb[0].mxu0
  %622 = vmatprep.mubr.bf16.mxu0 %v325
  %623 = vmatmul.mubr.bf16.gmra.mrb[0].mxu0 %v324
  %v624 = vpop.f32.mrb[0].mxu0
  %v625 = vadd.f32 %v116, %v624
  %v626 = vpop.f32.mrb[0].mxu0
  %v627 = vpop.f32.mrb[0].mxu0
  %v628 = vadd.f32 %v116, %v627
  %v629 = vpop.f32.mrb[0].mxu0
  %630 = vmatprep.mubr.bf16.mxu0 %v327
  %631 = vmatmul.mubr.bf16.gmra.mrb[0].mxu0 %v326
  %v632 = vpop.f32.mrb[0].mxu0
  %v633 = vadd.f32 %v116, %v632
  %v634 = vpop.f32.mrb[0].mxu0
  %v635 = vpop.f32.mrb[0].mxu0
  %v636 = vadd.f32 %v116, %v635
  %v637 = vpop.f32.mrb[0].mxu0
  %638 = vmatprep.mubr.bf16.mxu0 %v329
  %639 = vmatmul.mubr.bf16.gmra.mrb[0].mxu0 %v328
  %v640 = vpop.f32.mrb[0].mxu0
  %v641 = vadd.f32 %v116, %v640
  %v642 = vpop.f32.mrb[0].mxu0
  %v643 = vpop.f32.mrb[0].mxu0
  %v644 = vadd.f32 %v116, %v643
  %v645 = vpop.f32.mrb[0].mxu0
  %646 = vmatprep.mubr.bf16.mxu0 %v331
  %647 = vmatmul.mubr.bf16.gmra.mrb[0].mxu0 %v330
  %v648 = vpop.f32.mrb[0].mxu0
  %v649 = vadd.f32 %v116, %v648
  %v650 = vpop.f32.mrb[0].mxu0
  %v651 = vpop.f32.mrb[0].mxu0
  %v652 = vadd.f32 %v116, %v651
  %v653 = vpop.f32.mrb[0].mxu0
  %654 = vmatprep.mubr.bf16.mxu0 %v333
  %655 = vmatmul.mubr.bf16.gmra.mrb[0].mxu0 %v332
  %v656 = vpop.f32.mrb[0].mxu0
  %v657 = vadd.f32 %v116, %v656
  %v658 = vpop.f32.mrb[0].mxu0
  %v659 = vpop.f32.mrb[0].mxu0
  %v660 = vadd.f32 %v116, %v659
  %v661 = vpop.f32.mrb[0].mxu0
  %662 = vmatprep.mubr.bf16.mxu0 %v335
  %663 = vmatmul.mubr.bf16.gmra.mrb[0].mxu0 %v334
  %v664 = vpop.f32.mrb[0].mxu0
  %v665 = vadd.f32 %v116, %v664
  %v666 = vpop.f32.mrb[0].mxu0
  %v667 = vpop.f32.mrb[0].mxu0
  %v668 = vadd.f32 %v116, %v667
  %v669 = vpop.f32.mrb[0].mxu0
  %670 = vmatprep.mubr.bf16.mxu0 %v337
  %671 = vmatmul.mubr.bf16.gmra.mrb[0].mxu0 %v336
  %v672 = vpop.f32.mrb[0].mxu0
  %v673 = vadd.f32 %v116, %v672
  %v674 = vpop.f32.mrb[0].mxu0
  %v675 = vpop.f32.mrb[0].mxu0
  %v676 = vadd.f32 %v116, %v675
  %v677 = vpop.f32.mrb[0].mxu0
  %678 = vmatprep.mubr.bf16.mxu0 %v339
  %679 = vmatmul.mubr.bf16.gmra.mrb[0].mxu0 %v338
  %v680 = vpop.f32.mrb[0].mxu0
  %v681 = vadd.f32 %v116, %v680
  %v682 = vpop.f32.mrb[0].mxu0
  %v683 = vpop.f32.mrb[0].mxu0
  %v684 = vadd.f32 %v116, %v683
  %v685 = vpop.f32.mrb[0].mxu0
  %686 = vmatprep.mubr.bf16.mxu0 %v341
  %687 = vmatmul.mubr.bf16.gmra.mrb[0].mxu0 %v340
  %v688 = vpop.f32.mrb[0].mxu0
  %v689 = vadd.f32 %v116, %v688
  %v690 = vpop.f32.mrb[0].mxu0
  %v691 = vpop.f32.mrb[0].mxu0
  %v692 = vadd.f32 %v116, %v691
  %v693 = vpop.f32.mrb[0].mxu0
  %694 = vmatprep.mubr.bf16.mxu0 %v343
  %695 = vmatmul.mubr.bf16.gmra.mrb[0].mxu0 %v342
  %v696 = vpop.f32.mrb[0].mxu0
  %v697 = vadd.f32 %v116, %v696
  %v698 = vpop.f32.mrb[0].mxu0
  %v699 = vpop.f32.mrb[0].mxu0
  %v700 = vadd.f32 %v116, %v699
  %v701 = vpop.f32.mrb[0].mxu0
  %702 = vmatprep.mubr.bf16.mxu0 %v345
  %703 = vmatmul.mubr.bf16.gmra.mrb[0].mxu0 %v344
  %v704 = vpop.f32.mrb[0].mxu0
  %v705 = vadd.f32 %v116, %v704
  %v706 = vpop.f32.mrb[0].mxu0
  %v707 = vpop.f32.mrb[0].mxu0
  %v708 = vadd.f32 %v116, %v707
  %v709 = vpop.f32.mrb[0].mxu0
  %710 = vmatprep.mubr.bf16.mxu0 %v347
  %711 = vmatmul.mubr.bf16.gmra.mrb[0].mxu0 %v346
  %v712 = vpop.f32.mrb[0].mxu0
  %v713 = vadd.f32 %v116, %v712
  %v714 = vpop.f32.mrb[0].mxu0
  %v715 = vpop.f32.mrb[0].mxu0
  %v716 = vadd.f32 %v116, %v715
  %v717 = vpop.f32.mrb[0].mxu0
  %718 = vmatprep.mubr.bf16.mxu0 %v349
  %719 = vmatmul.mubr.bf16.gmra.mrb[0].mxu0 %v348
  %v720 = vpop.f32.mrb[0].mxu0
  %v721 = vadd.f32 %v116, %v720
  %v722 = vpop.f32.mrb[0].mxu0
  %v723 = vpop.f32.mrb[0].mxu0
  %v724 = vadd.f32 %v116, %v723
  %v725 = vpop.f32.mrb[0].mxu0
  %726 = vmatprep.mubr.bf16.mxu0 %v351
  %727 = vmatmul.mubr.bf16.gmra.mrb[0].mxu0 %v350
  %v728 = vpop.f32.mrb[0].mxu0
  %v729 = vadd.f32 %v116, %v728
  %v730 = vpop.f32.mrb[0].mxu0
  %v731 = vpop.f32.mrb[0].mxu0
  %v732 = vadd.f32 %v116, %v731
  %v733 = vpop.f32.mrb[0].mxu0
  %734 = vmatprep.mubr.bf16.mxu0 %v353
  %735 = vmatmul.mubr.bf16.gmra.mrb[0].mxu0 %v352
  %v736 = vpop.f32.mrb[0].mxu0
  %v737 = vadd.f32 %v116, %v736
  %v738 = vpop.f32.mrb[0].mxu0
  %v739 = vpop.f32.mrb[0].mxu0
  %v740 = vadd.f32 %v116, %v739
  %v741 = vpop.f32.mrb[0].mxu0
  %742 = vmatprep.mubr.bf16.mxu0 %v355
  %743 = vmatmul.mubr.bf16.gmra.mrb[0].mxu0 %v354
  %v744 = vpop.f32.mrb[0].mxu0
  %v745 = vadd.f32 %v116, %v744
  %v746 = vpop.f32.mrb[0].mxu0
  %v747 = vpop.f32.mrb[0].mxu0
  %v748 = vadd.f32 %v116, %v747
  %v749 = vpop.f32.mrb[0].mxu0
  %750 = vmatprep.mubr.bf16.mxu0 %v357
  %751 = vmatmul.mubr.bf16.gmra.mrb[0].mxu0 %v356
  %v752 = vpop.f32.mrb[0].mxu0
  %v753 = vadd.f32 %v116, %v752
  %v754 = vpop.f32.mrb[0].mxu0
  %v755 = vpop.f32.mrb[0].mxu0
  %v756 = vadd.f32 %v116, %v755
  %v757 = vpop.f32.mrb[0].mxu0
  %758 = vmatprep.mubr.bf16.mxu0 %v359
  %759 = vmatmul.mubr.bf16.gmra.mrb[0].mxu0 %v358
  %v760 = vpop.f32.mrb[0].mxu0
  %v761 = vadd.f32 %v116, %v760
  %v762 = vpop.f32.mrb[0].mxu0
  %v763 = vpop.f32.mrb[0].mxu0
  %v764 = vadd.f32 %v116, %v763
  %v765 = vpop.f32.mrb[0].mxu0
  %766 = vmatprep.mubr.bf16.mxu0 %v361
  %767 = vmatmul.mubr.bf16.gmra.mrb[0].mxu0 %v360
  %v768 = vpop.f32.mrb[0].mxu0
  %v769 = vadd.f32 %v116, %v768
  %v770 = vpop.f32.mrb[0].mxu0
  %v771 = vpop.f32.mrb[0].mxu0
  %v772 = vadd.f32 %v116, %v771
  %v773 = vpop.f32.mrb[0].mxu0
  %774 = vmatprep.mubr.bf16.mxu0 %v363
  %775 = vmatmul.mubr.bf16.gmra.mrb[0].mxu0 %v362
  %v776 = vpop.f32.mrb[0].mxu0
  %v777 = vadd.f32 %v116, %v776
  %v778 = vpop.f32.mrb[0].mxu0
  %v779 = vpop.f32.mrb[0].mxu0
  %v780 = vadd.f32 %v116, %v779
  %v781 = vpop.f32.mrb[0].mxu0
  %782 = vmatprep.mubr.bf16.mxu0 %v365
  %783 = vmatmul.mubr.bf16.gmra.mrb[0].mxu0 %v364
  %v784 = vpop.f32.mrb[0].mxu0
  %v785 = vadd.f32 %v116, %v784
  %v786 = vpop.f32.mrb[0].mxu0
  %v787 = vpop.f32.mrb[0].mxu0
  %v788 = vadd.f32 %v116, %v787
  %v789 = vpop.f32.mrb[0].mxu0
  %790 = vmatprep.mubr.bf16.mxu0 %v367
  %791 = vmatmul.mubr.bf16.gmra.mrb[0].mxu0 %v366
  %v792 = vpop.f32.mrb[0].mxu0
  %v793 = vadd.f32 %v116, %v792
  %v794 = vpop.f32.mrb[0].mxu0
  %v795 = vpop.f32.mrb[0].mxu0
  %v796 = vadd.f32 %v116, %v795
  %v797 = vpop.f32.mrb[0].mxu0
  %798 = vmatprep.mubr.bf16.mxu0 %v369
  %799 = vmatmul.mubr.bf16.gmra.mrb[0].mxu0 %v368
  %v800 = vpop.f32.mrb[0].mxu0
  %v801 = vadd.f32 %v116, %v800
  %v802 = vpop.f32.mrb[0].mxu0
  %v803 = vpop.f32.mrb[0].mxu0
  %v804 = vadd.f32 %v116, %v803
  %v805 = vpop.f32.mrb[0].mxu0
  %806 = vmatprep.mubr.bf16.mxu0 %v371
  %807 = vmatmul.mubr.bf16.gmra.mrb[0].mxu0 %v370
  %v808 = vpop.f32.mrb[0].mxu0
  %v809 = vadd.f32 %v116, %v808
  %v810 = vpop.f32.mrb[0].mxu0
  %v811 = vpop.f32.mrb[0].mxu0
  %v812 = vadd.f32 %v116, %v811
  %v813 = vpop.f32.mrb[0].mxu0
  %814 = vmatprep.mubr.bf16.mxu0 %v373
  %815 = vmatmul.mubr.bf16.gmra.mrb[0].mxu0 %v372
  %v816 = vpop.f32.mrb[0].mxu0
  %v817 = vadd.f32 %v116, %v816
  %v818 = vpop.f32.mrb[0].mxu0
  %v819 = vpop.f32.mrb[0].mxu0
  %v820 = vadd.f32 %v116, %v819
  %v821 = vpop.f32.mrb[0].mxu0
  %822 = vdwg.mxu0
  %v823 = vmax.f32 %v569, 0.0
  %v824 = vmax.f32 %v572, 0.0
  %v825 = vmax.f32 %v577, 0.0
  %v826 = vmax.f32 %v580, 0.0
  %v827 = vmax.f32 %v585, 0.0
  %v828 = vmax.f32 %v588, 0.0
  %v829 = vmax.f32 %v593, 0.0
  %v830 = vmax.f32 %v596, 0.0
  %v831 = vmax.f32 %v601, 0.0
  %v832 = vmax.f32 %v604, 0.0
  %v833 = vmax.f32 %v609, 0.0
  %v834 = vmax.f32 %v612, 0.0
  %v835 = vmax.f32 %v617, 0.0
  %v836 = vmax.f32 %v620, 0.0
  %v837 = vmax.f32 %v625, 0.0
  %v838 = vmax.f32 %v628, 0.0
  %v839 = vmax.f32 %v633, 0.0
  %v840 = vmax.f32 %v636, 0.0
  %v841 = vmax.f32 %v641, 0.0
  %v842 = vmax.f32 %v644, 0.0
  %v843 = vmax.f32 %v649, 0.0
  %v844 = vmax.f32 %v652, 0.0
  %v845 = vmax.f32 %v657, 0.0
  %v846 = vmax.f32 %v660, 0.0
  %v847 = vmax.f32 %v665, 0.0
  %v848 = vmax.f32 %v668, 0.0
  %v849 = vmax.f32 %v673, 0.0
  %v850 = vmax.f32 %v676, 0.0
  %v851 = vmax.f32 %v681, 0.0
  %v852 = vmax.f32 %v684, 0.0
  %v853 = vmax.f32 %v689, 0.0
  %v854 = vmax.f32 %v692, 0.0
  %v855 = vmax.f32 %v697, 0.0
  %v856 = vmax.f32 %v700, 0.0
  %v857 = vmax.f32 %v705, 0.0
  %v858 = vmax.f32 %v708, 0.0
  %v859 = vmax.f32 %v713, 0.0
  %v860 = vmax.f32 %v716, 0.0
  %v861 = vmax.f32 %v721, 0.0
  %v862 = vmax.f32 %v724, 0.0
  %v863 = vmax.f32 %v729, 0.0
  %v864 = vmax.f32 %v732, 0.0
  %v865 = vmax.f32 %v737, 0.0
  %v866 = vmax.f32 %v740, 0.0
  %v867 = vmax.f32 %v745, 0.0
  %v868 = vmax.f32 %v748, 0.0
  %v869 = vmax.f32 %v753, 0.0
  %v870 = vmax.f32 %v756, 0.0
  %v871 = vmax.f32 %v761, 0.0
  %v872 = vmax.f32 %v764, 0.0
  %v873 = vmax.f32 %v769, 0.0
  %v874 = vmax.f32 %v772, 0.0
  %v875 = vmax.f32 %v777, 0.0
  %v876 = vmax.f32 %v780, 0.0
  %v877 = vmax.f32 %v785, 0.0
  %v878 = vmax.f32 %v788, 0.0
  %v879 = vmax.f32 %v793, 0.0
  %v880 = vmax.f32 %v796, 0.0
  %v881 = vmax.f32 %v801, 0.0
  %v882 = vmax.f32 %v804, 0.0
  %v883 = vmax.f32 %v809, 0.0
  %v884 = vmax.f32 %v812, 0.0
  %v885 = vmax.f32 %v817, 0.0
  %v886 = vmax.f32 %v820, 0.0
  %v887 = vpack.c.bf16 %v824, %v823
  %v888 = vpack.c.bf16 %v826, %v825
  %v889 = vpack.c.bf16 %v828, %v827
  %v890 = vpack.c.bf16 %v830, %v829
  %v891 = vpack.c.bf16 %v832, %v831
  %v892 = vpack.c.bf16 %v834, %v833
  %v893 = vpack.c.bf16 %v836, %v835
  %v894 = vpack.c.bf16 %v838, %v837
  %v895 = vpack.c.bf16 %v840, %v839
  %v896 = vpack.c.bf16 %v842, %v841
  %v897 = vpack.c.bf16 %v844, %v843
  %v898 = vpack.c.bf16 %v846, %v845
  %v899 = vpack.c.bf16 %v848, %v847
  %v900 = vpack.c.bf16 %v850, %v849
  %v901 = vpack.c.bf16 %v852, %v851
  %v902 = vpack.c.bf16 %v854, %v853
  %v903 = vpack.c.bf16 %v856, %v855
  %v904 = vpack.c.bf16 %v858, %v857
  %v905 = vpack.c.bf16 %v860, %v859
  %v906 = vpack.c.bf16 %v862, %v861
  %v907 = vpack.c.bf16 %v864, %v863
  %v908 = vpack.c.bf16 %v866, %v865
  %v909 = vpack.c.bf16 %v868, %v867
  %v910 = vpack.c.bf16 %v870, %v869
  %v911 = vpack.c.bf16 %v872, %v871
  %v912 = vpack.c.bf16 %v874, %v873
  %v913 = vpack.c.bf16 %v876, %v875
  %v914 = vpack.c.bf16 %v878, %v877
  %v915 = vpack.c.bf16 %v880, %v879
  %v916 = vpack.c.bf16 %v882, %v881
  %v917 = vpack.c.bf16 %v884, %v883
  %v918 = vpack.c.bf16 %v886, %v885
  %v951 = vunpack.c.l.b16 %v887
  %v952 = vunpack.c.h.b16 %v887
  %v953 = vunpack.c.l.b16 %v888
  %v954 = vunpack.c.h.b16 %v888
  %v955 = vunpack.c.l.b16 %v889
  %v956 = vunpack.c.h.b16 %v889
  %v957 = vunpack.c.l.b16 %v890
  %v958 = vunpack.c.h.b16 %v890
  %v959 = vunpack.c.l.b16 %v891
  %v960 = vunpack.c.h.b16 %v891
  %v961 = vunpack.c.l.b16 %v892
  %v962 = vunpack.c.h.b16 %v892
  %v963 = vunpack.c.l.b16 %v893
  %v964 = vunpack.c.h.b16 %v893
  %v965 = vunpack.c.l.b16 %v894
  %v966 = vunpack.c.h.b16 %v894
  %v967 = vunpack.c.l.b16 %v895
  %v968 = vunpack.c.h.b16 %v895
  %v969 = vunpack.c.l.b16 %v896
  %v970 = vunpack.c.h.b16 %v896
  %v971 = vunpack.c.l.b16 %v897
  %v972 = vunpack.c.h.b16 %v897
  %v973 = vunpack.c.l.b16 %v898
  %v974 = vunpack.c.h.b16 %v898
  %v975 = vunpack.c.l.b16 %v899
  %v976 = vunpack.c.h.b16 %v899
  %v977 = vunpack.c.l.b16 %v900
  %v978 = vunpack.c.h.b16 %v900
  %v979 = vunpack.c.l.b16 %v901
  %v980 = vunpack.c.h.b16 %v901
  %v981 = vunpack.c.l.b16 %v902
  %v982 = vunpack.c.h.b16 %v902
  %v983 = vunpack.c.l.b16 %v903
  %v984 = vunpack.c.h.b16 %v903
  %v985 = vunpack.c.l.b16 %v904
  %v986 = vunpack.c.h.b16 %v904
  %v987 = vunpack.c.l.b16 %v905
  %v988 = vunpack.c.h.b16 %v905
  %v989 = vunpack.c.l.b16 %v906
  %v990 = vunpack.c.h.b16 %v906
  %v991 = vunpack.c.l.b16 %v907
  %v992 = vunpack.c.h.b16 %v907
  %v993 = vunpack.c.l.b16 %v908
  %v994 = vunpack.c.h.b16 %v908
  %v995 = vunpack.c.l.b16 %v909
  %v996 = vunpack.c.h.b16 %v909
  %v997 = vunpack.c.l.b16 %v910
  %v998 = vunpack.c.h.b16 %v910
  %v999 = vunpack.c.l.b16 %v911
  %v1000 = vunpack.c.h.b16 %v911
  %v1001 = vunpack.c.l.b16 %v912
  %v1002 = vunpack.c.h.b16 %v912
  %v1003 = vunpack.c.l.b16 %v913
  %v1004 = vunpack.c.h.b16 %v913
  %v1005 = vunpack.c.l.b16 %v914
  %v1006 = vunpack.c.h.b16 %v914
  %v1007 = vunpack.c.l.b16 %v915
  %v1008 = vunpack.c.h.b16 %v915
  %v1009 = vunpack.c.l.b16 %v916
  %v1010 = vunpack.c.h.b16 %v916
  %v1011 = vunpack.c.l.b16 %v917
  %v1012 = vunpack.c.h.b16 %v917
  %v1013 = vunpack.c.l.b16 %v918
  %v1014 = vunpack.c.h.b16 %v918
  %v1015 = vpack.c.b16 %v951, %v951
  %v1016 = vpack.c.b16 %v952, %v952
  %v1017 = vpack.c.b16 %v953, %v953
  %v1018 = vpack.c.b16 %v954, %v954
  %v1019 = vpack.c.b16 %v955, %v955
  %v1020 = vpack.c.b16 %v956, %v956
  %v1021 = vpack.c.b16 %v957, %v957
  %v1022 = vpack.c.b16 %v958, %v958
  %v1023 = vpack.c.b16 %v959, %v959
  %v1024 = vpack.c.b16 %v960, %v960
  %v1025 = vpack.c.b16 %v961, %v961
  %v1026 = vpack.c.b16 %v962, %v962
  %v1027 = vpack.c.b16 %v963, %v963
  %v1028 = vpack.c.b16 %v964, %v964
  %v1029 = vpack.c.b16 %v965, %v965
  %v1030 = vpack.c.b16 %v966, %v966
  %v1031 = vpack.c.b16 %v967, %v967
  %v1032 = vpack.c.b16 %v968, %v968
  %v1033 = vpack.c.b16 %v969, %v969
  %v1034 = vpack.c.b16 %v970, %v970
  %v1035 = vpack.c.b16 %v971, %v971
  %v1036 = vpack.c.b16 %v972, %v972
  %v1037 = vpack.c.b16 %v973, %v973
  %v1038 = vpack.c.b16 %v974, %v974
  %v1039 = vpack.c.b16 %v975, %v975
  %v1040 = vpack.c.b16 %v976, %v976
  %v1041 = vpack.c.b16 %v977, %v977
  %v1042 = vpack.c.b16 %v978, %v978
  %v1043 = vpack.c.b16 %v979, %v979
  %v1044 = vpack.c.b16 %v980, %v980
  %v1045 = vpack.c.b16 %v981, %v981
  %v1046 = vpack.c.b16 %v982, %v982
  %v1047 = vpack.c.b16 %v983, %v983
  %v1048 = vpack.c.b16 %v984, %v984
  %v1049 = vpack.c.b16 %v985, %v985
  %v1050 = vpack.c.b16 %v986, %v986
  %v1051 = vpack.c.b16 %v987, %v987
  %v1052 = vpack.c.b16 %v988, %v988
  %v1053 = vpack.c.b16 %v989, %v989
  %v1054 = vpack.c.b16 %v990, %v990
  %v1055 = vpack.c.b16 %v991, %v991
  %v1056 = vpack.c.b16 %v992, %v992
  %v1057 = vpack.c.b16 %v993, %v993
  %v1058 = vpack.c.b16 %v994, %v994
  %v1059 = vpack.c.b16 %v995, %v995
  %v1060 = vpack.c.b16 %v996, %v996
  %v1061 = vpack.c.b16 %v997, %v997
  %v1062 = vpack.c.b16 %v998, %v998
  %v1063 = vpack.c.b16 %v999, %v999
  %v1064 = vpack.c.b16 %v1000, %v1000
  %v1065 = vpack.c.b16 %v1001, %v1001
  %v1066 = vpack.c.b16 %v1002, %v1002
  %v1067 = vpack.c.b16 %v1003, %v1003
  %v1068 = vpack.c.b16 %v1004, %v1004
  %v1069 = vpack.c.b16 %v1005, %v1005
  %v1070 = vpack.c.b16 %v1006, %v1006
  %v1071 = vpack.c.b16 %v1007, %v1007
  %v1072 = vpack.c.b16 %v1008, %v1008
  %v1073 = vpack.c.b16 %v1009, %v1009
  %v1074 = vpack.c.b16 %v1010, %v1010
  %v1075 = vpack.c.b16 %v1011, %v1011
  %v1076 = vpack.c.b16 %v1012, %v1012
  %v1077 = vpack.c.b16 %v1013, %v1013
  %v1078 = vpack.c.b16 %v1014, %v1014
  %1143 = vst [vmem:[%s3] sm:$0xf] %v1015
  %1144 = vst [vmem:[%s3 + $0x4] sm:$0xf] %v1016
  %1145 = vst [vmem:[%s3 + $0x8] sm:$0xf] %v1017
  %1146 = vst [vmem:[%s3 + $0xc] sm:$0xf] %v1018
  %1147 = vst [vmem:[%s3 + $0x10] sm:$0xf] %v1019
  %1148 = vst [vmem:[%s3 + $0x14] sm:$0xf] %v1020
  %1149 = vst [vmem:[%s3 + $0x18] sm:$0xf] %v1021
  %1150 = vst [vmem:[%s3 + $0x1c] sm:$0xf] %v1022
  %1151 = vst [vmem:[%s3 + $0x20] sm:$0xf] %v1023
  %1152 = vst [vmem:[%s3 + $0x24] sm:$0xf] %v1024
  %1153 = vst [vmem:[%s3 + $0x28] sm:$0xf] %v1025
  %1154 = vst [vmem:[%s3 + $0x2c] sm:$0xf] %v1026
  %1155 = vst [vmem:[%s3 + $0x30] sm:$0xf] %v1027
  %1156 = vst [vmem:[%s3 + $0x34] sm:$0xf] %v1028
  %1157 = vst [vmem:[%s3 + $0x38] sm:$0xf] %v1029
  %1158 = vst [vmem:[%s3 + $0x3c] sm:$0xf] %v1030
  %1159 = vst [vmem:[%s3 + $0x40] sm:$0xf] %v1031
  %1160 = vst [vmem:[%s3 + $0x44] sm:$0xf] %v1032
  %1161 = vst [vmem:[%s3 + $0x48] sm:$0xf] %v1033
  %1162 = vst [vmem:[%s3 + $0x4c] sm:$0xf] %v1034
  %1163 = vst [vmem:[%s3 + $0x50] sm:$0xf] %v1035
  %1164 = vst [vmem:[%s3 + $0x54] sm:$0xf] %v1036
  %1165 = vst [vmem:[%s3 + $0x58] sm:$0xf] %v1037
  %1166 = vst [vmem:[%s3 + $0x5c] sm:$0xf] %v1038
  %1167 = vst [vmem:[%s3 + $0x60] sm:$0xf] %v1039
  %1168 = vst [vmem:[%s3 + $0x64] sm:$0xf] %v1040
  %1169 = vst [vmem:[%s3 + $0x68] sm:$0xf] %v1041
  %1170 = vst [vmem:[%s3 + $0x6c] sm:$0xf] %v1042
  %1171 = vst [vmem:[%s3 + $0x70] sm:$0xf] %v1043
  %1172 = vst [vmem:[%s3 + $0x74] sm:$0xf] %v1044
  %1173 = vst [vmem:[%s3 + $0x78] sm:$0xf] %v1045
  %1174 = vst [vmem:[%s3 + $0x7c] sm:$0xf] %v1046
  %1175 = vst [vmem:[%s3 + $0x80] sm:$0xf] %v1047
  %1176 = vst [vmem:[%s3 + $0x84] sm:$0xf] %v1048
  %1177 = vst [vmem:[%s3 + $0x88] sm:$0xf] %v1049
  %1178 = vst [vmem:[%s3 + $0x8c] sm:$0xf] %v1050
  %1179 = vst [vmem:[%s3 + $0x90] sm:$0xf] %v1051
  %1180 = vst [vmem:[%s3 + $0x94] sm:$0xf] %v1052
  %1181 = vst [vmem:[%s3 + $0x98] sm:$0xf] %v1053
  %1182 = vst [vmem:[%s3 + $0x9c] sm:$0xf] %v1054
  %1183 = vst [vmem:[%s3 + $0xa0] sm:$0xf] %v1055
  %1184 = vst [vmem:[%s3 + $0xa4] sm:$0xf] %v1056
  %1185 = vst [vmem:[%s3 + $0xa8] sm:$0xf] %v1057
  %1186 = vst [vmem:[%s3 + $0xac] sm:$0xf] %v1058
  %1187 = vst [vmem:[%s3 + $0xb0] sm:$0xf] %v1059
  %1188 = vst [vmem:[%s3 + $0xb4] sm:$0xf] %v1060
  %1189 = vst [vmem:[%s3 + $0xb8] sm:$0xf] %v1061
  %1190 = vst [vmem:[%s3 + $0xbc] sm:$0xf] %v1062
  %1191 = vst [vmem:[%s3 + $0xc0] sm:$0xf] %v1063
  %1192 = vst [vmem:[%s3 + $0xc4] sm:$0xf] %v1064
  %1193 = vst [vmem:[%s3 + $0xc8] sm:$0xf] %v1065
  %1194 = vst [vmem:[%s3 + $0xcc] sm:$0xf] %v1066
  %1195 = vst [vmem:[%s3 + $0xd0] sm:$0xf] %v1067
  %1196 = vst [vmem:[%s3 + $0xd4] sm:$0xf] %v1068
  %1197 = vst [vmem:[%s3 + $0xd8] sm:$0xf] %v1069
  %1198 = vst [vmem:[%s3 + $0xdc] sm:$0xf] %v1070
  %1199 = vst [vmem:[%s3 + $0xe0] sm:$0xf] %v1071
  %1200 = vst [vmem:[%s3 + $0xe4] sm:$0xf] %v1072
  %1201 = vst [vmem:[%s3 + $0xe8] sm:$0xf] %v1073
  %1202 = vst [vmem:[%s3 + $0xec] sm:$0xf] %v1074
  %1203 = vst [vmem:[%s3 + $0xf0] sm:$0xf] %v1075
  %1204 = vst [vmem:[%s3 + $0xf4] sm:$0xf] %v1076
  %1205 = vst [vmem:[%s3 + $0xf8] sm:$0xf] %v1077
  %1206 = vst [vmem:[%s3 + $0xfc] sm:$0xf] %v1078
  // Predicated region
  $region14: #{_lambda_.18} parent=0 // pred_check
    _
  $region15: #{_lambda_.18} parent=0 // pred_check_branch
    %1208 = sbr.rel (0) target = $region17
  $region16: #{_lambda_.18} parent=0 // pred_region
    _
  $region17: #{_lambda_.18} parent=0 // pred_fallthru
    _
  // Predicated region
  $region18: #{_lambda_.18} parent=0 // pred_check
    _
  $region19: #{_lambda_.18} parent=0 // pred_check_branch
    %1210 = sbr.rel (0) target = $region21
  $region20: #{_lambda_.18} parent=0 // pred_region
    _
  $region21: #{_lambda_.18} parent=0 // pred_fallthru
    _

// kernel: _lambda_.21
$region0: #{_lambda_.21}
  #allocation0 [shape = 'u32[]', space=smem, size = 0x4, offset = 0x4, fixed_abs, tag = 'smem constant byte address 0x4 - core index']
  #allocation1 [shape = 'u32[144,128]{1,0:T(1,128)}', space=vmem, size = 0x12000, scoped, tag = 'internal scratch']
  %s0 = inlined_call_operand.vmem [shape: bf16[128,128], index: 0, kind: input, shape index: {}]
  %s1 = inlined_call_operand.vmem [shape: bf16[128,128], index: 1, kind: input, shape index: {}]
  %s2 = inlined_call_operand.vmem [shape: f32[1,128], index: 2, kind: input, shape index: {}]
  %s3 = inlined_call_operand.vmem [shape: bf16[128,128], index: 3, kind: input, shape index: {}]
  %s4 = inlined_call_operand.vmem [shape: bf16[128,128], index: 4, kind: output, shape index: {}]
  %s5 = sld [smem:[#allocation0]]
  $region26: #{_lambda_.21} parent=0
    _
  %s7 = ssub.s32 1, %s5
  %s8 = scalar_select 0, %s7, %s5
  // Predicated region
  $region2: #{_lambda_.21} parent=0 // pred_check
    _
  $region3: #{_lambda_.21} parent=0 // pred_check_branch
    %10 = sbr.rel (0) target = $region5
  $region4: #{_lambda_.21} parent=0 // pred_region
    _
  $region5: #{_lambda_.21} parent=0 // pred_fallthru
    _
  // Predicated region
  $region6: #{_lambda_.21} parent=0 // pred_check
    _
  $region7: #{_lambda_.21} parent=0 // pred_check_branch
    %12 = sbr.rel (0) target = $region9
  $region8: #{_lambda_.21} parent=0 // pred_region
    _
  $region9: #{_lambda_.21} parent=0 // pred_fallthru
    _
  // Predicated region
  $region10: #{_lambda_.21} parent=0 // pred_check
    _
  $region11: #{_lambda_.21} parent=0 // pred_check_branch
    %14 = sbr.rel (0) target = $region13
  $region12: #{_lambda_.21} parent=0 // pred_region
    _
  $region13: #{_lambda_.21} parent=0 // pred_fallthru
    _
  // Predicated region
  $region14: #{_lambda_.21} parent=0 // pred_check
    _
  $region15: #{_lambda_.21} parent=0 // pred_check_branch
    %16 = sbr.rel (0) target = $region17
  $region16: #{_lambda_.21} parent=0 // pred_region
    _
  $region17: #{_lambda_.21} parent=0 // pred_fallthru
    _
  %v18 = vld [vmem:[%s0] sm:$0xf]
  %v19 = vld [vmem:[%s0 + $0x4] sm:$0xf]
  %v20 = vld [vmem:[%s0 + $0x8] sm:$0xf]
  %v21 = vld [vmem:[%s0 + $0xc] sm:$0xf]
  %v22 = vld [vmem:[%s0 + $0x10] sm:$0xf]
  %v23 = vld [vmem:[%s0 + $0x14] sm:$0xf]
  %v24 = vld [vmem:[%s0 + $0x18] sm:$0xf]
  %v25 = vld [vmem:[%s0 + $0x1c] sm:$0xf]
  %v26 = vld [vmem:[%s0 + $0x20] sm:$0xf]
  %v27 = vld [vmem:[%s0 + $0x24] sm:$0xf]
  %v28 = vld [vmem:[%s0 + $0x28] sm:$0xf]
  %v29 = vld [vmem:[%s0 + $0x2c] sm:$0xf]
  %v30 = vld [vmem:[%s0 + $0x30] sm:$0xf]
  %v31 = vld [vmem:[%s0 + $0x34] sm:$0xf]
  %v32 = vld [vmem:[%s0 + $0x38] sm:$0xf]
  %v33 = vld [vmem:[%s0 + $0x3c] sm:$0xf]
  %v34 = vld [vmem:[%s1] sm:$0xf]
  %v35 = vld [vmem:[%s1 + $0x4] sm:$0xf]
  %v36 = vld [vmem:[%s1 + $0x8] sm:$0xf]
  %v37 = vld [vmem:[%s1 + $0xc] sm:$0xf]
  %v38 = vld [vmem:[%s1 + $0x10] sm:$0xf]
  %v39 = vld [vmem:[%s1 + $0x14] sm:$0xf]
  %v40 = vld [vmem:[%s1 + $0x18] sm:$0xf]
  %v41 = vld [vmem:[%s1 + $0x1c] sm:$0xf]
  %v42 = vld [vmem:[%s1 + $0x20] sm:$0xf]
  %v43 = vld [vmem:[%s1 + $0x24] sm:$0xf]
  %v44 = vld [vmem:[%s1 + $0x28] sm:$0xf]
  %v45 = vld [vmem:[%s1 + $0x2c] sm:$0xf]
  %v46 = vld [vmem:[%s1 + $0x30] sm:$0xf]
  %v47 = vld [vmem:[%s1 + $0x34] sm:$0xf]
  %v48 = vld [vmem:[%s1 + $0x38] sm:$0xf]
  %v49 = vld [vmem:[%s1 + $0x3c] sm:$0xf]
  %v50 = vld [vmem:[%s2] sm:$0x1]
  %v52 = vlaneseq
  %v53 = vshrl.u32 %v52, 7
  %v54 = vsub.s32 0, %v53
  %v55 = vrot.slane %v50, %v54
  %v73 = vunpack.c.l.b16 %v18
  %v74 = vunpack.c.l.b16 %v19
  %v75 = vunpack.c.l.b16 %v20
  %v76 = vunpack.c.l.b16 %v21
  %v77 = vunpack.c.l.b16 %v22
  %v78 = vunpack.c.l.b16 %v23
  %v79 = vunpack.c.l.b16 %v24
  %v80 = vunpack.c.l.b16 %v25
  %v81 = vunpack.c.l.b16 %v26
  %v82 = vunpack.c.l.b16 %v27
  %v83 = vunpack.c.l.b16 %v28
  %v84 = vunpack.c.l.b16 %v29
  %v85 = vunpack.c.l.b16 %v30
  %v86 = vunpack.c.l.b16 %v31
  %v87 = vunpack.c.l.b16 %v32
  %v88 = vunpack.c.l.b16 %v33
  %v89 = vpack.c.b16 %v74, %v73
  %v90 = vpack.c.b16 %v76, %v75
  %v91 = vpack.c.b16 %v78, %v77
  %v92 = vpack.c.b16 %v80, %v79
  %v93 = vpack.c.b16 %v82, %v81
  %v94 = vpack.c.b16 %v84, %v83
  %v95 = vpack.c.b16 %v86, %v85
  %v96 = vpack.c.b16 %v88, %v87
  %v121 = vunpack.c.l.b16 %v34
  %v122 = vunpack.c.l.b16 %v35
  %v123 = vunpack.c.l.b16 %v36
  %v124 = vunpack.c.l.b16 %v37
  %v125 = vunpack.c.l.b16 %v38
  %v126 = vunpack.c.l.b16 %v39
  %v127 = vunpack.c.l.b16 %v40
  %v128 = vunpack.c.l.b16 %v41
  %v129 = vunpack.c.l.b16 %v42
  %v130 = vunpack.c.l.b16 %v43
  %v131 = vunpack.c.l.b16 %v44
  %v132 = vunpack.c.l.b16 %v45
  %v133 = vunpack.c.l.b16 %v46
  %v134 = vunpack.c.l.b16 %v47
  %v135 = vunpack.c.l.b16 %v48
  %v136 = vunpack.c.l.b16 %v49
  %v137 = vpack.c.b16 %v122, %v121
  %v138 = vpack.c.b16 %v124, %v123
  %v139 = vpack.c.b16 %v126, %v125
  %v140 = vpack.c.b16 %v128, %v127
  %v141 = vpack.c.b16 %v130, %v129
  %v142 = vpack.c.b16 %v132, %v131
  %v143 = vpack.c.b16 %v134, %v133
  %v144 = vpack.c.b16 %v136, %v135
  %153 = vmatprep.subr.bf16.mxu0 0
  %154 = vmatpush1.bf16.msra.mxu0 %v137
  %155 = vmatprep.subr.bf16.mxu0 0
  %156 = vmatpush1.bf16.msra.mxu0 %v138
  %157 = vmatprep.subr.bf16.mxu0 0
  %158 = vmatpush1.bf16.msra.mxu0 %v139
  %159 = vmatprep.subr.bf16.mxu0 0
  %160 = vmatpush1.bf16.msra.mxu0 %v140
  %161 = vmatprep.subr.bf16.mxu0 0
  %162 = vmatpush1.bf16.msra.mxu0 %v141
  %163 = vmatprep.subr.bf16.mxu0 0
  %164 = vmatpush1.bf16.msra.mxu0 %v142
  %165 = vmatprep.subr.bf16.mxu0 0
  %166 = vmatpush1.bf16.msra.mxu0 %v143
  %167 = vmatprep.subr.bf16.mxu0 0
  %168 = vmatpush1.bf16.msra.mxu0 %v144
  %169 = vmatprep.subr.bf16.mxu0 0
  %170 = vmatpush1.bf16.msra.mxu0 0
  %171 = vmatprep.subr.bf16.mxu0 0
  %172 = vmatpush1.bf16.msra.mxu0 0
  %173 = vmatprep.subr.bf16.mxu0 0
  %174 = vmatpush1.bf16.msra.mxu0 0
  %175 = vmatprep.subr.bf16.mxu0 0
  %176 = vmatpush1.bf16.msra.mxu0 0
  %177 = vmatprep.subr.bf16.mxu0 0
  %178 = vmatpush1.bf16.msra.mxu0 0
  %179 = vmatprep.subr.bf16.mxu0 0
  %180 = vmatpush1.bf16.msra.mxu0 0
  %181 = vmatprep.subr.bf16.mxu0 0
  %182 = vmatpush1.bf16.msra.mxu0 0
  %183 = vmatprep.subr.bf16.mxu0 0
  %184 = vmatpush1.bf16.msra.mxu0 0
  %185 = vmatprep.mubr.bf16.mxu0 0
  %186 = vmatmul.mubr.bf16.gmra.mrb[0].mxu0 %v89
  %v187 = vpop.f32.mrb[0].mxu0
  %v188 = vadd.f32 %v55, %v187
  %v189 = vpop.f32.mrb[0].mxu0
  %v190 = vpop.f32.mrb[0].mxu0
  %v191 = vadd.f32 %v55, %v190
  %v192 = vpop.f32.mrb[0].mxu0
  %193 = vmatprep.mubr.bf16.mxu0 0
  %194 = vmatmul.mubr.bf16.gmra.mrb[0].mxu0 %v90
  %v195 = vpop.f32.mrb[0].mxu0
  %v196 = vadd.f32 %v55, %v195
  %v197 = vpop.f32.mrb[0].mxu0
  %v198 = vpop.f32.mrb[0].mxu0
  %v199 = vadd.f32 %v55, %v198
  %v200 = vpop.f32.mrb[0].mxu0
  %201 = vmatprep.mubr.bf16.mxu0 0
  %202 = vmatmul.mubr.bf16.gmra.mrb[0].mxu0 %v91
  %v203 = vpop.f32.mrb[0].mxu0
  %v204 = vadd.f32 %v55, %v203
  %v205 = vpop.f32.mrb[0].mxu0
  %v206 = vpop.f32.mrb[0].mxu0
  %v207 = vadd.f32 %v55, %v206
  %v208 = vpop.f32.mrb[0].mxu0
  %209 = vmatprep.mubr.bf16.mxu0 0
  %210 = vmatmul.mubr.bf16.gmra.mrb[0].mxu0 %v92
  %v211 = vpop.f32.mrb[0].mxu0
  %v212 = vadd.f32 %v55, %v211
  %v213 = vpop.f32.mrb[0].mxu0
  %v214 = vpop.f32.mrb[0].mxu0
  %v215 = vadd.f32 %v55, %v214
  %v216 = vpop.f32.mrb[0].mxu0
  %217 = vmatprep.mubr.bf16.mxu0 0
  %218 = vmatmul.mubr.bf16.gmra.mrb[0].mxu0 %v93
  %v219 = vpop.f32.mrb[0].mxu0
  %v220 = vadd.f32 %v55, %v219
  %v221 = vpop.f32.mrb[0].mxu0
  %v222 = vpop.f32.mrb[0].mxu0
  %v223 = vadd.f32 %v55, %v222
  %v224 = vpop.f32.mrb[0].mxu0
  %225 = vmatprep.mubr.bf16.mxu0 0
  %226 = vmatmul.mubr.bf16.gmra.mrb[0].mxu0 %v94
  %v227 = vpop.f32.mrb[0].mxu0
  %v228 = vadd.f32 %v55, %v227
  %v229 = vpop.f32.mrb[0].mxu0
  %v230 = vpop.f32.mrb[0].mxu0
  %v231 = vadd.f32 %v55, %v230
  %v232 = vpop.f32.mrb[0].mxu0
  %233 = vmatprep.mubr.bf16.mxu0 0
  %234 = vmatmul.mubr.bf16.gmra.mrb[0].mxu0 %v95
  %v235 = vpop.f32.mrb[0].mxu0
  %v236 = vadd.f32 %v55, %v235
  %v237 = vpop.f32.mrb[0].mxu0
  %v238 = vpop.f32.mrb[0].mxu0
  %v239 = vadd.f32 %v55, %v238
  %v240 = vpop.f32.mrb[0].mxu0
  %241 = vmatprep.mubr.bf16.mxu0 0
  %242 = vmatmul.mubr.bf16.gmra.mrb[0].mxu0 %v96
  %v243 = vpop.f32.mrb[0].mxu0
  %v244 = vadd.f32 %v55, %v243
  %v245 = vpop.f32.mrb[0].mxu0
  %v246 = vpop.f32.mrb[0].mxu0
  %v247 = vadd.f32 %v55, %v246
  %v248 = vpop.f32.mrb[0].mxu0
  %249 = vdwg.mxu0
  %v250 = vld [vmem:[%s3] sm:$0xf]
  %v251 = vld [vmem:[%s3 + $0x4] sm:$0xf]
  %v252 = vld [vmem:[%s3 + $0x8] sm:$0xf]
  %v253 = vld [vmem:[%s3 + $0xc] sm:$0xf]
  %v254 = vld [vmem:[%s3 + $0x10] sm:$0xf]
  %v255 = vld [vmem:[%s3 + $0x14] sm:$0xf]
  %v256 = vld [vmem:[%s3 + $0x18] sm:$0xf]
  %v257 = vld [vmem:[%s3 + $0x1c] sm:$0xf]
  %v258 = vld [vmem:[%s3 + $0x20] sm:$0xf]
  %v259 = vld [vmem:[%s3 + $0x24] sm:$0xf]
  %v260 = vld [vmem:[%s3 + $0x28] sm:$0xf]
  %v261 = vld [vmem:[%s3 + $0x2c] sm:$0xf]
  %v262 = vld [vmem:[%s3 + $0x30] sm:$0xf]
  %v263 = vld [vmem:[%s3 + $0x34] sm:$0xf]
  %v264 = vld [vmem:[%s3 + $0x38] sm:$0xf]
  %v265 = vld [vmem:[%s3 + $0x3c] sm:$0xf]
  %v266 = vunpack.c.l.bf16 %v250
  %v267 = vunpack.c.l.bf16 %v251
  %v268 = vunpack.c.l.bf16 %v252
  %v269 = vunpack.c.l.bf16 %v253
  %v270 = vunpack.c.l.bf16 %v254
  %v271 = vunpack.c.l.bf16 %v255
  %v272 = vunpack.c.l.bf16 %v256
  %v273 = vunpack.c.l.bf16 %v257
  %v274 = vunpack.c.l.bf16 %v258
  %v275 = vunpack.c.l.bf16 %v259
  %v276 = vunpack.c.l.bf16 %v260
  %v277 = vunpack.c.l.bf16 %v261
  %v278 = vunpack.c.l.bf16 %v262
  %v279 = vunpack.c.l.bf16 %v263
  %v280 = vunpack.c.l.bf16 %v264
  %v281 = vunpack.c.l.bf16 %v265
  %v282 = vadd.f32 %v188, %v266
  %v283 = vadd.f32 %v191, %v267
  %v284 = vadd.f32 %v196, %v268
  %v285 = vadd.f32 %v199, %v269
  %v286 = vadd.f32 %v204, %v270
  %v287 = vadd.f32 %v207, %v271
  %v288 = vadd.f32 %v212, %v272
  %v289 = vadd.f32 %v215, %v273
  %v290 = vadd.f32 %v220, %v274
  %v291 = vadd.f32 %v223, %v275
  %v292 = vadd.f32 %v228, %v276
  %v293 = vadd.f32 %v231, %v277
  %v294 = vadd.f32 %v236, %v278
  %v295 = vadd.f32 %v239, %v279
  %v296 = vadd.f32 %v244, %v280
  %v297 = vadd.f32 %v247, %v281
  %v298 = vmax.f32 %v282, 0.0
  %v299 = vmax.f32 %v283, 0.0
  %v300 = vmax.f32 %v284, 0.0
  %v301 = vmax.f32 %v285, 0.0
  %v302 = vmax.f32 %v286, 0.0
  %v303 = vmax.f32 %v287, 0.0
  %v304 = vmax.f32 %v288, 0.0
  %v305 = vmax.f32 %v289, 0.0
  %v306 = vmax.f32 %v290, 0.0
  %v307 = vmax.f32 %v291, 0.0
  %v308 = vmax.f32 %v292, 0.0
  %v309 = vmax.f32 %v293, 0.0
  %v310 = vmax.f32 %v294, 0.0
  %v311 = vmax.f32 %v295, 0.0
  %v312 = vmax.f32 %v296, 0.0
  %v313 = vmax.f32 %v297, 0.0
  %v314 = vpack.c.bf16 %v299, %v298
  %v315 = vpack.c.bf16 %v301, %v300
  %v316 = vpack.c.bf16 %v303, %v302
  %v317 = vpack.c.bf16 %v305, %v304
  %v318 = vpack.c.bf16 %v307, %v306
  %v319 = vpack.c.bf16 %v309, %v308
  %v320 = vpack.c.bf16 %v311, %v310
  %v321 = vpack.c.bf16 %v313, %v312
  %v330 = vunpack.c.l.b16 %v314
  %v331 = vunpack.c.h.b16 %v314
  %v332 = vunpack.c.l.b16 %v315
  %v333 = vunpack.c.h.b16 %v315
  %v334 = vunpack.c.l.b16 %v316
  %v335 = vunpack.c.h.b16 %v316
  %v336 = vunpack.c.l.b16 %v317
  %v337 = vunpack.c.h.b16 %v317
  %v338 = vunpack.c.l.b16 %v318
  %v339 = vunpack.c.h.b16 %v318
  %v340 = vunpack.c.l.b16 %v319
  %v341 = vunpack.c.h.b16 %v319
  %v342 = vunpack.c.l.b16 %v320
  %v343 = vunpack.c.h.b16 %v320
  %v344 = vunpack.c.l.b16 %v321
  %v345 = vunpack.c.h.b16 %v321
  %v346 = vpack.c.b16 %v330, %v330
  %v347 = vpack.c.b16 %v331, %v331
  %v348 = vpack.c.b16 %v332, %v332
  %v349 = vpack.c.b16 %v333, %v333
  %v350 = vpack.c.b16 %v334, %v334
  %v351 = vpack.c.b16 %v335, %v335
  %v352 = vpack.c.b16 %v336, %v336
  %v353 = vpack.c.b16 %v337, %v337
  %v354 = vpack.c.b16 %v338, %v338
  %v355 = vpack.c.b16 %v339, %v339
  %v356 = vpack.c.b16 %v340, %v340
  %v357 = vpack.c.b16 %v341, %v341
  %v358 = vpack.c.b16 %v342, %v342
  %v359 = vpack.c.b16 %v343, %v343
  %v360 = vpack.c.b16 %v344, %v344
  %v361 = vpack.c.b16 %v345, %v345
  %378 = vst [vmem:[%s4] sm:$0xf] %v346
  %379 = vst [vmem:[%s4 + $0x4] sm:$0xf] %v347
  %380 = vst [vmem:[%s4 + $0x8] sm:$0xf] %v348
  %381 = vst [vmem:[%s4 + $0xc] sm:$0xf] %v349
  %382 = vst [vmem:[%s4 + $0x10] sm:$0xf] %v350
  %383 = vst [vmem:[%s4 + $0x14] sm:$0xf] %v351
  %384 = vst [vmem:[%s4 + $0x18] sm:$0xf] %v352
  %385 = vst [vmem:[%s4 + $0x1c] sm:$0xf] %v353
  %386 = vst [vmem:[%s4 + $0x20] sm:$0xf] %v354
  %387 = vst [vmem:[%s4 + $0x24] sm:$0xf] %v355
  %388 = vst [vmem:[%s4 + $0x28] sm:$0xf] %v356
  %389 = vst [vmem:[%s4 + $0x2c] sm:$0xf] %v357
  %390 = vst [vmem:[%s4 + $0x30] sm:$0xf] %v358
  %391 = vst [vmem:[%s4 + $0x34] sm:$0xf] %v359
  %392 = vst [vmem:[%s4 + $0x38] sm:$0xf] %v360
  %393 = vst [vmem:[%s4 + $0x3c] sm:$0xf] %v361
  // Predicated region
  $region18: #{_lambda_.21} parent=0 // pred_check
    _
  $region19: #{_lambda_.21} parent=0 // pred_check_branch
    %395 = sbr.rel (0) target = $region21
  $region20: #{_lambda_.21} parent=0 // pred_region
    _
  $region21: #{_lambda_.21} parent=0 // pred_fallthru
    _
  // Predicated region
  $region22: #{_lambda_.21} parent=0 // pred_check
    _
  $region23: #{_lambda_.21} parent=0 // pred_check_branch
    %397 = sbr.rel (0) target = $region25
  $region24: #{_lambda_.21} parent=0 // pred_region
    _
  $region25: #{_lambda_.21} parent=0 // pred_fallthru
    _

// kernel: _lambda_.24
$region0: #{_lambda_.24}
  #allocation0 [shape = 'u32[]', space=smem, size = 0x4, offset = 0x4, fixed_abs, tag = 'smem constant byte address 0x4 - core index']
  #allocation1 [shape = 'u32[144,128]{1,0:T(1,128)}', space=vmem, size = 0x12000, scoped, tag = 'internal scratch']
  %s0 = inlined_call_operand.vmem [shape: bf16[32,128], index: 0, kind: input, shape index: {}]
  %s1 = inlined_call_operand.vmem [shape: bf16[128,128], index: 1, kind: input, shape index: {}]
  %s2 = inlined_call_operand.vmem [shape: f32[1,128], index: 2, kind: input, shape index: {}]
  %s3 = inlined_call_operand.vmem [shape: bf16[128,128], index: 3, kind: input, shape index: {}]
  %s4 = inlined_call_operand.vmem [shape: f32[1,128], index: 4, kind: input, shape index: {}]
  %s5 = inlined_call_operand.vmem [shape: bf16[32,128], index: 5, kind: output, shape index: {0}]
  %s6 = inlined_call_operand.vmem [shape: bf16[32,128], index: 6, kind: output, shape index: {1}]
  %7 = xla_tuple %s5, %s6
  %s8 = sld [smem:[#allocation0]]
  $region38: #{_lambda_.24} parent=0
    _
  %s10 = ssub.s32 1, %s8
  %s11 = scalar_select 0, %s10, %s8
  // Predicated region
  $region2: #{_lambda_.24} parent=0 // pred_check
    _
  $region3: #{_lambda_.24} parent=0 // pred_check_branch
    %13 = sbr.rel (0) target = $region5
  $region4: #{_lambda_.24} parent=0 // pred_region
    _
  $region5: #{_lambda_.24} parent=0 // pred_fallthru
    _
  // Predicated region
  $region6: #{_lambda_.24} parent=0 // pred_check
    _
  $region7: #{_lambda_.24} parent=0 // pred_check_branch
    %15 = sbr.rel (0) target = $region9
  $region8: #{_lambda_.24} parent=0 // pred_region
    _
  $region9: #{_lambda_.24} parent=0 // pred_fallthru
    _
  // Predicated region
  $region10: #{_lambda_.24} parent=0 // pred_check
    _
  $region11: #{_lambda_.24} parent=0 // pred_check_branch
    %17 = sbr.rel (0) target = $region13
  $region12: #{_lambda_.24} parent=0 // pred_region
    _
  $region13: #{_lambda_.24} parent=0 // pred_fallthru
    _
  // Predicated region
  $region14: #{_lambda_.24} parent=0 // pred_check
    _
  $region15: #{_lambda_.24} parent=0 // pred_check_branch
    %19 = sbr.rel (0) target = $region17
  $region16: #{_lambda_.24} parent=0 // pred_region
    _
  $region17: #{_lambda_.24} parent=0 // pred_fallthru
    _
  // Predicated region
  $region18: #{_lambda_.24} parent=0 // pred_check
    _
  $region19: #{_lambda_.24} parent=0 // pred_check_branch
    %21 = sbr.rel (0) target = $region21
  $region20: #{_lambda_.24} parent=0 // pred_region
    _
  $region21: #{_lambda_.24} parent=0 // pred_fallthru
    _
  %v23 = vld [vmem:[%s0] sm:$0xf]
  %v24 = vld [vmem:[%s0 + $0x4] sm:$0xf]
  %v25 = vld [vmem:[%s0 + $0x8] sm:$0xf]
  %v26 = vld [vmem:[%s0 + $0xc] sm:$0xf]
  %v27 = vld [vmem:[%s1] sm:$0xf]
  %v28 = vld [vmem:[%s1 + $0x4] sm:$0xf]
  %v29 = vld [vmem:[%s1 + $0x8] sm:$0xf]
  %v30 = vld [vmem:[%s1 + $0xc] sm:$0xf]
  %v31 = vld [vmem:[%s1 + $0x10] sm:$0xf]
  %v32 = vld [vmem:[%s1 + $0x14] sm:$0xf]
  %v33 = vld [vmem:[%s1 + $0x18] sm:$0xf]
  %v34 = vld [vmem:[%s1 + $0x1c] sm:$0xf]
  %v35 = vld [vmem:[%s1 + $0x20] sm:$0xf]
  %v36 = vld [vmem:[%s1 + $0x24] sm:$0xf]
  %v37 = vld [vmem:[%s1 + $0x28] sm:$0xf]
  %v38 = vld [vmem:[%s1 + $0x2c] sm:$0xf]
  %v39 = vld [vmem:[%s1 + $0x30] sm:$0xf]
  %v40 = vld [vmem:[%s1 + $0x34] sm:$0xf]
  %v41 = vld [vmem:[%s1 + $0x38] sm:$0xf]
  %v42 = vld [vmem:[%s1 + $0x3c] sm:$0xf]
  %v43 = vld [vmem:[%s2] sm:$0x1]
  %v45 = vlaneseq
  %v46 = vshrl.u32 %v45, 7
  %v47 = vsub.s32 0, %v46
  %v48 = vrot.slane %v43, %v47
  %v54 = vunpack.c.l.b16 %v23
  %v55 = vunpack.c.l.b16 %v24
  %v56 = vunpack.c.l.b16 %v25
  %v57 = vunpack.c.l.b16 %v26
  %v58 = vpack.c.b16 %v55, %v54
  %v59 = vpack.c.b16 %v57, %v56
  %v78 = vunpack.c.l.b16 %v27
  %v79 = vunpack.c.l.b16 %v28
  %v80 = vunpack.c.l.b16 %v29
  %v81 = vunpack.c.l.b16 %v30
  %v82 = vunpack.c.l.b16 %v31
  %v83 = vunpack.c.l.b16 %v32
  %v84 = vunpack.c.l.b16 %v33
  %v85 = vunpack.c.l.b16 %v34
  %v86 = vunpack.c.l.b16 %v35
  %v87 = vunpack.c.l.b16 %v36
  %v88 = vunpack.c.l.b16 %v37
  %v89 = vunpack.c.l.b16 %v38
  %v90 = vunpack.c.l.b16 %v39
  %v91 = vunpack.c.l.b16 %v40
  %v92 = vunpack.c.l.b16 %v41
  %v93 = vunpack.c.l.b16 %v42
  %v94 = vpack.c.b16 %v79, %v78
  %v95 = vpack.c.b16 %v81, %v80
  %v96 = vpack.c.b16 %v83, %v82
  %v97 = vpack.c.b16 %v85, %v84
  %v98 = vpack.c.b16 %v87, %v86
  %v99 = vpack.c.b16 %v89, %v88
  %v100 = vpack.c.b16 %v91, %v90
  %v101 = vpack.c.b16 %v93, %v92
  %110 = vmatprep.subr.bf16.mxu0 0
  %111 = vmatpush1.bf16.msra.mxu0 %v94
  %112 = vmatprep.subr.bf16.mxu0 0
  %113 = vmatpush1.bf16.msra.mxu0 %v95
  %114 = vmatprep.subr.bf16.mxu0 0
  %115 = vmatpush1.bf16.msra.mxu0 %v96
  %116 = vmatprep.subr.bf16.mxu0 0
  %117 = vmatpush1.bf16.msra.mxu0 %v97
  %118 = vmatprep.subr.bf16.mxu0 0
  %119 = vmatpush1.bf16.msra.mxu0 %v98
  %120 = vmatprep.subr.bf16.mxu0 0
  %121 = vmatpush1.bf16.msra.mxu0 %v99
  %122 = vmatprep.subr.bf16.mxu0 0
  %123 = vmatpush1.bf16.msra.mxu0 %v100
  %124 = vmatprep.subr.bf16.mxu0 0
  %125 = vmatpush1.bf16.msra.mxu0 %v101
  %126 = vmatprep.subr.bf16.mxu0 0
  %127 = vmatpush1.bf16.msra.mxu0 0
  %128 = vmatprep.subr.bf16.mxu0 0
  %129 = vmatpush1.bf16.msra.mxu0 0
  %130 = vmatprep.subr.bf16.mxu0 0
  %131 = vmatpush1.bf16.msra.mxu0 0
  %132 = vmatprep.subr.bf16.mxu0 0
  %133 = vmatpush1.bf16.msra.mxu0 0
  %134 = vmatprep.subr.bf16.mxu0 0
  %135 = vmatpush1.bf16.msra.mxu0 0
  %136 = vmatprep.subr.bf16.mxu0 0
  %137 = vmatpush1.bf16.msra.mxu0 0
  %138 = vmatprep.subr.bf16.mxu0 0
  %139 = vmatpush1.bf16.msra.mxu0 0
  %140 = vmatprep.subr.bf16.mxu0 0
  %141 = vmatpush1.bf16.msra.mxu0 0
  %142 = vmatprep.mubr.bf16.mxu0 0
  %143 = vmatmul.mubr.bf16.gmra.mrb[0].mxu0 %v58
  %v144 = vpop.f32.mrb[0].mxu0
  %v145 = vadd.f32 %v48, %v144
  %v146 = vpop.f32.mrb[0].mxu0
  %v147 = vpop.f32.mrb[0].mxu0
  %v148 = vadd.f32 %v48, %v147
  %v149 = vpop.f32.mrb[0].mxu0
  %150 = vmatprep.mubr.bf16.mxu0 0
  %151 = vmatmul.mubr.bf16.gmra.mrb[0].mxu0 %v59
  %v152 = vpop.f32.mrb[0].mxu0
  %v153 = vadd.f32 %v48, %v152
  %v154 = vpop.f32.mrb[0].mxu0
  %v155 = vpop.f32.mrb[0].mxu0
  %v156 = vadd.f32 %v48, %v155
  %v157 = vpop.f32.mrb[0].mxu0
  %158 = vdwg.mxu0
  %v159 = vmax.f32 %v145, 0.0
  %v160 = vmax.f32 %v148, 0.0
  %v161 = vmax.f32 %v153, 0.0
  %v162 = vmax.f32 %v156, 0.0
  %v163 = vpack.c.bf16 %v160, %v159
  %v164 = vpack.c.bf16 %v162, %v161
  %v167 = vunpack.c.l.b16 %v163
  %v168 = vunpack.c.h.b16 %v163
  %v169 = vunpack.c.l.b16 %v164
  %v170 = vunpack.c.h.b16 %v164
  %v171 = vpack.c.b16 %v167, %v167
  %v172 = vpack.c.b16 %v168, %v168
  %v173 = vpack.c.b16 %v169, %v169
  %v174 = vpack.c.b16 %v170, %v170
  %179 = vst [vmem:[%s5] sm:$0xf] %v171
  %180 = vst [vmem:[%s5 + $0x4] sm:$0xf] %v172
  %181 = vst [vmem:[%s5 + $0x8] sm:$0xf] %v173
  %182 = vst [vmem:[%s5 + $0xc] sm:$0xf] %v174
  %v183 = vld [vmem:[%s3] sm:$0xf]
  %v184 = vld [vmem:[%s3 + $0x4] sm:$0xf]
  %v185 = vld [vmem:[%s3 + $0x8] sm:$0xf]
  %v186 = vld [vmem:[%s3 + $0xc] sm:$0xf]
  %v187 = vld [vmem:[%s3 + $0x10] sm:$0xf]
  %v188 = vld [vmem:[%s3 + $0x14] sm:$0xf]
  %v189 = vld [vmem:[%s3 + $0x18] sm:$0xf]
  %v190 = vld [vmem:[%s3 + $0x1c] sm:$0xf]
  %v191 = vld [vmem:[%s3 + $0x20] sm:$0xf]
  %v192 = vld [vmem:[%s3 + $0x24] sm:$0xf]
  %v193 = vld [vmem:[%s3 + $0x28] sm:$0xf]
  %v194 = vld [vmem:[%s3 + $0x2c] sm:$0xf]
  %v195 = vld [vmem:[%s3 + $0x30] sm:$0xf]
  %v196 = vld [vmem:[%s3 + $0x34] sm:$0xf]
  %v197 = vld [vmem:[%s3 + $0x38] sm:$0xf]
  %v198 = vld [vmem:[%s3 + $0x3c] sm:$0xf]
  %v199 = vld [vmem:[%s4] sm:$0x1]
  %v201 = vlaneseq
  %v202 = vshrl.u32 %v201, 7
  %v203 = vsub.s32 0, %v202
  %v204 = vrot.slane %v199, %v203
  %v222 = vunpack.c.l.b16 %v183
  %v223 = vunpack.c.l.b16 %v184
  %v224 = vunpack.c.l.b16 %v185
  %v225 = vunpack.c.l.b16 %v186
  %v226 = vunpack.c.l.b16 %v187
  %v227 = vunpack.c.l.b16 %v188
  %v228 = vunpack.c.l.b16 %v189
  %v229 = vunpack.c.l.b16 %v190
  %v230 = vunpack.c.l.b16 %v191
  %v231 = vunpack.c.l.b16 %v192
  %v232 = vunpack.c.l.b16 %v193
  %v233 = vunpack.c.l.b16 %v194
  %v234 = vunpack.c.l.b16 %v195
  %v235 = vunpack.c.l.b16 %v196
  %v236 = vunpack.c.l.b16 %v197
  %v237 = vunpack.c.l.b16 %v198
  %v238 = vpack.c.b16 %v223, %v222
  %v239 = vpack.c.b16 %v225, %v224
  %v240 = vpack.c.b16 %v227, %v226
  %v241 = vpack.c.b16 %v229, %v228
  %v242 = vpack.c.b16 %v231, %v230
  %v243 = vpack.c.b16 %v233, %v232
  %v244 = vpack.c.b16 %v235, %v234
  %v245 = vpack.c.b16 %v237, %v236
  %254 = vmatprep.subr.bf16.mxu0 0
  %255 = vmatpush1.bf16.msra.mxu0 %v238
  %256 = vmatprep.subr.bf16.mxu0 0
  %257 = vmatpush1.bf16.msra.mxu0 %v239
  %258 = vmatprep.subr.bf16.mxu0 0
  %259 = vmatpush1.bf16.msra.mxu0 %v240
  %260 = vmatprep.subr.bf16.mxu0 0
  %261 = vmatpush1.bf16.msra.mxu0 %v241
  %262 = vmatprep.subr.bf16.mxu0 0
  %263 = vmatpush1.bf16.msra.mxu0 %v242
  %264 = vmatprep.subr.bf16.mxu0 0
  %265 = vmatpush1.bf16.msra.mxu0 %v243
  %266 = vmatprep.subr.bf16.mxu0 0
  %267 = vmatpush1.bf16.msra.mxu0 %v244
  %268 = vmatprep.subr.bf16.mxu0 0
  %269 = vmatpush1.bf16.msra.mxu0 %v245
  %270 = vmatprep.subr.bf16.mxu0 0
  %271 = vmatpush1.bf16.msra.mxu0 0
  %272 = vmatprep.subr.bf16.mxu0 0
  %273 = vmatpush1.bf16.msra.mxu0 0
  %274 = vmatprep.subr.bf16.mxu0 0
  %275 = vmatpush1.bf16.msra.mxu0 0
  %276 = vmatprep.subr.bf16.mxu0 0
  %277 = vmatpush1.bf16.msra.mxu0 0
  %278 = vmatprep.subr.bf16.mxu0 0
  %279 = vmatpush1.bf16.msra.mxu0 0
  %280 = vmatprep.subr.bf16.mxu0 0
  %281 = vmatpush1.bf16.msra.mxu0 0
  %282 = vmatprep.subr.bf16.mxu0 0
  %283 = vmatpush1.bf16.msra.mxu0 0
  %284 = vmatprep.subr.bf16.mxu0 0
  %285 = vmatpush1.bf16.msra.mxu0 0
  %286 = vmatprep.mubr.bf16.mxu0 0
  %287 = vmatmul.mubr.bf16.gmra.mrb[0].mxu0 %v58
  %v288 = vpop.f32.mrb[0].mxu0
  %v289 = vadd.f32 %v204, %v288
  %v290 = vpop.f32.mrb[0].mxu0
  %v291 = vpop.f32.mrb[0].mxu0
  %v292 = vadd.f32 %v204, %v291
  %v293 = vpop.f32.mrb[0].mxu0
  %294 = vmatprep.mubr.bf16.mxu0 0
  %295 = vmatmul.mubr.bf16.gmra.mrb[0].mxu0 %v59
  %v296 = vpop.f32.mrb[0].mxu0
  %v297 = vadd.f32 %v204, %v296
  %v298 = vpop.f32.mrb[0].mxu0
  %v299 = vpop.f32.mrb[0].mxu0
  %v300 = vadd.f32 %v204, %v299
  %v301 = vpop.f32.mrb[0].mxu0
  %302 = vdwg.mxu0
  %v303 = vpack.c.bf16 %v292, %v289
  %v304 = vpack.c.bf16 %v300, %v297
  %v307 = vunpack.c.l.b16 %v303
  %v308 = vunpack.c.h.b16 %v303
  %v309 = vunpack.c.l.b16 %v304
  %v310 = vunpack.c.h.b16 %v304
  %v311 = vpack.c.b16 %v307, %v307
  %v312 = vpack.c.b16 %v308, %v308
  %v313 = vpack.c.b16 %v309, %v309
  %v314 = vpack.c.b16 %v310, %v310
  %319 = vst [vmem:[%s6] sm:$0xf] %v311
  %320 = vst [vmem:[%s6 + $0x4] sm:$0xf] %v312
  %321 = vst [vmem:[%s6 + $0x8] sm:$0xf] %v313
  %322 = vst [vmem:[%s6 + $0xc] sm:$0xf] %v314
  // Predicated region
  $region22: #{_lambda_.24} parent=0 // pred_check
    _
  $region23: #{_lambda_.24} parent=0 // pred_check_branch
    %324 = sbr.rel (0) target = $region25
  $region24: #{_lambda_.24} parent=0 // pred_region
    _
  $region25: #{_lambda_.24} parent=0 // pred_fallthru
    _
  // Predicated region
  $region26: #{_lambda_.24} parent=0 // pred_check
    _
  $region27: #{_lambda_.24} parent=0 // pred_check_branch
    %326 = sbr.rel (0) target = $region29
  $region28: #{_lambda_.24} parent=0 // pred_region
    _
  $region29: #{_lambda_.24} parent=0 // pred_fallthru
    _
  // Predicated region
  $region30: #{_lambda_.24} parent=0 // pred_check
    _
  $region31: #{_lambda_.24} parent=0 // pred_check_branch
    %328 = sbr.rel (0) target = $region33
  $region32: #{_lambda_.24} parent=0 // pred_region
    _
  $region33: #{_lambda_.24} parent=0 // pred_fallthru
    _
  // Predicated region
  $region34: #{_lambda_.24} parent=0 // pred_check
    _
  $region35: #{_lambda_.24} parent=0 // pred_check_branch
    %330 = sbr.rel (0) target = $region37
  $region36: #{_lambda_.24} parent=0 // pred_region
    _
  $region37: #{_lambda_.24} parent=0 // pred_fallthru
    _

// kernel: _lambda_.25
$region0: #{_lambda_.25}
  #allocation0 [shape = 'u32[]', space=smem, size = 0x4, offset = 0x4, fixed_abs, tag = 'smem constant byte address 0x4 - core index']
  #allocation1 [shape = 'u32[144,128]{1,0:T(1,128)}', space=vmem, size = 0x12000, scoped, tag = 'internal scratch']
  %s0 = inlined_call_operand.vmem [shape: bf16[32,256], index: 0, kind: input, shape index: {}]
  %s1 = inlined_call_operand.vmem [shape: bf16[256,128], index: 1, kind: input, shape index: {}]
  %s2 = inlined_call_operand.vmem [shape: f32[1,128], index: 2, kind: input, shape index: {}]
  %s3 = inlined_call_operand.vmem [shape: bf16[32,128], index: 3, kind: input, shape index: {}]
  %s4 = inlined_call_operand.vmem [shape: bf16[32,128], index: 4, kind: output, shape index: {}]
  %s5 = sld [smem:[#allocation0]]
  $region26: #{_lambda_.25} parent=0
    _
  %s7 = ssub.s32 1, %s5
  %s8 = scalar_select 0, %s7, %s5
  // Predicated region
  $region2: #{_lambda_.25} parent=0 // pred_check
    _
  $region3: #{_lambda_.25} parent=0 // pred_check_branch
    %10 = sbr.rel (0) target = $region5
  $region4: #{_lambda_.25} parent=0 // pred_region
    _
  $region5: #{_lambda_.25} parent=0 // pred_fallthru
    _
  // Predicated region
  $region6: #{_lambda_.25} parent=0 // pred_check
    _
  $region7: #{_lambda_.25} parent=0 // pred_check_branch
    %12 = sbr.rel (0) target = $region9
  $region8: #{_lambda_.25} parent=0 // pred_region
    _
  $region9: #{_lambda_.25} parent=0 // pred_fallthru
    _
  // Predicated region
  $region10: #{_lambda_.25} parent=0 // pred_check
    _
  $region11: #{_lambda_.25} parent=0 // pred_check_branch
    %14 = sbr.rel (0) target = $region13
  $region12: #{_lambda_.25} parent=0 // pred_region
    _
  $region13: #{_lambda_.25} parent=0 // pred_fallthru
    _
  // Predicated region
  $region14: #{_lambda_.25} parent=0 // pred_check
    _
  $region15: #{_lambda_.25} parent=0 // pred_check_branch
    %16 = sbr.rel (0) target = $region17
  $region16: #{_lambda_.25} parent=0 // pred_region
    _
  $region17: #{_lambda_.25} parent=0 // pred_fallthru
    _
  %v18 = vld [vmem:[%s0] sm:$0xff]
  %v19 = vld [vmem:[%s0 + $0x8] sm:$0xff]
  %v20 = vld [vmem:[%s0 + $0x10] sm:$0xff]
  %v21 = vld [vmem:[%s0 + $0x18] sm:$0xff]
  %v22 = vld [vmem:[%s1] sm:$0xf]
  %v23 = vld [vmem:[%s1 + $0x4] sm:$0xf]
  %v24 = vld [vmem:[%s1 + $0x8] sm:$0xf]
  %v25 = vld [vmem:[%s1 + $0xc] sm:$0xf]
  %v26 = vld [vmem:[%s1 + $0x10] sm:$0xf]
  %v27 = vld [vmem:[%s1 + $0x14] sm:$0xf]
  %v28 = vld [vmem:[%s1 + $0x18] sm:$0xf]
  %v29 = vld [vmem:[%s1 + $0x1c] sm:$0xf]
  %v30 = vld [vmem:[%s1 + $0x20] sm:$0xf]
  %v31 = vld [vmem:[%s1 + $0x24] sm:$0xf]
  %v32 = vld [vmem:[%s1 + $0x28] sm:$0xf]
  %v33 = vld [vmem:[%s1 + $0x2c] sm:$0xf]
  %v34 = vld [vmem:[%s1 + $0x30] sm:$0xf]
  %v35 = vld [vmem:[%s1 + $0x34] sm:$0xf]
  %v36 = vld [vmem:[%s1 + $0x38] sm:$0xf]
  %v37 = vld [vmem:[%s1 + $0x3c] sm:$0xf]
  %v38 = vld [vmem:[%s1 + $0x40] sm:$0xf]
  %v39 = vld [vmem:[%s1 + $0x44] sm:$0xf]
  %v40 = vld [vmem:[%s1 + $0x48] sm:$0xf]
  %v41 = vld [vmem:[%s1 + $0x4c] sm:$0xf]
  %v42 = vld [vmem:[%s1 + $0x50] sm:$0xf]
  %v43 = vld [vmem:[%s1 + $0x54] sm:$0xf]
  %v44 = vld [vmem:[%s1 + $0x58] sm:$0xf]
  %v45 = vld [vmem:[%s1 + $0x5c] sm:$0xf]
  %v46 = vld [vmem:[%s1 + $0x60] sm:$0xf]
  %v47 = vld [vmem:[%s1 + $0x64] sm:$0xf]
  %v48 = vld [vmem:[%s1 + $0x68] sm:$0xf]
  %v49 = vld [vmem:[%s1 + $0x6c] sm:$0xf]
  %v50 = vld [vmem:[%s1 + $0x70] sm:$0xf]
  %v51 = vld [vmem:[%s1 + $0x74] sm:$0xf]
  %v52 = vld [vmem:[%s1 + $0x78] sm:$0xf]
  %v53 = vld [vmem:[%s1 + $0x7c] sm:$0xf]
  %v54 = vld [vmem:[%s2] sm:$0x1]
  %v56 = vlaneseq
  %v57 = vshrl.u32 %v56, 7
  %v58 = vsub.s32 0, %v57
  %v59 = vrot.slane %v54, %v58
  %v65 = vunpack.c.l.b16 %v18
  %v66 = vunpack.c.h.b16 %v18
  %v67 = vunpack.c.l.b16 %v19
  %v68 = vunpack.c.h.b16 %v19
  %v69 = vunpack.c.l.b16 %v20
  %v70 = vunpack.c.h.b16 %v20
  %v71 = vunpack.c.l.b16 %v21
  %v72 = vunpack.c.h.b16 %v21
  %v73 = vpack.c.b16 %v67, %v65
  %v74 = vpack.c.b16 %v68, %v66
  %v75 = vpack.c.b16 %v71, %v69
  %v76 = vpack.c.b16 %v72, %v70
  %v113 = vunpack.c.l.b16 %v22
  %v114 = vunpack.c.l.b16 %v23
  %v115 = vunpack.c.l.b16 %v24
  %v116 = vunpack.c.l.b16 %v25
  %v117 = vunpack.c.l.b16 %v26
  %v118 = vunpack.c.l.b16 %v27
  %v119 = vunpack.c.l.b16 %v28
  %v120 = vunpack.c.l.b16 %v29
  %v121 = vunpack.c.l.b16 %v30
  %v122 = vunpack.c.l.b16 %v31
  %v123 = vunpack.c.l.b16 %v32
  %v124 = vunpack.c.l.b16 %v33
  %v125 = vunpack.c.l.b16 %v34
  %v126 = vunpack.c.l.b16 %v35
  %v127 = vunpack.c.l.b16 %v36
  %v128 = vunpack.c.l.b16 %v37
  %v129 = vunpack.c.l.b16 %v38
  %v130 = vunpack.c.l.b16 %v39
  %v131 = vunpack.c.l.b16 %v40
  %v132 = vunpack.c.l.b16 %v41
  %v133 = vunpack.c.l.b16 %v42
  %v134 = vunpack.c.l.b16 %v43
  %v135 = vunpack.c.l.b16 %v44
  %v136 = vunpack.c.l.b16 %v45
  %v137 = vunpack.c.l.b16 %v46
  %v138 = vunpack.c.l.b16 %v47
  %v139 = vunpack.c.l.b16 %v48
  %v140 = vunpack.c.l.b16 %v49
  %v141 = vunpack.c.l.b16 %v50
  %v142 = vunpack.c.l.b16 %v51
  %v143 = vunpack.c.l.b16 %v52
  %v144 = vunpack.c.l.b16 %v53
  %v145 = vpack.c.b16 %v114, %v113
  %v146 = vpack.c.b16 %v116, %v115
  %v147 = vpack.c.b16 %v118, %v117
  %v148 = vpack.c.b16 %v120, %v119
  %v149 = vpack.c.b16 %v122, %v121
  %v150 = vpack.c.b16 %v124, %v123
  %v151 = vpack.c.b16 %v126, %v125
  %v152 = vpack.c.b16 %v128, %v127
  %v153 = vpack.c.b16 %v130, %v129
  %v154 = vpack.c.b16 %v132, %v131
  %v155 = vpack.c.b16 %v134, %v133
  %v156 = vpack.c.b16 %v136, %v135
  %v157 = vpack.c.b16 %v138, %v137
  %v158 = vpack.c.b16 %v140, %v139
  %v159 = vpack.c.b16 %v142, %v141
  %v160 = vpack.c.b16 %v144, %v143
  %177 = vmatprep.subr.bf16.mxu0 0
  %178 = vmatpush1.bf16.msra.mxu0 %v145
  %179 = vmatprep.subr.bf16.mxu0 0
  %180 = vmatpush1.bf16.msra.mxu0 %v146
  %181 = vmatprep.subr.bf16.mxu0 0
  %182 = vmatpush1.bf16.msra.mxu0 %v147
  %183 = vmatprep.subr.bf16.mxu0 0
  %184 = vmatpush1.bf16.msra.mxu0 %v148
  %185 = vmatprep.subr.bf16.mxu0 0
  %186 = vmatpush1.bf16.msra.mxu0 %v149
  %187 = vmatprep.subr.bf16.mxu0 0
  %188 = vmatpush1.bf16.msra.mxu0 %v150
  %189 = vmatprep.subr.bf16.mxu0 0
  %190 = vmatpush1.bf16.msra.mxu0 %v151
  %191 = vmatprep.subr.bf16.mxu0 0
  %192 = vmatpush1.bf16.msra.mxu0 %v152
  %193 = vmatprep.subr.bf16.mxu0 0
  %194 = vmatpush1.bf16.msra.mxu0 %v153
  %195 = vmatprep.subr.bf16.mxu0 0
  %196 = vmatpush1.bf16.msra.mxu0 %v154
  %197 = vmatprep.subr.bf16.mxu0 0
  %198 = vmatpush1.bf16.msra.mxu0 %v155
  %199 = vmatprep.subr.bf16.mxu0 0
  %200 = vmatpush1.bf16.msra.mxu0 %v156
  %201 = vmatprep.subr.bf16.mxu0 0
  %202 = vmatpush1.bf16.msra.mxu0 %v157
  %203 = vmatprep.subr.bf16.mxu0 0
  %204 = vmatpush1.bf16.msra.mxu0 %v158
  %205 = vmatprep.subr.bf16.mxu0 0
  %206 = vmatpush1.bf16.msra.mxu0 %v159
  %207 = vmatprep.subr.bf16.mxu0 0
  %208 = vmatpush1.bf16.msra.mxu0 %v160
  %209 = vmatprep.mubr.bf16.mxu0 %v74
  %210 = vmatmul.mubr.bf16.gmra.mrb[0].mxu0 %v73
  %v211 = vpop.f32.mrb[0].mxu0
  %v212 = vadd.f32 %v59, %v211
  %v213 = vpop.f32.mrb[0].mxu0
  %v214 = vpop.f32.mrb[0].mxu0
  %v215 = vadd.f32 %v59, %v214
  %v216 = vpop.f32.mrb[0].mxu0
  %217 = vmatprep.mubr.bf16.mxu0 %v76
  %218 = vmatmul.mubr.bf16.gmra.mrb[0].mxu0 %v75
  %v219 = vpop.f32.mrb[0].mxu0
  %v220 = vadd.f32 %v59, %v219
  %v221 = vpop.f32.mrb[0].mxu0
  %v222 = vpop.f32.mrb[0].mxu0
  %v223 = vadd.f32 %v59, %v222
  %v224 = vpop.f32.mrb[0].mxu0
  %225 = vdwg.mxu0
  %v226 = vld [vmem:[%s3] sm:$0xf]
  %v227 = vld [vmem:[%s3 + $0x4] sm:$0xf]
  %v228 = vld [vmem:[%s3 + $0x8] sm:$0xf]
  %v229 = vld [vmem:[%s3 + $0xc] sm:$0xf]
  %v230 = vunpack.c.l.bf16 %v226
  %v231 = vunpack.c.l.bf16 %v227
  %v232 = vunpack.c.l.bf16 %v228
  %v233 = vunpack.c.l.bf16 %v229
  %v234 = vadd.f32 %v212, %v230
  %v235 = vadd.f32 %v215, %v231
  %v236 = vadd.f32 %v220, %v232
  %v237 = vadd.f32 %v223, %v233
  %v238 = vmax.f32 %v234, 0.0
  %v239 = vmax.f32 %v235, 0.0
  %v240 = vmax.f32 %v236, 0.0
  %v241 = vmax.f32 %v237, 0.0
  %v242 = vpack.c.bf16 %v239, %v238
  %v243 = vpack.c.bf16 %v241, %v240
  %v246 = vunpack.c.l.b16 %v242
  %v247 = vunpack.c.h.b16 %v242
  %v248 = vunpack.c.l.b16 %v243
  %v249 = vunpack.c.h.b16 %v243
  %v250 = vpack.c.b16 %v246, %v246
  %v251 = vpack.c.b16 %v247, %v247
  %v252 = vpack.c.b16 %v248, %v248
  %v253 = vpack.c.b16 %v249, %v249
  %258 = vst [vmem:[%s4] sm:$0xf] %v250
  %259 = vst [vmem:[%s4 + $0x4] sm:$0xf] %v251
  %260 = vst [vmem:[%s4 + $0x8] sm:$0xf] %v252
  %261 = vst [vmem:[%s4 + $0xc] sm:$0xf] %v253
  // Predicated region
  $region18: #{_lambda_.25} parent=0 // pred_check
    _
  $region19: #{_lambda_.25} parent=0 // pred_check_branch
    %263 = sbr.rel (0) target = $region21
  $region20: #{_lambda_.25} parent=0 // pred_region
    _
  $region21: #{_lambda_.25} parent=0 // pred_fallthru
    _
  // Predicated region
  $region22: #{_lambda_.25} parent=0 // pred_check
    _
  $region23: #{_lambda_.25} parent=0 // pred_check_branch
    %265 = sbr.rel (0) target = $region25
  $region24: #{_lambda_.25} parent=0 // pred_region
    _
  $region25: #{_lambda_.25} parent=0 // pred_fallthru
    _

// kernel: _lambda_.26
$region0: #{_lambda_.26}
  #allocation0 [shape = 'u32[]', space=smem, size = 0x4, offset = 0x4, fixed_abs, tag = 'smem constant byte address 0x4 - core index']
  #allocation1 [shape = 'u32[144,128]{1,0:T(1,128)}', space=vmem, size = 0x12000, scoped, tag = 'internal scratch']
  %s0 = inlined_call_operand.vmem [shape: bf16[32,256], index: 0, kind: input, shape index: {}]
  %s1 = inlined_call_operand.vmem [shape: bf16[256,128], index: 1, kind: input, shape index: {}]
  %s2 = inlined_call_operand.vmem [shape: f32[1,128], index: 2, kind: input, shape index: {}]
  %s3 = inlined_call_operand.vmem [shape: bf16[32,128], index: 3, kind: output, shape index: {}]
  %s4 = sld [smem:[#allocation0]]
  $region22: #{_lambda_.26} parent=0
    _
  %s6 = ssub.s32 1, %s4
  %s7 = scalar_select 0, %s6, %s4
  // Predicated region
  $region2: #{_lambda_.26} parent=0 // pred_check
    _
  $region3: #{_lambda_.26} parent=0 // pred_check_branch
    %9 = sbr.rel (0) target = $region5
  $region4: #{_lambda_.26} parent=0 // pred_region
    _
  $region5: #{_lambda_.26} parent=0 // pred_fallthru
    _
  // Predicated region
  $region6: #{_lambda_.26} parent=0 // pred_check
    _
  $region7: #{_lambda_.26} parent=0 // pred_check_branch
    %11 = sbr.rel (0) target = $region9
  $region8: #{_lambda_.26} parent=0 // pred_region
    _
  $region9: #{_lambda_.26} parent=0 // pred_fallthru
    _
  // Predicated region
  $region10: #{_lambda_.26} parent=0 // pred_check
    _
  $region11: #{_lambda_.26} parent=0 // pred_check_branch
    %13 = sbr.rel (0) target = $region13
  $region12: #{_lambda_.26} parent=0 // pred_region
    _
  $region13: #{_lambda_.26} parent=0 // pred_fallthru
    _
  %v15 = vld [vmem:[%s0] sm:$0xff]
  %v16 = vld [vmem:[%s0 + $0x8] sm:$0xff]
  %v17 = vld [vmem:[%s0 + $0x10] sm:$0xff]
  %v18 = vld [vmem:[%s0 + $0x18] sm:$0xff]
  %v19 = vld [vmem:[%s1] sm:$0xf]
  %v20 = vld [vmem:[%s1 + $0x4] sm:$0xf]
  %v21 = vld [vmem:[%s1 + $0x8] sm:$0xf]
  %v22 = vld [vmem:[%s1 + $0xc] sm:$0xf]
  %v23 = vld [vmem:[%s1 + $0x10] sm:$0xf]
  %v24 = vld [vmem:[%s1 + $0x14] sm:$0xf]
  %v25 = vld [vmem:[%s1 + $0x18] sm:$0xf]
  %v26 = vld [vmem:[%s1 + $0x1c] sm:$0xf]
  %v27 = vld [vmem:[%s1 + $0x20] sm:$0xf]
  %v28 = vld [vmem:[%s1 + $0x24] sm:$0xf]
  %v29 = vld [vmem:[%s1 + $0x28] sm:$0xf]
  %v30 = vld [vmem:[%s1 + $0x2c] sm:$0xf]
  %v31 = vld [vmem:[%s1 + $0x30] sm:$0xf]
  %v32 = vld [vmem:[%s1 + $0x34] sm:$0xf]
  %v33 = vld [vmem:[%s1 + $0x38] sm:$0xf]
  %v34 = vld [vmem:[%s1 + $0x3c] sm:$0xf]
  %v35 = vld [vmem:[%s1 + $0x40] sm:$0xf]
  %v36 = vld [vmem:[%s1 + $0x44] sm:$0xf]
  %v37 = vld [vmem:[%s1 + $0x48] sm:$0xf]
  %v38 = vld [vmem:[%s1 + $0x4c] sm:$0xf]
  %v39 = vld [vmem:[%s1 + $0x50] sm:$0xf]
  %v40 = vld [vmem:[%s1 + $0x54] sm:$0xf]
  %v41 = vld [vmem:[%s1 + $0x58] sm:$0xf]
  %v42 = vld [vmem:[%s1 + $0x5c] sm:$0xf]
  %v43 = vld [vmem:[%s1 + $0x60] sm:$0xf]
  %v44 = vld [vmem:[%s1 + $0x64] sm:$0xf]
  %v45 = vld [vmem:[%s1 + $0x68] sm:$0xf]
  %v46 = vld [vmem:[%s1 + $0x6c] sm:$0xf]
  %v47 = vld [vmem:[%s1 + $0x70] sm:$0xf]
  %v48 = vld [vmem:[%s1 + $0x74] sm:$0xf]
  %v49 = vld [vmem:[%s1 + $0x78] sm:$0xf]
  %v50 = vld [vmem:[%s1 + $0x7c] sm:$0xf]
  %v51 = vld [vmem:[%s2] sm:$0x1]
  %v53 = vlaneseq
  %v54 = vshrl.u32 %v53, 7
  %v55 = vsub.s32 0, %v54
  %v56 = vrot.slane %v51, %v55
  %v62 = vunpack.c.l.b16 %v15
  %v63 = vunpack.c.h.b16 %v15
  %v64 = vunpack.c.l.b16 %v16
  %v65 = vunpack.c.h.b16 %v16
  %v66 = vunpack.c.l.b16 %v17
  %v67 = vunpack.c.h.b16 %v17
  %v68 = vunpack.c.l.b16 %v18
  %v69 = vunpack.c.h.b16 %v18
  %v70 = vpack.c.b16 %v64, %v62
  %v71 = vpack.c.b16 %v65, %v63
  %v72 = vpack.c.b16 %v68, %v66
  %v73 = vpack.c.b16 %v69, %v67
  %v110 = vunpack.c.l.b16 %v19
  %v111 = vunpack.c.l.b16 %v20
  %v112 = vunpack.c.l.b16 %v21
  %v113 = vunpack.c.l.b16 %v22
  %v114 = vunpack.c.l.b16 %v23
  %v115 = vunpack.c.l.b16 %v24
  %v116 = vunpack.c.l.b16 %v25
  %v117 = vunpack.c.l.b16 %v26
  %v118 = vunpack.c.l.b16 %v27
  %v119 = vunpack.c.l.b16 %v28
  %v120 = vunpack.c.l.b16 %v29
  %v121 = vunpack.c.l.b16 %v30
  %v122 = vunpack.c.l.b16 %v31
  %v123 = vunpack.c.l.b16 %v32
  %v124 = vunpack.c.l.b16 %v33
  %v125 = vunpack.c.l.b16 %v34
  %v126 = vunpack.c.l.b16 %v35
  %v127 = vunpack.c.l.b16 %v36
  %v128 = vunpack.c.l.b16 %v37
  %v129 = vunpack.c.l.b16 %v38
  %v130 = vunpack.c.l.b16 %v39
  %v131 = vunpack.c.l.b16 %v40
  %v132 = vunpack.c.l.b16 %v41
  %v133 = vunpack.c.l.b16 %v42
  %v134 = vunpack.c.l.b16 %v43
  %v135 = vunpack.c.l.b16 %v44
  %v136 = vunpack.c.l.b16 %v45
  %v137 = vunpack.c.l.b16 %v46
  %v138 = vunpack.c.l.b16 %v47
  %v139 = vunpack.c.l.b16 %v48
  %v140 = vunpack.c.l.b16 %v49
  %v141 = vunpack.c.l.b16 %v50
  %v142 = vpack.c.b16 %v111, %v110
  %v143 = vpack.c.b16 %v113, %v112
  %v144 = vpack.c.b16 %v115, %v114
  %v145 = vpack.c.b16 %v117, %v116
  %v146 = vpack.c.b16 %v119, %v118
  %v147 = vpack.c.b16 %v121, %v120
  %v148 = vpack.c.b16 %v123, %v122
  %v149 = vpack.c.b16 %v125, %v124
  %v150 = vpack.c.b16 %v127, %v126
  %v151 = vpack.c.b16 %v129, %v128
  %v152 = vpack.c.b16 %v131, %v130
  %v153 = vpack.c.b16 %v133, %v132
  %v154 = vpack.c.b16 %v135, %v134
  %v155 = vpack.c.b16 %v137, %v136
  %v156 = vpack.c.b16 %v139, %v138
  %v157 = vpack.c.b16 %v141, %v140
  %174 = vmatprep.subr.bf16.mxu0 0
  %175 = vmatpush1.bf16.msra.mxu0 %v142
  %176 = vmatprep.subr.bf16.mxu0 0
  %177 = vmatpush1.bf16.msra.mxu0 %v143
  %178 = vmatprep.subr.bf16.mxu0 0
  %179 = vmatpush1.bf16.msra.mxu0 %v144
  %180 = vmatprep.subr.bf16.mxu0 0
  %181 = vmatpush1.bf16.msra.mxu0 %v145
  %182 = vmatprep.subr.bf16.mxu0 0
  %183 = vmatpush1.bf16.msra.mxu0 %v146
  %184 = vmatprep.subr.bf16.mxu0 0
  %185 = vmatpush1.bf16.msra.mxu0 %v147
  %186 = vmatprep.subr.bf16.mxu0 0
  %187 = vmatpush1.bf16.msra.mxu0 %v148
  %188 = vmatprep.subr.bf16.mxu0 0
  %189 = vmatpush1.bf16.msra.mxu0 %v149
  %190 = vmatprep.subr.bf16.mxu0 0
  %191 = vmatpush1.bf16.msra.mxu0 %v150
  %192 = vmatprep.subr.bf16.mxu0 0
  %193 = vmatpush1.bf16.msra.mxu0 %v151
  %194 = vmatprep.subr.bf16.mxu0 0
  %195 = vmatpush1.bf16.msra.mxu0 %v152
  %196 = vmatprep.subr.bf16.mxu0 0
  %197 = vmatpush1.bf16.msra.mxu0 %v153
  %198 = vmatprep.subr.bf16.mxu0 0
  %199 = vmatpush1.bf16.msra.mxu0 %v154
  %200 = vmatprep.subr.bf16.mxu0 0
  %201 = vmatpush1.bf16.msra.mxu0 %v155
  %202 = vmatprep.subr.bf16.mxu0 0
  %203 = vmatpush1.bf16.msra.mxu0 %v156
  %204 = vmatprep.subr.bf16.mxu0 0
  %205 = vmatpush1.bf16.msra.mxu0 %v157
  %206 = vmatprep.mubr.bf16.mxu0 %v71
  %207 = vmatmul.mubr.bf16.gmra.mrb[0].mxu0 %v70
  %v208 = vpop.f32.mrb[0].mxu0
  %v209 = vadd.f32 %v56, %v208
  %v210 = vpop.f32.mrb[0].mxu0
  %v211 = vpop.f32.mrb[0].mxu0
  %v212 = vadd.f32 %v56, %v211
  %v213 = vpop.f32.mrb[0].mxu0
  %214 = vmatprep.mubr.bf16.mxu0 %v73
  %215 = vmatmul.mubr.bf16.gmra.mrb[0].mxu0 %v72
  %v216 = vpop.f32.mrb[0].mxu0
  %v217 = vadd.f32 %v56, %v216
  %v218 = vpop.f32.mrb[0].mxu0
  %v219 = vpop.f32.mrb[0].mxu0
  %v220 = vadd.f32 %v56, %v219
  %v221 = vpop.f32.mrb[0].mxu0
  %222 = vdwg.mxu0
  %v223 = vmax.f32 %v209, 0.0
  %v224 = vmax.f32 %v212, 0.0
  %v225 = vmax.f32 %v217, 0.0
  %v226 = vmax.f32 %v220, 0.0
  %v227 = vpack.c.bf16 %v224, %v223
  %v228 = vpack.c.bf16 %v226, %v225
  %v231 = vunpack.c.l.b16 %v227
  %v232 = vunpack.c.h.b16 %v227
  %v233 = vunpack.c.l.b16 %v228
  %v234 = vunpack.c.h.b16 %v228
  %v235 = vpack.c.b16 %v231, %v231
  %v236 = vpack.c.b16 %v232, %v232
  %v237 = vpack.c.b16 %v233, %v233
  %v238 = vpack.c.b16 %v234, %v234
  %243 = vst [vmem:[%s3] sm:$0xf] %v235
  %244 = vst [vmem:[%s3 + $0x4] sm:$0xf] %v236
  %245 = vst [vmem:[%s3 + $0x8] sm:$0xf] %v237
  %246 = vst [vmem:[%s3 + $0xc] sm:$0xf] %v238
  // Predicated region
  $region14: #{_lambda_.26} parent=0 // pred_check
    _
  $region15: #{_lambda_.26} parent=0 // pred_check_branch
    %248 = sbr.rel (0) target = $region17
  $region16: #{_lambda_.26} parent=0 // pred_region
    _
  $region17: #{_lambda_.26} parent=0 // pred_fallthru
    _
  // Predicated region
  $region18: #{_lambda_.26} parent=0 // pred_check
    _
  $region19: #{_lambda_.26} parent=0 // pred_check_branch
    %250 = sbr.rel (0) target = $region21
  $region20: #{_lambda_.26} parent=0 // pred_region
    _
  $region21: #{_lambda_.26} parent=0 // pred_fallthru
    _

// kernel: _lambda_.29
$region0: #{_lambda_.29}
  #allocation0 [shape = 'u32[]', space=smem, size = 0x4, offset = 0x4, fixed_abs, tag = 'smem constant byte address 0x4 - core index']
  #allocation1 [shape = 'u32[144,128]{1,0:T(1,128)}', space=vmem, size = 0x12000, scoped, tag = 'internal scratch']
  %s0 = inlined_call_operand.vmem [shape: bf16[8,384], index: 0, kind: input, shape index: {}]
  %s1 = inlined_call_operand.vmem [shape: bf16[384,128], index: 1, kind: input, shape index: {}]
  %s2 = inlined_call_operand.vmem [shape: f32[1,128], index: 2, kind: input, shape index: {}]
  %s3 = inlined_call_operand.vmem [shape: bf16[8,128], index: 3, kind: input, shape index: {}]
  %s4 = inlined_call_operand.vmem [shape: bf16[8,128], index: 4, kind: output, shape index: {}]
  %s5 = sld [smem:[#allocation0]]
  $region26: #{_lambda_.29} parent=0
    _
  %s7 = ssub.s32 1, %s5
  %s8 = scalar_select 0, %s7, %s5
  // Predicated region
  $region2: #{_lambda_.29} parent=0 // pred_check
    _
  $region3: #{_lambda_.29} parent=0 // pred_check_branch
    %10 = sbr.rel (0) target = $region5
  $region4: #{_lambda_.29} parent=0 // pred_region
    _
  $region5: #{_lambda_.29} parent=0 // pred_fallthru
    _
  // Predicated region
  $region6: #{_lambda_.29} parent=0 // pred_check
    _
  $region7: #{_lambda_.29} parent=0 // pred_check_branch
    %12 = sbr.rel (0) target = $region9
  $region8: #{_lambda_.29} parent=0 // pred_region
    _
  $region9: #{_lambda_.29} parent=0 // pred_fallthru
    _
  // Predicated region
  $region10: #{_lambda_.29} parent=0 // pred_check
    _
  $region11: #{_lambda_.29} parent=0 // pred_check_branch
    %14 = sbr.rel (0) target = $region13
  $region12: #{_lambda_.29} parent=0 // pred_region
    _
  $region13: #{_lambda_.29} parent=0 // pred_fallthru
    _
  // Predicated region
  $region14: #{_lambda_.29} parent=0 // pred_check
    _
  $region15: #{_lambda_.29} parent=0 // pred_check_branch
    %16 = sbr.rel (0) target = $region17
  $region16: #{_lambda_.29} parent=0 // pred_region
    _
  $region17: #{_lambda_.29} parent=0 // pred_fallthru
    _
  %v18 = vld [vmem:[%s0] sm:$0xff]
  %v19 = vld [vmem:[%s0 + $0x8] sm:$0xf]
  %v20 = vld [vmem:[%s1] sm:$0xf]
  %v21 = vld [vmem:[%s1 + $0x4] sm:$0xf]
  %v22 = vld [vmem:[%s1 + $0x8] sm:$0xf]
  %v23 = vld [vmem:[%s1 + $0xc] sm:$0xf]
  %v24 = vld [vmem:[%s1 + $0x10] sm:$0xf]
  %v25 = vld [vmem:[%s1 + $0x14] sm:$0xf]
  %v26 = vld [vmem:[%s1 + $0x18] sm:$0xf]
  %v27 = vld [vmem:[%s1 + $0x1c] sm:$0xf]
  %v28 = vld [vmem:[%s1 + $0x20] sm:$0xf]
  %v29 = vld [vmem:[%s1 + $0x24] sm:$0xf]
  %v30 = vld [vmem:[%s1 + $0x28] sm:$0xf]
  %v31 = vld [vmem:[%s1 + $0x2c] sm:$0xf]
  %v32 = vld [vmem:[%s1 + $0x30] sm:$0xf]
  %v33 = vld [vmem:[%s1 + $0x34] sm:$0xf]
  %v34 = vld [vmem:[%s1 + $0x38] sm:$0xf]
  %v35 = vld [vmem:[%s1 + $0x3c] sm:$0xf]
  %v36 = vld [vmem:[%s1 + $0x40] sm:$0xf]
  %v37 = vld [vmem:[%s1 + $0x44] sm:$0xf]
  %v38 = vld [vmem:[%s1 + $0x48] sm:$0xf]
  %v39 = vld [vmem:[%s1 + $0x4c] sm:$0xf]
  %v40 = vld [vmem:[%s1 + $0x50] sm:$0xf]
  %v41 = vld [vmem:[%s1 + $0x54] sm:$0xf]
  %v42 = vld [vmem:[%s1 + $0x58] sm:$0xf]
  %v43 = vld [vmem:[%s1 + $0x5c] sm:$0xf]
  %v44 = vld [vmem:[%s1 + $0x60] sm:$0xf]
  %v45 = vld [vmem:[%s1 + $0x64] sm:$0xf]
  %v46 = vld [vmem:[%s1 + $0x68] sm:$0xf]
  %v47 = vld [vmem:[%s1 + $0x6c] sm:$0xf]
  %v48 = vld [vmem:[%s1 + $0x70] sm:$0xf]
  %v49 = vld [vmem:[%s1 + $0x74] sm:$0xf]
  %v50 = vld [vmem:[%s1 + $0x78] sm:$0xf]
  %v51 = vld [vmem:[%s1 + $0x7c] sm:$0xf]
  %v52 = vld [vmem:[%s1 + $0x80] sm:$0xf]
  %v53 = vld [vmem:[%s1 + $0x84] sm:$0xf]
  %v54 = vld [vmem:[%s1 + $0x88] sm:$0xf]
  %v55 = vld [vmem:[%s1 + $0x8c] sm:$0xf]
  %v56 = vld [vmem:[%s1 + $0x90] sm:$0xf]
  %v57 = vld [vmem:[%s1 + $0x94] sm:$0xf]
  %v58 = vld [vmem:[%s1 + $0x98] sm:$0xf]
  %v59 = vld [vmem:[%s1 + $0x9c] sm:$0xf]
  %v60 = vld [vmem:[%s1 + $0xa0] sm:$0xf]
  %v61 = vld [vmem:[%s1 + $0xa4] sm:$0xf]
  %v62 = vld [vmem:[%s1 + $0xa8] sm:$0xf]
  %v63 = vld [vmem:[%s1 + $0xac] sm:$0xf]
  %v64 = vld [vmem:[%s1 + $0xb0] sm:$0xf]
  %v65 = vld [vmem:[%s1 + $0xb4] sm:$0xf]
  %v66 = vld [vmem:[%s1 + $0xb8] sm:$0xf]
  %v67 = vld [vmem:[%s1 + $0xbc] sm:$0xf]
  %v68 = vld [vmem:[%s2] sm:$0x1]
  %v70 = vlaneseq
  %v71 = vshrl.u32 %v70, 7
  %v72 = vsub.s32 0, %v71
  %v73 = vrot.slane %v68, %v72
  %v77 = vunpack.c.l.b16 %v18
  %v78 = vunpack.c.h.b16 %v18
  %v79 = vunpack.c.l.b16 %v19
  %v80 = vpack.c.b16 %v77, %v77
  %v81 = vpack.c.b16 %v78, %v78
  %v82 = vpack.c.b16 %v79, %v79
  %v134 = vunpack.c.l.b16 %v20
  %v135 = vunpack.c.l.b16 %v21
  %v136 = vunpack.c.l.b16 %v22
  %v137 = vunpack.c.l.b16 %v23
  %v138 = vunpack.c.l.b16 %v24
  %v139 = vunpack.c.l.b16 %v25
  %v140 = vunpack.c.l.b16 %v26
  %v141 = vunpack.c.l.b16 %v27
  %v142 = vunpack.c.l.b16 %v28
  %v143 = vunpack.c.l.b16 %v29
  %v144 = vunpack.c.l.b16 %v30
  %v145 = vunpack.c.l.b16 %v31
  %v146 = vunpack.c.l.b16 %v32
  %v147 = vunpack.c.l.b16 %v33
  %v148 = vunpack.c.l.b16 %v34
  %v149 = vunpack.c.l.b16 %v35
  %v150 = vunpack.c.l.b16 %v36
  %v151 = vunpack.c.l.b16 %v37
  %v152 = vunpack.c.l.b16 %v38
  %v153 = vunpack.c.l.b16 %v39
  %v154 = vunpack.c.l.b16 %v40
  %v155 = vunpack.c.l.b16 %v41
  %v156 = vunpack.c.l.b16 %v42
  %v157 = vunpack.c.l.b16 %v43
  %v158 = vunpack.c.l.b16 %v44
  %v159 = vunpack.c.l.b16 %v45
  %v160 = vunpack.c.l.b16 %v46
  %v161 = vunpack.c.l.b16 %v47
  %v162 = vunpack.c.l.b16 %v48
  %v163 = vunpack.c.l.b16 %v49
  %v164 = vunpack.c.l.b16 %v50
  %v165 = vunpack.c.l.b16 %v51
  %v166 = vunpack.c.l.b16 %v52
  %v167 = vunpack.c.l.b16 %v53
  %v168 = vunpack.c.l.b16 %v54
  %v169 = vunpack.c.l.b16 %v55
  %v170 = vunpack.c.l.b16 %v56
  %v171 = vunpack.c.l.b16 %v57
  %v172 = vunpack.c.l.b16 %v58
  %v173 = vunpack.c.l.b16 %v59
  %v174 = vunpack.c.l.b16 %v60
  %v175 = vunpack.c.l.b16 %v61
  %v176 = vunpack.c.l.b16 %v62
  %v177 = vunpack.c.l.b16 %v63
  %v178 = vunpack.c.l.b16 %v64
  %v179 = vunpack.c.l.b16 %v65
  %v180 = vunpack.c.l.b16 %v66
  %v181 = vunpack.c.l.b16 %v67
  %v182 = vpack.c.b16 %v135, %v134
  %v183 = vpack.c.b16 %v137, %v136
  %v184 = vpack.c.b16 %v139, %v138
  %v185 = vpack.c.b16 %v141, %v140
  %v186 = vpack.c.b16 %v143, %v142
  %v187 = vpack.c.b16 %v145, %v144
  %v188 = vpack.c.b16 %v147, %v146
  %v189 = vpack.c.b16 %v149, %v148
  %v190 = vpack.c.b16 %v151, %v150
  %v191 = vpack.c.b16 %v153, %v152
  %v192 = vpack.c.b16 %v155, %v154
  %v193 = vpack.c.b16 %v157, %v156
  %v194 = vpack.c.b16 %v159, %v158
  %v195 = vpack.c.b16 %v161, %v160
  %v196 = vpack.c.b16 %v163, %v162
  %v197 = vpack.c.b16 %v165, %v164
  %v198 = vpack.c.b16 %v167, %v166
  %v199 = vpack.c.b16 %v169, %v168
  %v200 = vpack.c.b16 %v171, %v170
  %v201 = vpack.c.b16 %v173, %v172
  %v202 = vpack.c.b16 %v175, %v174
  %v203 = vpack.c.b16 %v177, %v176
  %v204 = vpack.c.b16 %v179, %v178
  %v205 = vpack.c.b16 %v181, %v180
  %230 = vmatprep.subr.bf16.mxu0 0
  %231 = vmatpush1.bf16.msra.mxu0 %v182
  %232 = vmatprep.subr.bf16.mxu0 0
  %233 = vmatpush1.bf16.msra.mxu0 %v183
  %234 = vmatprep.subr.bf16.mxu0 0
  %235 = vmatpush1.bf16.msra.mxu0 %v184
  %236 = vmatprep.subr.bf16.mxu0 0
  %237 = vmatpush1.bf16.msra.mxu0 %v185
  %238 = vmatprep.subr.bf16.mxu0 0
  %239 = vmatpush1.bf16.msra.mxu0 %v186
  %240 = vmatprep.subr.bf16.mxu0 0
  %241 = vmatpush1.bf16.msra.mxu0 %v187
  %242 = vmatprep.subr.bf16.mxu0 0
  %243 = vmatpush1.bf16.msra.mxu0 %v188
  %244 = vmatprep.subr.bf16.mxu0 0
  %245 = vmatpush1.bf16.msra.mxu0 %v189
  %246 = vmatprep.subr.bf16.mxu0 0
  %247 = vmatpush1.bf16.msra.mxu0 %v190
  %248 = vmatprep.subr.bf16.mxu0 0
  %249 = vmatpush1.bf16.msra.mxu0 %v191
  %250 = vmatprep.subr.bf16.mxu0 0
  %251 = vmatpush1.bf16.msra.mxu0 %v192
  %252 = vmatprep.subr.bf16.mxu0 0
  %253 = vmatpush1.bf16.msra.mxu0 %v193
  %254 = vmatprep.subr.bf16.mxu0 0
  %255 = vmatpush1.bf16.msra.mxu0 %v194
  %256 = vmatprep.subr.bf16.mxu0 0
  %257 = vmatpush1.bf16.msra.mxu0 %v195
  %258 = vmatprep.subr.bf16.mxu0 0
  %259 = vmatpush1.bf16.msra.mxu0 %v196
  %260 = vmatprep.subr.bf16.mxu0 0
  %261 = vmatpush1.bf16.msra.mxu0 %v197
  %262 = vmatprep.mubr.bf16.mxu0 %v81
  %263 = vmatmul.mubr.bf16.gmra.mrb[0].mxu0 %v80
  %v264 = vpop.f32.mrb[0].mxu0
  %v265 = vadd.f32 %v73, %v264
  %v266 = vpop.f32.mrb[0].mxu0
  %v267 = vpop.f32.mrb[0].mxu0
  %v268 = vpop.f32.mrb[0].mxu0
  %269 = vdwg.mxu0
  %270 = vmatprep.subr.bf16.mxu0 0
  %271 = vmatpush1.bf16.msra.mxu0 %v198
  %272 = vmatprep.subr.bf16.mxu0 0
  %273 = vmatpush1.bf16.msra.mxu0 %v199
  %274 = vmatprep.subr.bf16.mxu0 0
  %275 = vmatpush1.bf16.msra.mxu0 %v200
  %276 = vmatprep.subr.bf16.mxu0 0
  %277 = vmatpush1.bf16.msra.mxu0 %v201
  %278 = vmatprep.subr.bf16.mxu0 0
  %279 = vmatpush1.bf16.msra.mxu0 %v202
  %280 = vmatprep.subr.bf16.mxu0 0
  %281 = vmatpush1.bf16.msra.mxu0 %v203
  %282 = vmatprep.subr.bf16.mxu0 0
  %283 = vmatpush1.bf16.msra.mxu0 %v204
  %284 = vmatprep.subr.bf16.mxu0 0
  %285 = vmatpush1.bf16.msra.mxu0 %v205
  %286 = vmatprep.subr.bf16.mxu0 0
  %287 = vmatpush1.bf16.msra.mxu0 0
  %288 = vmatprep.subr.bf16.mxu0 0
  %289 = vmatpush1.bf16.msra.mxu0 0
  %290 = vmatprep.subr.bf16.mxu0 0
  %291 = vmatpush1.bf16.msra.mxu0 0
  %292 = vmatprep.subr.bf16.mxu0 0
  %293 = vmatpush1.bf16.msra.mxu0 0
  %294 = vmatprep.subr.bf16.mxu0 0
  %295 = vmatpush1.bf16.msra.mxu0 0
  %296 = vmatprep.subr.bf16.mxu0 0
  %297 = vmatpush1.bf16.msra.mxu0 0
  %298 = vmatprep.subr.bf16.mxu0 0
  %299 = vmatpush1.bf16.msra.mxu0 0
  %300 = vmatprep.subr.bf16.mxu0 0
  %301 = vmatpush1.bf16.msra.mxu0 0
  %302 = vmatprep.mubr.bf16.mxu0 0
  %303 = vmatmul.mubr.bf16.gmra.mrb[0].mxu0 %v82
  %v304 = vpop.f32.mrb[0].mxu0
  %v305 = vadd.f32 %v265, %v304
  %v306 = vpop.f32.mrb[0].mxu0
  %v307 = vpop.f32.mrb[0].mxu0
  %v308 = vpop.f32.mrb[0].mxu0
  %309 = vdwg.mxu0
  %v310 = vld [vmem:[%s3] sm:$0xf]
  %v311 = vunpack.c.l.bf16 %v310
  %v312 = vadd.f32 %v305, %v311
  %v313 = vmax.f32 %v312, 0.0
  %v314 = vpack.c.bf16 %v313, %v313
  %315 = vst [vmem:[%s4] sm:$0xf] %v314
  // Predicated region
  $region18: #{_lambda_.29} parent=0 // pred_check
    _
  $region19: #{_lambda_.29} parent=0 // pred_check_branch
    %317 = sbr.rel (0) target = $region21
  $region20: #{_lambda_.29} parent=0 // pred_region
    _
  $region21: #{_lambda_.29} parent=0 // pred_fallthru
    _
  // Predicated region
  $region22: #{_lambda_.29} parent=0 // pred_check
    _
  $region23: #{_lambda_.29} parent=0 // pred_check_branch
    %319 = sbr.rel (0) target = $region25
  $region24: #{_lambda_.29} parent=0 // pred_region
    _
  $region25: #{_lambda_.29} parent=0 // pred_fallthru
    _

// kernel: _lambda_.30
$region0: #{_lambda_.30}
  #allocation0 [shape = 'u32[]', space=smem, size = 0x4, offset = 0x4, fixed_abs, tag = 'smem constant byte address 0x4 - core index']
  #allocation1 [shape = 'u32[144,128]{1,0:T(1,128)}', space=vmem, size = 0x12000, scoped, tag = 'internal scratch']
  %s0 = inlined_call_operand.vmem [shape: bf16[8,384], index: 0, kind: input, shape index: {}]
  %s1 = inlined_call_operand.vmem [shape: bf16[384,128], index: 1, kind: input, shape index: {}]
  %s2 = inlined_call_operand.vmem [shape: f32[1,128], index: 2, kind: input, shape index: {}]
  %s3 = inlined_call_operand.vmem [shape: bf16[8,128], index: 3, kind: output, shape index: {}]
  %s4 = sld [smem:[#allocation0]]
  $region22: #{_lambda_.30} parent=0
    _
  %s6 = ssub.s32 1, %s4
  %s7 = scalar_select 0, %s6, %s4
  // Predicated region
  $region2: #{_lambda_.30} parent=0 // pred_check
    _
  $region3: #{_lambda_.30} parent=0 // pred_check_branch
    %9 = sbr.rel (0) target = $region5
  $region4: #{_lambda_.30} parent=0 // pred_region
    _
  $region5: #{_lambda_.30} parent=0 // pred_fallthru
    _
  // Predicated region
  $region6: #{_lambda_.30} parent=0 // pred_check
    _
  $region7: #{_lambda_.30} parent=0 // pred_check_branch
    %11 = sbr.rel (0) target = $region9
  $region8: #{_lambda_.30} parent=0 // pred_region
    _
  $region9: #{_lambda_.30} parent=0 // pred_fallthru
    _
  // Predicated region
  $region10: #{_lambda_.30} parent=0 // pred_check
    _
  $region11: #{_lambda_.30} parent=0 // pred_check_branch
    %13 = sbr.rel (0) target = $region13
  $region12: #{_lambda_.30} parent=0 // pred_region
    _
  $region13: #{_lambda_.30} parent=0 // pred_fallthru
    _
  %v15 = vld [vmem:[%s0] sm:$0xff]
  %v16 = vld [vmem:[%s0 + $0x8] sm:$0xf]
  %v17 = vld [vmem:[%s1] sm:$0xf]
  %v18 = vld [vmem:[%s1 + $0x4] sm:$0xf]
  %v19 = vld [vmem:[%s1 + $0x8] sm:$0xf]
  %v20 = vld [vmem:[%s1 + $0xc] sm:$0xf]
  %v21 = vld [vmem:[%s1 + $0x10] sm:$0xf]
  %v22 = vld [vmem:[%s1 + $0x14] sm:$0xf]
  %v23 = vld [vmem:[%s1 + $0x18] sm:$0xf]
  %v24 = vld [vmem:[%s1 + $0x1c] sm:$0xf]
  %v25 = vld [vmem:[%s1 + $0x20] sm:$0xf]
  %v26 = vld [vmem:[%s1 + $0x24] sm:$0xf]
  %v27 = vld [vmem:[%s1 + $0x28] sm:$0xf]
  %v28 = vld [vmem:[%s1 + $0x2c] sm:$0xf]
  %v29 = vld [vmem:[%s1 + $0x30] sm:$0xf]
  %v30 = vld [vmem:[%s1 + $0x34] sm:$0xf]
  %v31 = vld [vmem:[%s1 + $0x38] sm:$0xf]
  %v32 = vld [vmem:[%s1 + $0x3c] sm:$0xf]
  %v33 = vld [vmem:[%s1 + $0x40] sm:$0xf]
  %v34 = vld [vmem:[%s1 + $0x44] sm:$0xf]
  %v35 = vld [vmem:[%s1 + $0x48] sm:$0xf]
  %v36 = vld [vmem:[%s1 + $0x4c] sm:$0xf]
  %v37 = vld [vmem:[%s1 + $0x50] sm:$0xf]
  %v38 = vld [vmem:[%s1 + $0x54] sm:$0xf]
  %v39 = vld [vmem:[%s1 + $0x58] sm:$0xf]
  %v40 = vld [vmem:[%s1 + $0x5c] sm:$0xf]
  %v41 = vld [vmem:[%s1 + $0x60] sm:$0xf]
  %v42 = vld [vmem:[%s1 + $0x64] sm:$0xf]
  %v43 = vld [vmem:[%s1 + $0x68] sm:$0xf]
  %v44 = vld [vmem:[%s1 + $0x6c] sm:$0xf]
  %v45 = vld [vmem:[%s1 + $0x70] sm:$0xf]
  %v46 = vld [vmem:[%s1 + $0x74] sm:$0xf]
  %v47 = vld [vmem:[%s1 + $0x78] sm:$0xf]
  %v48 = vld [vmem:[%s1 + $0x7c] sm:$0xf]
  %v49 = vld [vmem:[%s1 + $0x80] sm:$0xf]
  %v50 = vld [vmem:[%s1 + $0x84] sm:$0xf]
  %v51 = vld [vmem:[%s1 + $0x88] sm:$0xf]
  %v52 = vld [vmem:[%s1 + $0x8c] sm:$0xf]
  %v53 = vld [vmem:[%s1 + $0x90] sm:$0xf]
  %v54 = vld [vmem:[%s1 + $0x94] sm:$0xf]
  %v55 = vld [vmem:[%s1 + $0x98] sm:$0xf]
  %v56 = vld [vmem:[%s1 + $0x9c] sm:$0xf]
  %v57 = vld [vmem:[%s1 + $0xa0] sm:$0xf]
  %v58 = vld [vmem:[%s1 + $0xa4] sm:$0xf]
  %v59 = vld [vmem:[%s1 + $0xa8] sm:$0xf]
  %v60 = vld [vmem:[%s1 + $0xac] sm:$0xf]
  %v61 = vld [vmem:[%s1 + $0xb0] sm:$0xf]
  %v62 = vld [vmem:[%s1 + $0xb4] sm:$0xf]
  %v63 = vld [vmem:[%s1 + $0xb8] sm:$0xf]
  %v64 = vld [vmem:[%s1 + $0xbc] sm:$0xf]
  %v65 = vld [vmem:[%s2] sm:$0x1]
  %v67 = vlaneseq
  %v68 = vshrl.u32 %v67, 7
  %v69 = vsub.s32 0, %v68
  %v70 = vrot.slane %v65, %v69
  %v74 = vunpack.c.l.b16 %v15
  %v75 = vunpack.c.h.b16 %v15
  %v76 = vunpack.c.l.b16 %v16
  %v77 = vpack.c.b16 %v74, %v74
  %v78 = vpack.c.b16 %v75, %v75
  %v79 = vpack.c.b16 %v76, %v76
  %v131 = vunpack.c.l.b16 %v17
  %v132 = vunpack.c.l.b16 %v18
  %v133 = vunpack.c.l.b16 %v19
  %v134 = vunpack.c.l.b16 %v20
  %v135 = vunpack.c.l.b16 %v21
  %v136 = vunpack.c.l.b16 %v22
  %v137 = vunpack.c.l.b16 %v23
  %v138 = vunpack.c.l.b16 %v24
  %v139 = vunpack.c.l.b16 %v25
  %v140 = vunpack.c.l.b16 %v26
  %v141 = vunpack.c.l.b16 %v27
  %v142 = vunpack.c.l.b16 %v28
  %v143 = vunpack.c.l.b16 %v29
  %v144 = vunpack.c.l.b16 %v30
  %v145 = vunpack.c.l.b16 %v31
  %v146 = vunpack.c.l.b16 %v32
  %v147 = vunpack.c.l.b16 %v33
  %v148 = vunpack.c.l.b16 %v34
  %v149 = vunpack.c.l.b16 %v35
  %v150 = vunpack.c.l.b16 %v36
  %v151 = vunpack.c.l.b16 %v37
  %v152 = vunpack.c.l.b16 %v38
  %v153 = vunpack.c.l.b16 %v39
  %v154 = vunpack.c.l.b16 %v40
  %v155 = vunpack.c.l.b16 %v41
  %v156 = vunpack.c.l.b16 %v42
  %v157 = vunpack.c.l.b16 %v43
  %v158 = vunpack.c.l.b16 %v44
  %v159 = vunpack.c.l.b16 %v45
  %v160 = vunpack.c.l.b16 %v46
  %v161 = vunpack.c.l.b16 %v47
  %v162 = vunpack.c.l.b16 %v48
  %v163 = vunpack.c.l.b16 %v49
  %v164 = vunpack.c.l.b16 %v50
  %v165 = vunpack.c.l.b16 %v51
  %v166 = vunpack.c.l.b16 %v52
  %v167 = vunpack.c.l.b16 %v53
  %v168 = vunpack.c.l.b16 %v54
  %v169 = vunpack.c.l.b16 %v55
  %v170 = vunpack.c.l.b16 %v56
  %v171 = vunpack.c.l.b16 %v57
  %v172 = vunpack.c.l.b16 %v58
  %v173 = vunpack.c.l.b16 %v59
  %v174 = vunpack.c.l.b16 %v60
  %v175 = vunpack.c.l.b16 %v61
  %v176 = vunpack.c.l.b16 %v62
  %v177 = vunpack.c.l.b16 %v63
  %v178 = vunpack.c.l.b16 %v64
  %v179 = vpack.c.b16 %v132, %v131
  %v180 = vpack.c.b16 %v134, %v133
  %v181 = vpack.c.b16 %v136, %v135
  %v182 = vpack.c.b16 %v138, %v137
  %v183 = vpack.c.b16 %v140, %v139
  %v184 = vpack.c.b16 %v142, %v141
  %v185 = vpack.c.b16 %v144, %v143
  %v186 = vpack.c.b16 %v146, %v145
  %v187 = vpack.c.b16 %v148, %v147
  %v188 = vpack.c.b16 %v150, %v149
  %v189 = vpack.c.b16 %v152, %v151
  %v190 = vpack.c.b16 %v154, %v153
  %v191 = vpack.c.b16 %v156, %v155
  %v192 = vpack.c.b16 %v158, %v157
  %v193 = vpack.c.b16 %v160, %v159
  %v194 = vpack.c.b16 %v162, %v161
  %v195 = vpack.c.b16 %v164, %v163
  %v196 = vpack.c.b16 %v166, %v165
  %v197 = vpack.c.b16 %v168, %v167
  %v198 = vpack.c.b16 %v170, %v169
  %v199 = vpack.c.b16 %v172, %v171
  %v200 = vpack.c.b16 %v174, %v173
  %v201 = vpack.c.b16 %v176, %v175
  %v202 = vpack.c.b16 %v178, %v177
  %227 = vmatprep.subr.bf16.mxu0 0
  %228 = vmatpush1.bf16.msra.mxu0 %v179
  %229 = vmatprep.subr.bf16.mxu0 0
  %230 = vmatpush1.bf16.msra.mxu0 %v180
  %231 = vmatprep.subr.bf16.mxu0 0
  %232 = vmatpush1.bf16.msra.mxu0 %v181
  %233 = vmatprep.subr.bf16.mxu0 0
  %234 = vmatpush1.bf16.msra.mxu0 %v182
  %235 = vmatprep.subr.bf16.mxu0 0
  %236 = vmatpush1.bf16.msra.mxu0 %v183
  %237 = vmatprep.subr.bf16.mxu0 0
  %238 = vmatpush1.bf16.msra.mxu0 %v184
  %239 = vmatprep.subr.bf16.mxu0 0
  %240 = vmatpush1.bf16.msra.mxu0 %v185
  %241 = vmatprep.subr.bf16.mxu0 0
  %242 = vmatpush1.bf16.msra.mxu0 %v186
  %243 = vmatprep.subr.bf16.mxu0 0
  %244 = vmatpush1.bf16.msra.mxu0 %v187
  %245 = vmatprep.subr.bf16.mxu0 0
  %246 = vmatpush1.bf16.msra.mxu0 %v188
  %247 = vmatprep.subr.bf16.mxu0 0
  %248 = vmatpush1.bf16.msra.mxu0 %v189
  %249 = vmatprep.subr.bf16.mxu0 0
  %250 = vmatpush1.bf16.msra.mxu0 %v190
  %251 = vmatprep.subr.bf16.mxu0 0
  %252 = vmatpush1.bf16.msra.mxu0 %v191
  %253 = vmatprep.subr.bf16.mxu0 0
  %254 = vmatpush1.bf16.msra.mxu0 %v192
  %255 = vmatprep.subr.bf16.mxu0 0
  %256 = vmatpush1.bf16.msra.mxu0 %v193
  %257 = vmatprep.subr.bf16.mxu0 0
  %258 = vmatpush1.bf16.msra.mxu0 %v194
  %259 = vmatprep.mubr.bf16.mxu0 %v78
  %260 = vmatmul.mubr.bf16.gmra.mrb[0].mxu0 %v77
  %v261 = vpop.f32.mrb[0].mxu0
  %v262 = vadd.f32 %v70, %v261
  %v263 = vpop.f32.mrb[0].mxu0
  %v264 = vpop.f32.mrb[0].mxu0
  %v265 = vpop.f32.mrb[0].mxu0
  %266 = vdwg.mxu0
  %267 = vmatprep.subr.bf16.mxu0 0
  %268 = vmatpush1.bf16.msra.mxu0 %v195
  %269 = vmatprep.subr.bf16.mxu0 0
  %270 = vmatpush1.bf16.msra.mxu0 %v196
  %271 = vmatprep.subr.bf16.mxu0 0
  %272 = vmatpush1.bf16.msra.mxu0 %v197
  %273 = vmatprep.subr.bf16.mxu0 0
  %274 = vmatpush1.bf16.msra.mxu0 %v198
  %275 = vmatprep.subr.bf16.mxu0 0
  %276 = vmatpush1.bf16.msra.mxu0 %v199
  %277 = vmatprep.subr.bf16.mxu0 0
  %278 = vmatpush1.bf16.msra.mxu0 %v200
  %279 = vmatprep.subr.bf16.mxu0 0
  %280 = vmatpush1.bf16.msra.mxu0 %v201
  %281 = vmatprep.subr.bf16.mxu0 0
  %282 = vmatpush1.bf16.msra.mxu0 %v202
  %283 = vmatprep.subr.bf16.mxu0 0
  %284 = vmatpush1.bf16.msra.mxu0 0
  %285 = vmatprep.subr.bf16.mxu0 0
  %286 = vmatpush1.bf16.msra.mxu0 0
  %287 = vmatprep.subr.bf16.mxu0 0
  %288 = vmatpush1.bf16.msra.mxu0 0
  %289 = vmatprep.subr.bf16.mxu0 0
  %290 = vmatpush1.bf16.msra.mxu0 0
  %291 = vmatprep.subr.bf16.mxu0 0
  %292 = vmatpush1.bf16.msra.mxu0 0
  %293 = vmatprep.subr.bf16.mxu0 0
  %294 = vmatpush1.bf16.msra.mxu0 0
  %295 = vmatprep.subr.bf16.mxu0 0
  %296 = vmatpush1.bf16.msra.mxu0 0
  %297 = vmatprep.subr.bf16.mxu0 0
  %298 = vmatpush1.bf16.msra.mxu0 0
  %299 = vmatprep.mubr.bf16.mxu0 0
  %300 = vmatmul.mubr.bf16.gmra.mrb[0].mxu0 %v79
  %v301 = vpop.f32.mrb[0].mxu0
  %v302 = vadd.f32 %v262, %v301
  %v303 = vpop.f32.mrb[0].mxu0
  %v304 = vpop.f32.mrb[0].mxu0
  %v305 = vpop.f32.mrb[0].mxu0
  %306 = vdwg.mxu0
  %v307 = vmax.f32 %v302, 0.0
  %v308 = vpack.c.bf16 %v307, %v307
  %309 = vst [vmem:[%s3] sm:$0xf] %v308
  // Predicated region
  $region14: #{_lambda_.30} parent=0 // pred_check
    _
  $region15: #{_lambda_.30} parent=0 // pred_check_branch
    %311 = sbr.rel (0) target = $region17
  $region16: #{_lambda_.30} parent=0 // pred_region
    _
  $region17: #{_lambda_.30} parent=0 // pred_fallthru
    _
  // Predicated region
  $region18: #{_lambda_.30} parent=0 // pred_check
    _
  $region19: #{_lambda_.30} parent=0 // pred_check_branch
    %313 = sbr.rel (0) target = $region21
  $region20: #{_lambda_.30} parent=0 // pred_region
    _
  $region21: #{_lambda_.30} parent=0 // pred_fallthru
    _

// kernel: _lambda_.28
$region0: #{_lambda_.28}
  #allocation0 [shape = 'u32[]', space=smem, size = 0x4, offset = 0x4, fixed_abs, tag = 'smem constant byte address 0x4 - core index']
  #allocation1 [shape = 'u32[144,128]{1,0:T(1,128)}', space=vmem, size = 0x12000, scoped, tag = 'internal scratch']
  %s0 = inlined_call_operand.vmem [shape: bf16[8,256], index: 0, kind: input, shape index: {}]
  %s1 = inlined_call_operand.vmem [shape: bf16[256,128], index: 1, kind: input, shape index: {}]
  %s2 = inlined_call_operand.vmem [shape: f32[1,128], index: 2, kind: input, shape index: {}]
  %s3 = inlined_call_operand.vmem [shape: bf16[256,128], index: 3, kind: input, shape index: {}]
  %s4 = inlined_call_operand.vmem [shape: f32[1,128], index: 4, kind: input, shape index: {}]
  %s5 = inlined_call_operand.vmem [shape: bf16[8,128], index: 5, kind: output, shape index: {0}]
  %s6 = inlined_call_operand.vmem [shape: bf16[8,128], index: 6, kind: output, shape index: {1}]
  %7 = xla_tuple %s5, %s6
  %s8 = sld [smem:[#allocation0]]
  $region38: #{_lambda_.28} parent=0
    _
  %s10 = ssub.s32 1, %s8
  %s11 = scalar_select 0, %s10, %s8
  // Predicated region
  $region2: #{_lambda_.28} parent=0 // pred_check
    _
  $region3: #{_lambda_.28} parent=0 // pred_check_branch
    %13 = sbr.rel (0) target = $region5
  $region4: #{_lambda_.28} parent=0 // pred_region
    _
  $region5: #{_lambda_.28} parent=0 // pred_fallthru
    _
  // Predicated region
  $region6: #{_lambda_.28} parent=0 // pred_check
    _
  $region7: #{_lambda_.28} parent=0 // pred_check_branch
    %15 = sbr.rel (0) target = $region9
  $region8: #{_lambda_.28} parent=0 // pred_region
    _
  $region9: #{_lambda_.28} parent=0 // pred_fallthru
    _
  // Predicated region
  $region10: #{_lambda_.28} parent=0 // pred_check
    _
  $region11: #{_lambda_.28} parent=0 // pred_check_branch
    %17 = sbr.rel (0) target = $region13
  $region12: #{_lambda_.28} parent=0 // pred_region
    _
  $region13: #{_lambda_.28} parent=0 // pred_fallthru
    _
  // Predicated region
  $region14: #{_lambda_.28} parent=0 // pred_check
    _
  $region15: #{_lambda_.28} parent=0 // pred_check_branch
    %19 = sbr.rel (0) target = $region17
  $region16: #{_lambda_.28} parent=0 // pred_region
    _
  $region17: #{_lambda_.28} parent=0 // pred_fallthru
    _
  // Predicated region
  $region18: #{_lambda_.28} parent=0 // pred_check
    _
  $region19: #{_lambda_.28} parent=0 // pred_check_branch
    %21 = sbr.rel (0) target = $region21
  $region20: #{_lambda_.28} parent=0 // pred_region
    _
  $region21: #{_lambda_.28} parent=0 // pred_fallthru
    _
  %v23 = vld [vmem:[%s0] sm:$0xff]
  %v24 = vld [vmem:[%s1] sm:$0xf]
  %v25 = vld [vmem:[%s1 + $0x4] sm:$0xf]
  %v26 = vld [vmem:[%s1 + $0x8] sm:$0xf]
  %v27 = vld [vmem:[%s1 + $0xc] sm:$0xf]
  %v28 = vld [vmem:[%s1 + $0x10] sm:$0xf]
  %v29 = vld [vmem:[%s1 + $0x14] sm:$0xf]
  %v30 = vld [vmem:[%s1 + $0x18] sm:$0xf]
  %v31 = vld [vmem:[%s1 + $0x1c] sm:$0xf]
  %v32 = vld [vmem:[%s1 + $0x20] sm:$0xf]
  %v33 = vld [vmem:[%s1 + $0x24] sm:$0xf]
  %v34 = vld [vmem:[%s1 + $0x28] sm:$0xf]
  %v35 = vld [vmem:[%s1 + $0x2c] sm:$0xf]
  %v36 = vld [vmem:[%s1 + $0x30] sm:$0xf]
  %v37 = vld [vmem:[%s1 + $0x34] sm:$0xf]
  %v38 = vld [vmem:[%s1 + $0x38] sm:$0xf]
  %v39 = vld [vmem:[%s1 + $0x3c] sm:$0xf]
  %v40 = vld [vmem:[%s1 + $0x40] sm:$0xf]
  %v41 = vld [vmem:[%s1 + $0x44] sm:$0xf]
  %v42 = vld [vmem:[%s1 + $0x48] sm:$0xf]
  %v43 = vld [vmem:[%s1 + $0x4c] sm:$0xf]
  %v44 = vld [vmem:[%s1 + $0x50] sm:$0xf]
  %v45 = vld [vmem:[%s1 + $0x54] sm:$0xf]
  %v46 = vld [vmem:[%s1 + $0x58] sm:$0xf]
  %v47 = vld [vmem:[%s1 + $0x5c] sm:$0xf]
  %v48 = vld [vmem:[%s1 + $0x60] sm:$0xf]
  %v49 = vld [vmem:[%s1 + $0x64] sm:$0xf]
  %v50 = vld [vmem:[%s1 + $0x68] sm:$0xf]
  %v51 = vld [vmem:[%s1 + $0x6c] sm:$0xf]
  %v52 = vld [vmem:[%s1 + $0x70] sm:$0xf]
  %v53 = vld [vmem:[%s1 + $0x74] sm:$0xf]
  %v54 = vld [vmem:[%s1 + $0x78] sm:$0xf]
  %v55 = vld [vmem:[%s1 + $0x7c] sm:$0xf]
  %v56 = vld [vmem:[%s2] sm:$0x1]
  %v58 = vlaneseq
  %v59 = vshrl.u32 %v58, 7
  %v60 = vsub.s32 0, %v59
  %v61 = vrot.slane %v56, %v60
  %v64 = vunpack.c.l.b16 %v23
  %v65 = vunpack.c.h.b16 %v23
  %v66 = vpack.c.b16 %v64, %v64
  %v67 = vpack.c.b16 %v65, %v65
  %v102 = vunpack.c.l.b16 %v24
  %v103 = vunpack.c.l.b16 %v25
  %v104 = vunpack.c.l.b16 %v26
  %v105 = vunpack.c.l.b16 %v27
  %v106 = vunpack.c.l.b16 %v28
  %v107 = vunpack.c.l.b16 %v29
  %v108 = vunpack.c.l.b16 %v30
  %v109 = vunpack.c.l.b16 %v31
  %v110 = vunpack.c.l.b16 %v32
  %v111 = vunpack.c.l.b16 %v33
  %v112 = vunpack.c.l.b16 %v34
  %v113 = vunpack.c.l.b16 %v35
  %v114 = vunpack.c.l.b16 %v36
  %v115 = vunpack.c.l.b16 %v37
  %v116 = vunpack.c.l.b16 %v38
  %v117 = vunpack.c.l.b16 %v39
  %v118 = vunpack.c.l.b16 %v40
  %v119 = vunpack.c.l.b16 %v41
  %v120 = vunpack.c.l.b16 %v42
  %v121 = vunpack.c.l.b16 %v43
  %v122 = vunpack.c.l.b16 %v44
  %v123 = vunpack.c.l.b16 %v45
  %v124 = vunpack.c.l.b16 %v46
  %v125 = vunpack.c.l.b16 %v47
  %v126 = vunpack.c.l.b16 %v48
  %v127 = vunpack.c.l.b16 %v49
  %v128 = vunpack.c.l.b16 %v50
  %v129 = vunpack.c.l.b16 %v51
  %v130 = vunpack.c.l.b16 %v52
  %v131 = vunpack.c.l.b16 %v53
  %v132 = vunpack.c.l.b16 %v54
  %v133 = vunpack.c.l.b16 %v55
  %v134 = vpack.c.b16 %v103, %v102
  %v135 = vpack.c.b16 %v105, %v104
  %v136 = vpack.c.b16 %v107, %v106
  %v137 = vpack.c.b16 %v109, %v108
  %v138 = vpack.c.b16 %v111, %v110
  %v139 = vpack.c.b16 %v113, %v112
  %v140 = vpack.c.b16 %v115, %v114
  %v141 = vpack.c.b16 %v117, %v116
  %v142 = vpack.c.b16 %v119, %v118
  %v143 = vpack.c.b16 %v121, %v120
  %v144 = vpack.c.b16 %v123, %v122
  %v145 = vpack.c.b16 %v125, %v124
  %v146 = vpack.c.b16 %v127, %v126
  %v147 = vpack.c.b16 %v129, %v128
  %v148 = vpack.c.b16 %v131, %v130
  %v149 = vpack.c.b16 %v133, %v132
  %166 = vmatprep.subr.bf16.mxu0 0
  %167 = vmatpush1.bf16.msra.mxu0 %v134
  %168 = vmatprep.subr.bf16.mxu0 0
  %169 = vmatpush1.bf16.msra.mxu0 %v135
  %170 = vmatprep.subr.bf16.mxu0 0
  %171 = vmatpush1.bf16.msra.mxu0 %v136
  %172 = vmatprep.subr.bf16.mxu0 0
  %173 = vmatpush1.bf16.msra.mxu0 %v137
  %174 = vmatprep.subr.bf16.mxu0 0
  %175 = vmatpush1.bf16.msra.mxu0 %v138
  %176 = vmatprep.subr.bf16.mxu0 0
  %177 = vmatpush1.bf16.msra.mxu0 %v139
  %178 = vmatprep.subr.bf16.mxu0 0
  %179 = vmatpush1.bf16.msra.mxu0 %v140
  %180 = vmatprep.subr.bf16.mxu0 0
  %181 = vmatpush1.bf16.msra.mxu0 %v141
  %182 = vmatprep.subr.bf16.mxu0 0
  %183 = vmatpush1.bf16.msra.mxu0 %v142
  %184 = vmatprep.subr.bf16.mxu0 0
  %185 = vmatpush1.bf16.msra.mxu0 %v143
  %186 = vmatprep.subr.bf16.mxu0 0
  %187 = vmatpush1.bf16.msra.mxu0 %v144
  %188 = vmatprep.subr.bf16.mxu0 0
  %189 = vmatpush1.bf16.msra.mxu0 %v145
  %190 = vmatprep.subr.bf16.mxu0 0
  %191 = vmatpush1.bf16.msra.mxu0 %v146
  %192 = vmatprep.subr.bf16.mxu0 0
  %193 = vmatpush1.bf16.msra.mxu0 %v147
  %194 = vmatprep.subr.bf16.mxu0 0
  %195 = vmatpush1.bf16.msra.mxu0 %v148
  %196 = vmatprep.subr.bf16.mxu0 0
  %197 = vmatpush1.bf16.msra.mxu0 %v149
  %198 = vmatprep.mubr.bf16.mxu0 %v67
  %199 = vmatmul.mubr.bf16.gmra.mrb[0].mxu0 %v66
  %v200 = vpop.f32.mrb[0].mxu0
  %v201 = vadd.f32 %v61, %v200
  %v202 = vpop.f32.mrb[0].mxu0
  %v203 = vpop.f32.mrb[0].mxu0
  %v204 = vpop.f32.mrb[0].mxu0
  %205 = vdwg.mxu0
  %v206 = vmax.f32 %v201, 0.0
  %v207 = vpack.c.bf16 %v206, %v206
  %208 = vst [vmem:[%s5] sm:$0xf] %v207
  %v209 = vld [vmem:[%s3] sm:$0xf]
  %v210 = vld [vmem:[%s3 + $0x4] sm:$0xf]
  %v211 = vld [vmem:[%s3 + $0x8] sm:$0xf]
  %v212 = vld [vmem:[%s3 + $0xc] sm:$0xf]
  %v213 = vld [vmem:[%s3 + $0x10] sm:$0xf]
  %v214 = vld [vmem:[%s3 + $0x14] sm:$0xf]
  %v215 = vld [vmem:[%s3 + $0x18] sm:$0xf]
  %v216 = vld [vmem:[%s3 + $0x1c] sm:$0xf]
  %v217 = vld [vmem:[%s3 + $0x20] sm:$0xf]
  %v218 = vld [vmem:[%s3 + $0x24] sm:$0xf]
  %v219 = vld [vmem:[%s3 + $0x28] sm:$0xf]
  %v220 = vld [vmem:[%s3 + $0x2c] sm:$0xf]
  %v221 = vld [vmem:[%s3 + $0x30] sm:$0xf]
  %v222 = vld [vmem:[%s3 + $0x34] sm:$0xf]
  %v223 = vld [vmem:[%s3 + $0x38] sm:$0xf]
  %v224 = vld [vmem:[%s3 + $0x3c] sm:$0xf]
  %v225 = vld [vmem:[%s3 + $0x40] sm:$0xf]
  %v226 = vld [vmem:[%s3 + $0x44] sm:$0xf]
  %v227 = vld [vmem:[%s3 + $0x48] sm:$0xf]
  %v228 = vld [vmem:[%s3 + $0x4c] sm:$0xf]
  %v229 = vld [vmem:[%s3 + $0x50] sm:$0xf]
  %v230 = vld [vmem:[%s3 + $0x54] sm:$0xf]
  %v231 = vld [vmem:[%s3 + $0x58] sm:$0xf]
  %v232 = vld [vmem:[%s3 + $0x5c] sm:$0xf]
  %v233 = vld [vmem:[%s3 + $0x60] sm:$0xf]
  %v234 = vld [vmem:[%s3 + $0x64] sm:$0xf]
  %v235 = vld [vmem:[%s3 + $0x68] sm:$0xf]
  %v236 = vld [vmem:[%s3 + $0x6c] sm:$0xf]
  %v237 = vld [vmem:[%s3 + $0x70] sm:$0xf]
  %v238 = vld [vmem:[%s3 + $0x74] sm:$0xf]
  %v239 = vld [vmem:[%s3 + $0x78] sm:$0xf]
  %v240 = vld [vmem:[%s3 + $0x7c] sm:$0xf]
  %v241 = vld [vmem:[%s4] sm:$0x1]
  %v243 = vlaneseq
  %v244 = vshrl.u32 %v243, 7
  %v245 = vsub.s32 0, %v244
  %v246 = vrot.slane %v241, %v245
  %v280 = vunpack.c.l.b16 %v209
  %v281 = vunpack.c.l.b16 %v210
  %v282 = vunpack.c.l.b16 %v211
  %v283 = vunpack.c.l.b16 %v212
  %v284 = vunpack.c.l.b16 %v213
  %v285 = vunpack.c.l.b16 %v214
  %v286 = vunpack.c.l.b16 %v215
  %v287 = vunpack.c.l.b16 %v216
  %v288 = vunpack.c.l.b16 %v217
  %v289 = vunpack.c.l.b16 %v218
  %v290 = vunpack.c.l.b16 %v219
  %v291 = vunpack.c.l.b16 %v220
  %v292 = vunpack.c.l.b16 %v221
  %v293 = vunpack.c.l.b16 %v222
  %v294 = vunpack.c.l.b16 %v223
  %v295 = vunpack.c.l.b16 %v224
  %v296 = vunpack.c.l.b16 %v225
  %v297 = vunpack.c.l.b16 %v226
  %v298 = vunpack.c.l.b16 %v227
  %v299 = vunpack.c.l.b16 %v228
  %v300 = vunpack.c.l.b16 %v229
  %v301 = vunpack.c.l.b16 %v230
  %v302 = vunpack.c.l.b16 %v231
  %v303 = vunpack.c.l.b16 %v232
  %v304 = vunpack.c.l.b16 %v233
  %v305 = vunpack.c.l.b16 %v234
  %v306 = vunpack.c.l.b16 %v235
  %v307 = vunpack.c.l.b16 %v236
  %v308 = vunpack.c.l.b16 %v237
  %v309 = vunpack.c.l.b16 %v238
  %v310 = vunpack.c.l.b16 %v239
  %v311 = vunpack.c.l.b16 %v240
  %v312 = vpack.c.b16 %v281, %v280
  %v313 = vpack.c.b16 %v283, %v282
  %v314 = vpack.c.b16 %v285, %v284
  %v315 = vpack.c.b16 %v287, %v286
  %v316 = vpack.c.b16 %v289, %v288
  %v317 = vpack.c.b16 %v291, %v290
  %v318 = vpack.c.b16 %v293, %v292
  %v319 = vpack.c.b16 %v295, %v294
  %v320 = vpack.c.b16 %v297, %v296
  %v321 = vpack.c.b16 %v299, %v298
  %v322 = vpack.c.b16 %v301, %v300
  %v323 = vpack.c.b16 %v303, %v302
  %v324 = vpack.c.b16 %v305, %v304
  %v325 = vpack.c.b16 %v307, %v306
  %v326 = vpack.c.b16 %v309, %v308
  %v327 = vpack.c.b16 %v311, %v310
  %344 = vmatprep.subr.bf16.mxu0 0
  %345 = vmatpush1.bf16.msra.mxu0 %v312
  %346 = vmatprep.subr.bf16.mxu0 0
  %347 = vmatpush1.bf16.msra.mxu0 %v313
  %348 = vmatprep.subr.bf16.mxu0 0
  %349 = vmatpush1.bf16.msra.mxu0 %v314
  %350 = vmatprep.subr.bf16.mxu0 0
  %351 = vmatpush1.bf16.msra.mxu0 %v315
  %352 = vmatprep.subr.bf16.mxu0 0
  %353 = vmatpush1.bf16.msra.mxu0 %v316
  %354 = vmatprep.subr.bf16.mxu0 0
  %355 = vmatpush1.bf16.msra.mxu0 %v317
  %356 = vmatprep.subr.bf16.mxu0 0
  %357 = vmatpush1.bf16.msra.mxu0 %v318
  %358 = vmatprep.subr.bf16.mxu0 0
  %359 = vmatpush1.bf16.msra.mxu0 %v319
  %360 = vmatprep.subr.bf16.mxu0 0
  %361 = vmatpush1.bf16.msra.mxu0 %v320
  %362 = vmatprep.subr.bf16.mxu0 0
  %363 = vmatpush1.bf16.msra.mxu0 %v321
  %364 = vmatprep.subr.bf16.mxu0 0
  %365 = vmatpush1.bf16.msra.mxu0 %v322
  %366 = vmatprep.subr.bf16.mxu0 0
  %367 = vmatpush1.bf16.msra.mxu0 %v323
  %368 = vmatprep.subr.bf16.mxu0 0
  %369 = vmatpush1.bf16.msra.mxu0 %v324
  %370 = vmatprep.subr.bf16.mxu0 0
  %371 = vmatpush1.bf16.msra.mxu0 %v325
  %372 = vmatprep.subr.bf16.mxu0 0
  %373 = vmatpush1.bf16.msra.mxu0 %v326
  %374 = vmatprep.subr.bf16.mxu0 0
  %375 = vmatpush1.bf16.msra.mxu0 %v327
  %376 = vmatprep.mubr.bf16.mxu0 %v67
  %377 = vmatmul.mubr.bf16.gmra.mrb[0].mxu0 %v66
  %v378 = vpop.f32.mrb[0].mxu0
  %v379 = vadd.f32 %v246, %v378
  %v380 = vpop.f32.mrb[0].mxu0
  %v381 = vpop.f32.mrb[0].mxu0
  %v382 = vpop.f32.mrb[0].mxu0
  %383 = vdwg.mxu0
  %v384 = vpack.c.bf16 %v379, %v379
  %385 = vst [vmem:[%s6] sm:$0xf] %v384
  // Predicated region
  $region22: #{_lambda_.28} parent=0 // pred_check
    _
  $region23: #{_lambda_.28} parent=0 // pred_check_branch
    %387 = sbr.rel (0) target = $region25
  $region24: #{_lambda_.28} parent=0 // pred_region
    _
  $region25: #{_lambda_.28} parent=0 // pred_fallthru
    _
  // Predicated region
  $region26: #{_lambda_.28} parent=0 // pred_check
    _
  $region27: #{_lambda_.28} parent=0 // pred_check_branch
    %389 = sbr.rel (0) target = $region29
  $region28: #{_lambda_.28} parent=0 // pred_region
    _
  $region29: #{_lambda_.28} parent=0 // pred_fallthru
    _
  // Predicated region
  $region30: #{_lambda_.28} parent=0 // pred_check
    _
  $region31: #{_lambda_.28} parent=0 // pred_check_branch
    %391 = sbr.rel (0) target = $region33
  $region32: #{_lambda_.28} parent=0 // pred_region
    _
  $region33: #{_lambda_.28} parent=0 // pred_fallthru
    _
  // Predicated region
  $region34: #{_lambda_.28} parent=0 // pred_check
    _
  $region35: #{_lambda_.28} parent=0 // pred_check_branch
    %393 = sbr.rel (0) target = $region37
  $region36: #{_lambda_.28} parent=0 // pred_region
    _
  $region37: #{_lambda_.28} parent=0 // pred_fallthru
    _

// kernel: _lambda_.32
$region0: #{_lambda_.32}
  #allocation0 [shape = 'u32[]', space=smem, size = 0x4, offset = 0x4, fixed_abs, tag = 'smem constant byte address 0x4 - core index']
  #allocation1 [shape = 'u32[144,128]{1,0:T(1,128)}', space=vmem, size = 0x12000, scoped, tag = 'internal scratch']
  %s0 = inlined_call_operand.vmem [shape: bf16[8,384], index: 0, kind: input, shape index: {}]
  %s1 = inlined_call_operand.vmem [shape: bf16[384,128], index: 1, kind: input, shape index: {}]
  %s2 = inlined_call_operand.vmem [shape: f32[1,128], index: 2, kind: input, shape index: {}]
  %s3 = inlined_call_operand.vmem [shape: bf16[384,128], index: 3, kind: input, shape index: {}]
  %s4 = inlined_call_operand.vmem [shape: f32[1,128], index: 4, kind: input, shape index: {}]
  %s5 = inlined_call_operand.vmem [shape: bf16[8,128], index: 5, kind: output, shape index: {0}]
  %s6 = inlined_call_operand.vmem [shape: bf16[8,128], index: 6, kind: output, shape index: {1}]
  %7 = xla_tuple %s5, %s6
  %s8 = sld [smem:[#allocation0]]
  $region38: #{_lambda_.32} parent=0
    _
  %s10 = ssub.s32 1, %s8
  %s11 = scalar_select 0, %s10, %s8
  // Predicated region
  $region2: #{_lambda_.32} parent=0 // pred_check
    _
  $region3: #{_lambda_.32} parent=0 // pred_check_branch
    %13 = sbr.rel (0) target = $region5
  $region4: #{_lambda_.32} parent=0 // pred_region
    _
  $region5: #{_lambda_.32} parent=0 // pred_fallthru
    _
  // Predicated region
  $region6: #{_lambda_.32} parent=0 // pred_check
    _
  $region7: #{_lambda_.32} parent=0 // pred_check_branch
    %15 = sbr.rel (0) target = $region9
  $region8: #{_lambda_.32} parent=0 // pred_region
    _
  $region9: #{_lambda_.32} parent=0 // pred_fallthru
    _
  // Predicated region
  $region10: #{_lambda_.32} parent=0 // pred_check
    _
  $region11: #{_lambda_.32} parent=0 // pred_check_branch
    %17 = sbr.rel (0) target = $region13
  $region12: #{_lambda_.32} parent=0 // pred_region
    _
  $region13: #{_lambda_.32} parent=0 // pred_fallthru
    _
  // Predicated region
  $region14: #{_lambda_.32} parent=0 // pred_check
    _
  $region15: #{_lambda_.32} parent=0 // pred_check_branch
    %19 = sbr.rel (0) target = $region17
  $region16: #{_lambda_.32} parent=0 // pred_region
    _
  $region17: #{_lambda_.32} parent=0 // pred_fallthru
    _
  // Predicated region
  $region18: #{_lambda_.32} parent=0 // pred_check
    _
  $region19: #{_lambda_.32} parent=0 // pred_check_branch
    %21 = sbr.rel (0) target = $region21
  $region20: #{_lambda_.32} parent=0 // pred_region
    _
  $region21: #{_lambda_.32} parent=0 // pred_fallthru
    _
  %v23 = vld [vmem:[%s0] sm:$0xff]
  %v24 = vld [vmem:[%s0 + $0x8] sm:$0xf]
  %v25 = vld [vmem:[%s1] sm:$0xf]
  %v26 = vld [vmem:[%s1 + $0x4] sm:$0xf]
  %v27 = vld [vmem:[%s1 + $0x8] sm:$0xf]
  %v28 = vld [vmem:[%s1 + $0xc] sm:$0xf]
  %v29 = vld [vmem:[%s1 + $0x10] sm:$0xf]
  %v30 = vld [vmem:[%s1 + $0x14] sm:$0xf]
  %v31 = vld [vmem:[%s1 + $0x18] sm:$0xf]
  %v32 = vld [vmem:[%s1 + $0x1c] sm:$0xf]
  %v33 = vld [vmem:[%s1 + $0x20] sm:$0xf]
  %v34 = vld [vmem:[%s1 + $0x24] sm:$0xf]
  %v35 = vld [vmem:[%s1 + $0x28] sm:$0xf]
  %v36 = vld [vmem:[%s1 + $0x2c] sm:$0xf]
  %v37 = vld [vmem:[%s1 + $0x30] sm:$0xf]
  %v38 = vld [vmem:[%s1 + $0x34] sm:$0xf]
  %v39 = vld [vmem:[%s1 + $0x38] sm:$0xf]
  %v40 = vld [vmem:[%s1 + $0x3c] sm:$0xf]
  %v41 = vld [vmem:[%s1 + $0x40] sm:$0xf]
  %v42 = vld [vmem:[%s1 + $0x44] sm:$0xf]
  %v43 = vld [vmem:[%s1 + $0x48] sm:$0xf]
  %v44 = vld [vmem:[%s1 + $0x4c] sm:$0xf]
  %v45 = vld [vmem:[%s1 + $0x50] sm:$0xf]
  %v46 = vld [vmem:[%s1 + $0x54] sm:$0xf]
  %v47 = vld [vmem:[%s1 + $0x58] sm:$0xf]
  %v48 = vld [vmem:[%s1 + $0x5c] sm:$0xf]
  %v49 = vld [vmem:[%s1 + $0x60] sm:$0xf]
  %v50 = vld [vmem:[%s1 + $0x64] sm:$0xf]
  %v51 = vld [vmem:[%s1 + $0x68] sm:$0xf]
  %v52 = vld [vmem:[%s1 + $0x6c] sm:$0xf]
  %v53 = vld [vmem:[%s1 + $0x70] sm:$0xf]
  %v54 = vld [vmem:[%s1 + $0x74] sm:$0xf]
  %v55 = vld [vmem:[%s1 + $0x78] sm:$0xf]
  %v56 = vld [vmem:[%s1 + $0x7c] sm:$0xf]
  %v57 = vld [vmem:[%s1 + $0x80] sm:$0xf]
  %v58 = vld [vmem:[%s1 + $0x84] sm:$0xf]
  %v59 = vld [vmem:[%s1 + $0x88] sm:$0xf]
  %v60 = vld [vmem:[%s1 + $0x8c] sm:$0xf]
  %v61 = vld [vmem:[%s1 + $0x90] sm:$0xf]
  %v62 = vld [vmem:[%s1 + $0x94] sm:$0xf]
  %v63 = vld [vmem:[%s1 + $0x98] sm:$0xf]
  %v64 = vld [vmem:[%s1 + $0x9c] sm:$0xf]
  %v65 = vld [vmem:[%s1 + $0xa0] sm:$0xf]
  %v66 = vld [vmem:[%s1 + $0xa4] sm:$0xf]
  %v67 = vld [vmem:[%s1 + $0xa8] sm:$0xf]
  %v68 = vld [vmem:[%s1 + $0xac] sm:$0xf]
  %v69 = vld [vmem:[%s1 + $0xb0] sm:$0xf]
  %v70 = vld [vmem:[%s1 + $0xb4] sm:$0xf]
  %v71 = vld [vmem:[%s1 + $0xb8] sm:$0xf]
  %v72 = vld [vmem:[%s1 + $0xbc] sm:$0xf]
  %v73 = vld [vmem:[%s2] sm:$0x1]
  %v75 = vlaneseq
  %v76 = vshrl.u32 %v75, 7
  %v77 = vsub.s32 0, %v76
  %v78 = vrot.slane %v73, %v77
  %v82 = vunpack.c.l.b16 %v23
  %v83 = vunpack.c.h.b16 %v23
  %v84 = vunpack.c.l.b16 %v24
  %v85 = vpack.c.b16 %v82, %v82
  %v86 = vpack.c.b16 %v83, %v83
  %v87 = vpack.c.b16 %v84, %v84
  %v139 = vunpack.c.l.b16 %v25
  %v140 = vunpack.c.l.b16 %v26
  %v141 = vunpack.c.l.b16 %v27
  %v142 = vunpack.c.l.b16 %v28
  %v143 = vunpack.c.l.b16 %v29
  %v144 = vunpack.c.l.b16 %v30
  %v145 = vunpack.c.l.b16 %v31
  %v146 = vunpack.c.l.b16 %v32
  %v147 = vunpack.c.l.b16 %v33
  %v148 = vunpack.c.l.b16 %v34
  %v149 = vunpack.c.l.b16 %v35
  %v150 = vunpack.c.l.b16 %v36
  %v151 = vunpack.c.l.b16 %v37
  %v152 = vunpack.c.l.b16 %v38
  %v153 = vunpack.c.l.b16 %v39
  %v154 = vunpack.c.l.b16 %v40
  %v155 = vunpack.c.l.b16 %v41
  %v156 = vunpack.c.l.b16 %v42
  %v157 = vunpack.c.l.b16 %v43
  %v158 = vunpack.c.l.b16 %v44
  %v159 = vunpack.c.l.b16 %v45
  %v160 = vunpack.c.l.b16 %v46
  %v161 = vunpack.c.l.b16 %v47
  %v162 = vunpack.c.l.b16 %v48
  %v163 = vunpack.c.l.b16 %v49
  %v164 = vunpack.c.l.b16 %v50
  %v165 = vunpack.c.l.b16 %v51
  %v166 = vunpack.c.l.b16 %v52
  %v167 = vunpack.c.l.b16 %v53
  %v168 = vunpack.c.l.b16 %v54
  %v169 = vunpack.c.l.b16 %v55
  %v170 = vunpack.c.l.b16 %v56
  %v171 = vunpack.c.l.b16 %v57
  %v172 = vunpack.c.l.b16 %v58
  %v173 = vunpack.c.l.b16 %v59
  %v174 = vunpack.c.l.b16 %v60
  %v175 = vunpack.c.l.b16 %v61
  %v176 = vunpack.c.l.b16 %v62
  %v177 = vunpack.c.l.b16 %v63
  %v178 = vunpack.c.l.b16 %v64
  %v179 = vunpack.c.l.b16 %v65
  %v180 = vunpack.c.l.b16 %v66
  %v181 = vunpack.c.l.b16 %v67
  %v182 = vunpack.c.l.b16 %v68
  %v183 = vunpack.c.l.b16 %v69
  %v184 = vunpack.c.l.b16 %v70
  %v185 = vunpack.c.l.b16 %v71
  %v186 = vunpack.c.l.b16 %v72
  %v187 = vpack.c.b16 %v140, %v139
  %v188 = vpack.c.b16 %v142, %v141
  %v189 = vpack.c.b16 %v144, %v143
  %v190 = vpack.c.b16 %v146, %v145
  %v191 = vpack.c.b16 %v148, %v147
  %v192 = vpack.c.b16 %v150, %v149
  %v193 = vpack.c.b16 %v152, %v151
  %v194 = vpack.c.b16 %v154, %v153
  %v195 = vpack.c.b16 %v156, %v155
  %v196 = vpack.c.b16 %v158, %v157
  %v197 = vpack.c.b16 %v160, %v159
  %v198 = vpack.c.b16 %v162, %v161
  %v199 = vpack.c.b16 %v164, %v163
  %v200 = vpack.c.b16 %v166, %v165
  %v201 = vpack.c.b16 %v168, %v167
  %v202 = vpack.c.b16 %v170, %v169
  %v203 = vpack.c.b16 %v172, %v171
  %v204 = vpack.c.b16 %v174, %v173
  %v205 = vpack.c.b16 %v176, %v175
  %v206 = vpack.c.b16 %v178, %v177
  %v207 = vpack.c.b16 %v180, %v179
  %v208 = vpack.c.b16 %v182, %v181
  %v209 = vpack.c.b16 %v184, %v183
  %v210 = vpack.c.b16 %v186, %v185
  %235 = vmatprep.subr.bf16.mxu0 0
  %236 = vmatpush1.bf16.msra.mxu0 %v187
  %237 = vmatprep.subr.bf16.mxu0 0
  %238 = vmatpush1.bf16.msra.mxu0 %v188
  %239 = vmatprep.subr.bf16.mxu0 0
  %240 = vmatpush1.bf16.msra.mxu0 %v189
  %241 = vmatprep.subr.bf16.mxu0 0
  %242 = vmatpush1.bf16.msra.mxu0 %v190
  %243 = vmatprep.subr.bf16.mxu0 0
  %244 = vmatpush1.bf16.msra.mxu0 %v191
  %245 = vmatprep.subr.bf16.mxu0 0
  %246 = vmatpush1.bf16.msra.mxu0 %v192
  %247 = vmatprep.subr.bf16.mxu0 0
  %248 = vmatpush1.bf16.msra.mxu0 %v193
  %249 = vmatprep.subr.bf16.mxu0 0
  %250 = vmatpush1.bf16.msra.mxu0 %v194
  %251 = vmatprep.subr.bf16.mxu0 0
  %252 = vmatpush1.bf16.msra.mxu0 %v195
  %253 = vmatprep.subr.bf16.mxu0 0
  %254 = vmatpush1.bf16.msra.mxu0 %v196
  %255 = vmatprep.subr.bf16.mxu0 0
  %256 = vmatpush1.bf16.msra.mxu0 %v197
  %257 = vmatprep.subr.bf16.mxu0 0
  %258 = vmatpush1.bf16.msra.mxu0 %v198
  %259 = vmatprep.subr.bf16.mxu0 0
  %260 = vmatpush1.bf16.msra.mxu0 %v199
  %261 = vmatprep.subr.bf16.mxu0 0
  %262 = vmatpush1.bf16.msra.mxu0 %v200
  %263 = vmatprep.subr.bf16.mxu0 0
  %264 = vmatpush1.bf16.msra.mxu0 %v201
  %265 = vmatprep.subr.bf16.mxu0 0
  %266 = vmatpush1.bf16.msra.mxu0 %v202
  %267 = vmatprep.mubr.bf16.mxu0 %v86
  %268 = vmatmul.mubr.bf16.gmra.mrb[0].mxu0 %v85
  %v269 = vpop.f32.mrb[0].mxu0
  %v270 = vadd.f32 %v78, %v269
  %v271 = vpop.f32.mrb[0].mxu0
  %v272 = vpop.f32.mrb[0].mxu0
  %v273 = vpop.f32.mrb[0].mxu0
  %274 = vdwg.mxu0
  %275 = vmatprep.subr.bf16.mxu0 0
  %276 = vmatpush1.bf16.msra.mxu0 %v203
  %277 = vmatprep.subr.bf16.mxu0 0
  %278 = vmatpush1.bf16.msra.mxu0 %v204
  %279 = vmatprep.subr.bf16.mxu0 0
  %280 = vmatpush1.bf16.msra.mxu0 %v205
  %281 = vmatprep.subr.bf16.mxu0 0
  %282 = vmatpush1.bf16.msra.mxu0 %v206
  %283 = vmatprep.subr.bf16.mxu0 0
  %284 = vmatpush1.bf16.msra.mxu0 %v207
  %285 = vmatprep.subr.bf16.mxu0 0
  %286 = vmatpush1.bf16.msra.mxu0 %v208
  %287 = vmatprep.subr.bf16.mxu0 0
  %288 = vmatpush1.bf16.msra.mxu0 %v209
  %289 = vmatprep.subr.bf16.mxu0 0
  %290 = vmatpush1.bf16.msra.mxu0 %v210
  %291 = vmatprep.subr.bf16.mxu0 0
  %292 = vmatpush1.bf16.msra.mxu0 0
  %293 = vmatprep.subr.bf16.mxu0 0
  %294 = vmatpush1.bf16.msra.mxu0 0
  %295 = vmatprep.subr.bf16.mxu0 0
  %296 = vmatpush1.bf16.msra.mxu0 0
  %297 = vmatprep.subr.bf16.mxu0 0
  %298 = vmatpush1.bf16.msra.mxu0 0
  %299 = vmatprep.subr.bf16.mxu0 0
  %300 = vmatpush1.bf16.msra.mxu0 0
  %301 = vmatprep.subr.bf16.mxu0 0
  %302 = vmatpush1.bf16.msra.mxu0 0
  %303 = vmatprep.subr.bf16.mxu0 0
  %304 = vmatpush1.bf16.msra.mxu0 0
  %305 = vmatprep.subr.bf16.mxu0 0
  %306 = vmatpush1.bf16.msra.mxu0 0
  %307 = vmatprep.mubr.bf16.mxu0 0
  %308 = vmatmul.mubr.bf16.gmra.mrb[0].mxu0 %v87
  %v309 = vpop.f32.mrb[0].mxu0
  %v310 = vadd.f32 %v270, %v309
  %v311 = vpop.f32.mrb[0].mxu0
  %v312 = vpop.f32.mrb[0].mxu0
  %v313 = vpop.f32.mrb[0].mxu0
  %314 = vdwg.mxu0
  %v315 = vmax.f32 %v310, 0.0
  %v316 = vpack.c.bf16 %v315, %v315
  %317 = vst [vmem:[%s5] sm:$0xf] %v316
  %v318 = vld [vmem:[%s3] sm:$0xf]
  %v319 = vld [vmem:[%s3 + $0x4] sm:$0xf]
  %v320 = vld [vmem:[%s3 + $0x8] sm:$0xf]
  %v321 = vld [vmem:[%s3 + $0xc] sm:$0xf]
  %v322 = vld [vmem:[%s3 + $0x10] sm:$0xf]
  %v323 = vld [vmem:[%s3 + $0x14] sm:$0xf]
  %v324 = vld [vmem:[%s3 + $0x18] sm:$0xf]
  %v325 = vld [vmem:[%s3 + $0x1c] sm:$0xf]
  %v326 = vld [vmem:[%s3 + $0x20] sm:$0xf]
  %v327 = vld [vmem:[%s3 + $0x24] sm:$0xf]
  %v328 = vld [vmem:[%s3 + $0x28] sm:$0xf]
  %v329 = vld [vmem:[%s3 + $0x2c] sm:$0xf]
  %v330 = vld [vmem:[%s3 + $0x30] sm:$0xf]
  %v331 = vld [vmem:[%s3 + $0x34] sm:$0xf]
  %v332 = vld [vmem:[%s3 + $0x38] sm:$0xf]
  %v333 = vld [vmem:[%s3 + $0x3c] sm:$0xf]
  %v334 = vld [vmem:[%s3 + $0x40] sm:$0xf]
  %v335 = vld [vmem:[%s3 + $0x44] sm:$0xf]
  %v336 = vld [vmem:[%s3 + $0x48] sm:$0xf]
  %v337 = vld [vmem:[%s3 + $0x4c] sm:$0xf]
  %v338 = vld [vmem:[%s3 + $0x50] sm:$0xf]
  %v339 = vld [vmem:[%s3 + $0x54] sm:$0xf]
  %v340 = vld [vmem:[%s3 + $0x58] sm:$0xf]
  %v341 = vld [vmem:[%s3 + $0x5c] sm:$0xf]
  %v342 = vld [vmem:[%s3 + $0x60] sm:$0xf]
  %v343 = vld [vmem:[%s3 + $0x64] sm:$0xf]
  %v344 = vld [vmem:[%s3 + $0x68] sm:$0xf]
  %v345 = vld [vmem:[%s3 + $0x6c] sm:$0xf]
  %v346 = vld [vmem:[%s3 + $0x70] sm:$0xf]
  %v347 = vld [vmem:[%s3 + $0x74] sm:$0xf]
  %v348 = vld [vmem:[%s3 + $0x78] sm:$0xf]
  %v349 = vld [vmem:[%s3 + $0x7c] sm:$0xf]
  %v350 = vld [vmem:[%s3 + $0x80] sm:$0xf]
  %v351 = vld [vmem:[%s3 + $0x84] sm:$0xf]
  %v352 = vld [vmem:[%s3 + $0x88] sm:$0xf]
  %v353 = vld [vmem:[%s3 + $0x8c] sm:$0xf]
  %v354 = vld [vmem:[%s3 + $0x90] sm:$0xf]
  %v355 = vld [vmem:[%s3 + $0x94] sm:$0xf]
  %v356 = vld [vmem:[%s3 + $0x98] sm:$0xf]
  %v357 = vld [vmem:[%s3 + $0x9c] sm:$0xf]
  %v358 = vld [vmem:[%s3 + $0xa0] sm:$0xf]
  %v359 = vld [vmem:[%s3 + $0xa4] sm:$0xf]
  %v360 = vld [vmem:[%s3 + $0xa8] sm:$0xf]
  %v361 = vld [vmem:[%s3 + $0xac] sm:$0xf]
  %v362 = vld [vmem:[%s3 + $0xb0] sm:$0xf]
  %v363 = vld [vmem:[%s3 + $0xb4] sm:$0xf]
  %v364 = vld [vmem:[%s3 + $0xb8] sm:$0xf]
  %v365 = vld [vmem:[%s3 + $0xbc] sm:$0xf]
  %v366 = vld [vmem:[%s4] sm:$0x1]
  %v368 = vlaneseq
  %v369 = vshrl.u32 %v368, 7
  %v370 = vsub.s32 0, %v369
  %v371 = vrot.slane %v366, %v370
  %v421 = vunpack.c.l.b16 %v318
  %v422 = vunpack.c.l.b16 %v319
  %v423 = vunpack.c.l.b16 %v320
  %v424 = vunpack.c.l.b16 %v321
  %v425 = vunpack.c.l.b16 %v322
  %v426 = vunpack.c.l.b16 %v323
  %v427 = vunpack.c.l.b16 %v324
  %v428 = vunpack.c.l.b16 %v325
  %v429 = vunpack.c.l.b16 %v326
  %v430 = vunpack.c.l.b16 %v327
  %v431 = vunpack.c.l.b16 %v328
  %v432 = vunpack.c.l.b16 %v329
  %v433 = vunpack.c.l.b16 %v330
  %v434 = vunpack.c.l.b16 %v331
  %v435 = vunpack.c.l.b16 %v332
  %v436 = vunpack.c.l.b16 %v333
  %v437 = vunpack.c.l.b16 %v334
  %v438 = vunpack.c.l.b16 %v335
  %v439 = vunpack.c.l.b16 %v336
  %v440 = vunpack.c.l.b16 %v337
  %v441 = vunpack.c.l.b16 %v338
  %v442 = vunpack.c.l.b16 %v339
  %v443 = vunpack.c.l.b16 %v340
  %v444 = vunpack.c.l.b16 %v341
  %v445 = vunpack.c.l.b16 %v342
  %v446 = vunpack.c.l.b16 %v343
  %v447 = vunpack.c.l.b16 %v344
  %v448 = vunpack.c.l.b16 %v345
  %v449 = vunpack.c.l.b16 %v346
  %v450 = vunpack.c.l.b16 %v347
  %v451 = vunpack.c.l.b16 %v348
  %v452 = vunpack.c.l.b16 %v349
  %v453 = vunpack.c.l.b16 %v350
  %v454 = vunpack.c.l.b16 %v351
  %v455 = vunpack.c.l.b16 %v352
  %v456 = vunpack.c.l.b16 %v353
  %v457 = vunpack.c.l.b16 %v354
  %v458 = vunpack.c.l.b16 %v355
  %v459 = vunpack.c.l.b16 %v356
  %v460 = vunpack.c.l.b16 %v357
  %v461 = vunpack.c.l.b16 %v358
  %v462 = vunpack.c.l.b16 %v359
  %v463 = vunpack.c.l.b16 %v360
  %v464 = vunpack.c.l.b16 %v361
  %v465 = vunpack.c.l.b16 %v362
  %v466 = vunpack.c.l.b16 %v363
  %v467 = vunpack.c.l.b16 %v364
  %v468 = vunpack.c.l.b16 %v365
  %v469 = vpack.c.b16 %v422, %v421
  %v470 = vpack.c.b16 %v424, %v423
  %v471 = vpack.c.b16 %v426, %v425
  %v472 = vpack.c.b16 %v428, %v427
  %v473 = vpack.c.b16 %v430, %v429
  %v474 = vpack.c.b16 %v432, %v431
  %v475 = vpack.c.b16 %v434, %v433
  %v476 = vpack.c.b16 %v436, %v435
  %v477 = vpack.c.b16 %v438, %v437
  %v478 = vpack.c.b16 %v440, %v439
  %v479 = vpack.c.b16 %v442, %v441
  %v480 = vpack.c.b16 %v444, %v443
  %v481 = vpack.c.b16 %v446, %v445
  %v482 = vpack.c.b16 %v448, %v447
  %v483 = vpack.c.b16 %v450, %v449
  %v484 = vpack.c.b16 %v452, %v451
  %v485 = vpack.c.b16 %v454, %v453
  %v486 = vpack.c.b16 %v456, %v455
  %v487 = vpack.c.b16 %v458, %v457
  %v488 = vpack.c.b16 %v460, %v459
  %v489 = vpack.c.b16 %v462, %v461
  %v490 = vpack.c.b16 %v464, %v463
  %v491 = vpack.c.b16 %v466, %v465
  %v492 = vpack.c.b16 %v468, %v467
  %517 = vmatprep.subr.bf16.mxu0 0
  %518 = vmatpush1.bf16.msra.mxu0 %v469
  %519 = vmatprep.subr.bf16.mxu0 0
  %520 = vmatpush1.bf16.msra.mxu0 %v470
  %521 = vmatprep.subr.bf16.mxu0 0
  %522 = vmatpush1.bf16.msra.mxu0 %v471
  %523 = vmatprep.subr.bf16.mxu0 0
  %524 = vmatpush1.bf16.msra.mxu0 %v472
  %525 = vmatprep.subr.bf16.mxu0 0
  %526 = vmatpush1.bf16.msra.mxu0 %v473
  %527 = vmatprep.subr.bf16.mxu0 0
  %528 = vmatpush1.bf16.msra.mxu0 %v474
  %529 = vmatprep.subr.bf16.mxu0 0
  %530 = vmatpush1.bf16.msra.mxu0 %v475
  %531 = vmatprep.subr.bf16.mxu0 0
  %532 = vmatpush1.bf16.msra.mxu0 %v476
  %533 = vmatprep.subr.bf16.mxu0 0
  %534 = vmatpush1.bf16.msra.mxu0 %v477
  %535 = vmatprep.subr.bf16.mxu0 0
  %536 = vmatpush1.bf16.msra.mxu0 %v478
  %537 = vmatprep.subr.bf16.mxu0 0
  %538 = vmatpush1.bf16.msra.mxu0 %v479
  %539 = vmatprep.subr.bf16.mxu0 0
  %540 = vmatpush1.bf16.msra.mxu0 %v480
  %541 = vmatprep.subr.bf16.mxu0 0
  %542 = vmatpush1.bf16.msra.mxu0 %v481
  %543 = vmatprep.subr.bf16.mxu0 0
  %544 = vmatpush1.bf16.msra.mxu0 %v482
  %545 = vmatprep.subr.bf16.mxu0 0
  %546 = vmatpush1.bf16.msra.mxu0 %v483
  %547 = vmatprep.subr.bf16.mxu0 0
  %548 = vmatpush1.bf16.msra.mxu0 %v484
  %549 = vmatprep.mubr.bf16.mxu0 %v86
  %550 = vmatmul.mubr.bf16.gmra.mrb[0].mxu0 %v85
  %v551 = vpop.f32.mrb[0].mxu0
  %v552 = vadd.f32 %v371, %v551
  %v553 = vpop.f32.mrb[0].mxu0
  %v554 = vpop.f32.mrb[0].mxu0
  %v555 = vpop.f32.mrb[0].mxu0
  %556 = vdwg.mxu0
  %557 = vmatprep.subr.bf16.mxu0 0
  %558 = vmatpush1.bf16.msra.mxu0 %v485
  %559 = vmatprep.subr.bf16.mxu0 0
  %560 = vmatpush1.bf16.msra.mxu0 %v486
  %561 = vmatprep.subr.bf16.mxu0 0
  %562 = vmatpush1.bf16.msra.mxu0 %v487
  %563 = vmatprep.subr.bf16.mxu0 0
  %564 = vmatpush1.bf16.msra.mxu0 %v488
  %565 = vmatprep.subr.bf16.mxu0 0
  %566 = vmatpush1.bf16.msra.mxu0 %v489
  %567 = vmatprep.subr.bf16.mxu0 0
  %568 = vmatpush1.bf16.msra.mxu0 %v490
  %569 = vmatprep.subr.bf16.mxu0 0
  %570 = vmatpush1.bf16.msra.mxu0 %v491
  %571 = vmatprep.subr.bf16.mxu0 0
  %572 = vmatpush1.bf16.msra.mxu0 %v492
  %573 = vmatprep.subr.bf16.mxu0 0
  %574 = vmatpush1.bf16.msra.mxu0 0
  %575 = vmatprep.subr.bf16.mxu0 0
  %576 = vmatpush1.bf16.msra.mxu0 0
  %577 = vmatprep.subr.bf16.mxu0 0
  %578 = vmatpush1.bf16.msra.mxu0 0
  %579 = vmatprep.subr.bf16.mxu0 0
  %580 = vmatpush1.bf16.msra.mxu0 0
  %581 = vmatprep.subr.bf16.mxu0 0
  %582 = vmatpush1.bf16.msra.mxu0 0
  %583 = vmatprep.subr.bf16.mxu0 0
  %584 = vmatpush1.bf16.msra.mxu0 0
  %585 = vmatprep.subr.bf16.mxu0 0
  %586 = vmatpush1.bf16.msra.mxu0 0
  %587 = vmatprep.subr.bf16.mxu0 0
  %588 = vmatpush1.bf16.msra.mxu0 0
  %589 = vmatprep.mubr.bf16.mxu0 0
  %590 = vmatmul.mubr.bf16.gmra.mrb[0].mxu0 %v87
  %v591 = vpop.f32.mrb[0].mxu0
  %v592 = vadd.f32 %v552, %v591
  %v593 = vpop.f32.mrb[0].mxu0
  %v594 = vpop.f32.mrb[0].mxu0
  %v595 = vpop.f32.mrb[0].mxu0
  %596 = vdwg.mxu0
  %v597 = vpack.c.bf16 %v592, %v592
  %598 = vst [vmem:[%s6] sm:$0xf] %v597
  // Predicated region
  $region22: #{_lambda_.32} parent=0 // pred_check
    _
  $region23: #{_lambda_.32} parent=0 // pred_check_branch
    %600 = sbr.rel (0) target = $region25
  $region24: #{_lambda_.32} parent=0 // pred_region
    _
  $region25: #{_lambda_.32} parent=0 // pred_fallthru
    _
  // Predicated region
  $region26: #{_lambda_.32} parent=0 // pred_check
    _
  $region27: #{_lambda_.32} parent=0 // pred_check_branch
    %602 = sbr.rel (0) target = $region29
  $region28: #{_lambda_.32} parent=0 // pred_region
    _
  $region29: #{_lambda_.32} parent=0 // pred_fallthru
    _
  // Predicated region
  $region30: #{_lambda_.32} parent=0 // pred_check
    _
  $region31: #{_lambda_.32} parent=0 // pred_check_branch
    %604 = sbr.rel (0) target = $region33
  $region32: #{_lambda_.32} parent=0 // pred_region
    _
  $region33: #{_lambda_.32} parent=0 // pred_fallthru
    _
  // Predicated region
  $region34: #{_lambda_.32} parent=0 // pred_check
    _
  $region35: #{_lambda_.32} parent=0 // pred_check_branch
    %606 = sbr.rel (0) target = $region37
  $region36: #{_lambda_.32} parent=0 // pred_region
    _
  $region37: #{_lambda_.32} parent=0 // pred_fallthru
    _

// kernel: _lambda_.34
$region0: #{_lambda_.34}
  #allocation0 [shape = 'u32[]', space=smem, size = 0x4, offset = 0x4, fixed_abs, tag = 'smem constant byte address 0x4 - core index']
  #allocation1 [shape = 'u32[144,128]{1,0:T(1,128)}', space=vmem, size = 0x12000, scoped, tag = 'internal scratch']
  %s0 = inlined_call_operand.vmem [shape: bf16[8,640], index: 0, kind: input, shape index: {}]
  %s1 = inlined_call_operand.vmem [shape: bf16[640,128], index: 1, kind: input, shape index: {}]
  %s2 = inlined_call_operand.vmem [shape: f32[1,128], index: 2, kind: input, shape index: {}]
  %s3 = inlined_call_operand.vmem [shape: bf16[8,128], index: 3, kind: output, shape index: {}]
  %s4 = sld [smem:[#allocation0]]
  $region22: #{_lambda_.34} parent=0
    _
  %s6 = ssub.s32 1, %s4
  %s7 = scalar_select 0, %s6, %s4
  // Predicated region
  $region2: #{_lambda_.34} parent=0 // pred_check
    _
  $region3: #{_lambda_.34} parent=0 // pred_check_branch
    %9 = sbr.rel (0) target = $region5
  $region4: #{_lambda_.34} parent=0 // pred_region
    _
  $region5: #{_lambda_.34} parent=0 // pred_fallthru
    _
  // Predicated region
  $region6: #{_lambda_.34} parent=0 // pred_check
    _
  $region7: #{_lambda_.34} parent=0 // pred_check_branch
    %11 = sbr.rel (0) target = $region9
  $region8: #{_lambda_.34} parent=0 // pred_region
    _
  $region9: #{_lambda_.34} parent=0 // pred_fallthru
    _
  // Predicated region
  $region10: #{_lambda_.34} parent=0 // pred_check
    _
  $region11: #{_lambda_.34} parent=0 // pred_check_branch
    %13 = sbr.rel (0) target = $region13
  $region12: #{_lambda_.34} parent=0 // pred_region
    _
  $region13: #{_lambda_.34} parent=0 // pred_fallthru
    _
  %v15 = vld [vmem:[%s0] sm:$0xff]
  %v16 = vld [vmem:[%s0 + $0x8] sm:$0xff]
  %v17 = vld [vmem:[%s0 + $0x10] sm:$0xf]
  %v18 = vld [vmem:[%s1] sm:$0xf]
  %v19 = vld [vmem:[%s1 + $0x4] sm:$0xf]
  %v20 = vld [vmem:[%s1 + $0x8] sm:$0xf]
  %v21 = vld [vmem:[%s1 + $0xc] sm:$0xf]
  %v22 = vld [vmem:[%s1 + $0x10] sm:$0xf]
  %v23 = vld [vmem:[%s1 + $0x14] sm:$0xf]
  %v24 = vld [vmem:[%s1 + $0x18] sm:$0xf]
  %v25 = vld [vmem:[%s1 + $0x1c] sm:$0xf]
  %v26 = vld [vmem:[%s1 + $0x20] sm:$0xf]
  %v27 = vld [vmem:[%s1 + $0x24] sm:$0xf]
  %v28 = vld [vmem:[%s1 + $0x28] sm:$0xf]
  %v29 = vld [vmem:[%s1 + $0x2c] sm:$0xf]
  %v30 = vld [vmem:[%s1 + $0x30] sm:$0xf]
  %v31 = vld [vmem:[%s1 + $0x34] sm:$0xf]
  %v32 = vld [vmem:[%s1 + $0x38] sm:$0xf]
  %v33 = vld [vmem:[%s1 + $0x3c] sm:$0xf]
  %v34 = vld [vmem:[%s1 + $0x40] sm:$0xf]
  %v35 = vld [vmem:[%s1 + $0x44] sm:$0xf]
  %v36 = vld [vmem:[%s1 + $0x48] sm:$0xf]
  %v37 = vld [vmem:[%s1 + $0x4c] sm:$0xf]
  %v38 = vld [vmem:[%s1 + $0x50] sm:$0xf]
  %v39 = vld [vmem:[%s1 + $0x54] sm:$0xf]
  %v40 = vld [vmem:[%s1 + $0x58] sm:$0xf]
  %v41 = vld [vmem:[%s1 + $0x5c] sm:$0xf]
  %v42 = vld [vmem:[%s1 + $0x60] sm:$0xf]
  %v43 = vld [vmem:[%s1 + $0x64] sm:$0xf]
  %v44 = vld [vmem:[%s1 + $0x68] sm:$0xf]
  %v45 = vld [vmem:[%s1 + $0x6c] sm:$0xf]
  %v46 = vld [vmem:[%s1 + $0x70] sm:$0xf]
  %v47 = vld [vmem:[%s1 + $0x74] sm:$0xf]
  %v48 = vld [vmem:[%s1 + $0x78] sm:$0xf]
  %v49 = vld [vmem:[%s1 + $0x7c] sm:$0xf]
  %v50 = vld [vmem:[%s1 + $0x80] sm:$0xf]
  %v51 = vld [vmem:[%s1 + $0x84] sm:$0xf]
  %v52 = vld [vmem:[%s1 + $0x88] sm:$0xf]
  %v53 = vld [vmem:[%s1 + $0x8c] sm:$0xf]
  %v54 = vld [vmem:[%s1 + $0x90] sm:$0xf]
  %v55 = vld [vmem:[%s1 + $0x94] sm:$0xf]
  %v56 = vld [vmem:[%s1 + $0x98] sm:$0xf]
  %v57 = vld [vmem:[%s1 + $0x9c] sm:$0xf]
  %v58 = vld [vmem:[%s1 + $0xa0] sm:$0xf]
  %v59 = vld [vmem:[%s1 + $0xa4] sm:$0xf]
  %v60 = vld [vmem:[%s1 + $0xa8] sm:$0xf]
  %v61 = vld [vmem:[%s1 + $0xac] sm:$0xf]
  %v62 = vld [vmem:[%s1 + $0xb0] sm:$0xf]
  %v63 = vld [vmem:[%s1 + $0xb4] sm:$0xf]
  %v64 = vld [vmem:[%s1 + $0xb8] sm:$0xf]
  %v65 = vld [vmem:[%s1 + $0xbc] sm:$0xf]
  %v66 = vld [vmem:[%s1 + $0xc0] sm:$0xf]
  %v67 = vld [vmem:[%s1 + $0xc4] sm:$0xf]
  %v68 = vld [vmem:[%s1 + $0xc8] sm:$0xf]
  %v69 = vld [vmem:[%s1 + $0xcc] sm:$0xf]
  %v70 = vld [vmem:[%s1 + $0xd0] sm:$0xf]
  %v71 = vld [vmem:[%s1 + $0xd4] sm:$0xf]
  %v72 = vld [vmem:[%s1 + $0xd8] sm:$0xf]
  %v73 = vld [vmem:[%s1 + $0xdc] sm:$0xf]
  %v74 = vld [vmem:[%s1 + $0xe0] sm:$0xf]
  %v75 = vld [vmem:[%s1 + $0xe4] sm:$0xf]
  %v76 = vld [vmem:[%s1 + $0xe8] sm:$0xf]
  %v77 = vld [vmem:[%s1 + $0xec] sm:$0xf]
  %v78 = vld [vmem:[%s1 + $0xf0] sm:$0xf]
  %v79 = vld [vmem:[%s1 + $0xf4] sm:$0xf]
  %v80 = vld [vmem:[%s1 + $0xf8] sm:$0xf]
  %v81 = vld [vmem:[%s1 + $0xfc] sm:$0xf]
  %v82 = vld [vmem:[%s1 + $0x100] sm:$0xf]
  %v83 = vld [vmem:[%s1 + $0x104] sm:$0xf]
  %v84 = vld [vmem:[%s1 + $0x108] sm:$0xf]
  %v85 = vld [vmem:[%s1 + $0x10c] sm:$0xf]
  %v86 = vld [vmem:[%s1 + $0x110] sm:$0xf]
  %v87 = vld [vmem:[%s1 + $0x114] sm:$0xf]
  %v88 = vld [vmem:[%s1 + $0x118] sm:$0xf]
  %v89 = vld [vmem:[%s1 + $0x11c] sm:$0xf]
  %v90 = vld [vmem:[%s1 + $0x120] sm:$0xf]
  %v91 = vld [vmem:[%s1 + $0x124] sm:$0xf]
  %v92 = vld [vmem:[%s1 + $0x128] sm:$0xf]
  %v93 = vld [vmem:[%s1 + $0x12c] sm:$0xf]
  %v94 = vld [vmem:[%s1 + $0x130] sm:$0xf]
  %v95 = vld [vmem:[%s1 + $0x134] sm:$0xf]
  %v96 = vld [vmem:[%s1 + $0x138] sm:$0xf]
  %v97 = vld [vmem:[%s1 + $0x13c] sm:$0xf]
  %v98 = vld [vmem:[%s2] sm:$0x1]
  %v100 = vlaneseq
  %v101 = vshrl.u32 %v100, 7
  %v102 = vsub.s32 0, %v101
  %v103 = vrot.slane %v98, %v102
  %v108 = vunpack.c.l.b16 %v15
  %v109 = vunpack.c.h.b16 %v15
  %v110 = vunpack.c.l.b16 %v16
  %v111 = vunpack.c.h.b16 %v16
  %v112 = vunpack.c.l.b16 %v17
  %v113 = vpack.c.b16 %v108, %v108
  %v114 = vpack.c.b16 %v109, %v109
  %v115 = vpack.c.b16 %v110, %v110
  %v116 = vpack.c.b16 %v111, %v111
  %v117 = vpack.c.b16 %v112, %v112
  %v203 = vunpack.c.l.b16 %v18
  %v204 = vunpack.c.l.b16 %v19
  %v205 = vunpack.c.l.b16 %v20
  %v206 = vunpack.c.l.b16 %v21
  %v207 = vunpack.c.l.b16 %v22
  %v208 = vunpack.c.l.b16 %v23
  %v209 = vunpack.c.l.b16 %v24
  %v210 = vunpack.c.l.b16 %v25
  %v211 = vunpack.c.l.b16 %v26
  %v212 = vunpack.c.l.b16 %v27
  %v213 = vunpack.c.l.b16 %v28
  %v214 = vunpack.c.l.b16 %v29
  %v215 = vunpack.c.l.b16 %v30
  %v216 = vunpack.c.l.b16 %v31
  %v217 = vunpack.c.l.b16 %v32
  %v218 = vunpack.c.l.b16 %v33
  %v219 = vunpack.c.l.b16 %v34
  %v220 = vunpack.c.l.b16 %v35
  %v221 = vunpack.c.l.b16 %v36
  %v222 = vunpack.c.l.b16 %v37
  %v223 = vunpack.c.l.b16 %v38
  %v224 = vunpack.c.l.b16 %v39
  %v225 = vunpack.c.l.b16 %v40
  %v226 = vunpack.c.l.b16 %v41
  %v227 = vunpack.c.l.b16 %v42
  %v228 = vunpack.c.l.b16 %v43
  %v229 = vunpack.c.l.b16 %v44
  %v230 = vunpack.c.l.b16 %v45
  %v231 = vunpack.c.l.b16 %v46
  %v232 = vunpack.c.l.b16 %v47
  %v233 = vunpack.c.l.b16 %v48
  %v234 = vunpack.c.l.b16 %v49
  %v235 = vunpack.c.l.b16 %v50
  %v236 = vunpack.c.l.b16 %v51
  %v237 = vunpack.c.l.b16 %v52
  %v238 = vunpack.c.l.b16 %v53
  %v239 = vunpack.c.l.b16 %v54
  %v240 = vunpack.c.l.b16 %v55
  %v241 = vunpack.c.l.b16 %v56
  %v242 = vunpack.c.l.b16 %v57
  %v243 = vunpack.c.l.b16 %v58
  %v244 = vunpack.c.l.b16 %v59
  %v245 = vunpack.c.l.b16 %v60
  %v246 = vunpack.c.l.b16 %v61
  %v247 = vunpack.c.l.b16 %v62
  %v248 = vunpack.c.l.b16 %v63
  %v249 = vunpack.c.l.b16 %v64
  %v250 = vunpack.c.l.b16 %v65
  %v251 = vunpack.c.l.b16 %v66
  %v252 = vunpack.c.l.b16 %v67
  %v253 = vunpack.c.l.b16 %v68
  %v254 = vunpack.c.l.b16 %v69
  %v255 = vunpack.c.l.b16 %v70
  %v256 = vunpack.c.l.b16 %v71
  %v257 = vunpack.c.l.b16 %v72
  %v258 = vunpack.c.l.b16 %v73
  %v259 = vunpack.c.l.b16 %v74
  %v260 = vunpack.c.l.b16 %v75
  %v261 = vunpack.c.l.b16 %v76
  %v262 = vunpack.c.l.b16 %v77
  %v263 = vunpack.c.l.b16 %v78
  %v264 = vunpack.c.l.b16 %v79
  %v265 = vunpack.c.l.b16 %v80
  %v266 = vunpack.c.l.b16 %v81
  %v267 = vunpack.c.l.b16 %v82
  %v268 = vunpack.c.l.b16 %v83
  %v269 = vunpack.c.l.b16 %v84
  %v270 = vunpack.c.l.b16 %v85
  %v271 = vunpack.c.l.b16 %v86
  %v272 = vunpack.c.l.b16 %v87
  %v273 = vunpack.c.l.b16 %v88
  %v274 = vunpack.c.l.b16 %v89
  %v275 = vunpack.c.l.b16 %v90
  %v276 = vunpack.c.l.b16 %v91
  %v277 = vunpack.c.l.b16 %v92
  %v278 = vunpack.c.l.b16 %v93
  %v279 = vunpack.c.l.b16 %v94
  %v280 = vunpack.c.l.b16 %v95
  %v281 = vunpack.c.l.b16 %v96
  %v282 = vunpack.c.l.b16 %v97
  %v283 = vpack.c.b16 %v204, %v203
  %v284 = vpack.c.b16 %v206, %v205
  %v285 = vpack.c.b16 %v208, %v207
  %v286 = vpack.c.b16 %v210, %v209
  %v287 = vpack.c.b16 %v212, %v211
  %v288 = vpack.c.b16 %v214, %v213
  %v289 = vpack.c.b16 %v216, %v215
  %v290 = vpack.c.b16 %v218, %v217
  %v291 = vpack.c.b16 %v220, %v219
  %v292 = vpack.c.b16 %v222, %v221
  %v293 = vpack.c.b16 %v224, %v223
  %v294 = vpack.c.b16 %v226, %v225
  %v295 = vpack.c.b16 %v228, %v227
  %v296 = vpack.c.b16 %v230, %v229
  %v297 = vpack.c.b16 %v232, %v231
  %v298 = vpack.c.b16 %v234, %v233
  %v299 = vpack.c.b16 %v236, %v235
  %v300 = vpack.c.b16 %v238, %v237
  %v301 = vpack.c.b16 %v240, %v239
  %v302 = vpack.c.b16 %v242, %v241
  %v303 = vpack.c.b16 %v244, %v243
  %v304 = vpack.c.b16 %v246, %v245
  %v305 = vpack.c.b16 %v248, %v247
  %v306 = vpack.c.b16 %v250, %v249
  %v307 = vpack.c.b16 %v252, %v251
  %v308 = vpack.c.b16 %v254, %v253
  %v309 = vpack.c.b16 %v256, %v255
  %v310 = vpack.c.b16 %v258, %v257
  %v311 = vpack.c.b16 %v260, %v259
  %v312 = vpack.c.b16 %v262, %v261
  %v313 = vpack.c.b16 %v264, %v263
  %v314 = vpack.c.b16 %v266, %v265
  %v315 = vpack.c.b16 %v268, %v267
  %v316 = vpack.c.b16 %v270, %v269
  %v317 = vpack.c.b16 %v272, %v271
  %v318 = vpack.c.b16 %v274, %v273
  %v319 = vpack.c.b16 %v276, %v275
  %v320 = vpack.c.b16 %v278, %v277
  %v321 = vpack.c.b16 %v280, %v279
  %v322 = vpack.c.b16 %v282, %v281
  %363 = vmatprep.subr.bf16.mxu0 0
  %364 = vmatpush1.bf16.msra.mxu0 %v283
  %365 = vmatprep.subr.bf16.mxu0 0
  %366 = vmatpush1.bf16.msra.mxu0 %v284
  %367 = vmatprep.subr.bf16.mxu0 0
  %368 = vmatpush1.bf16.msra.mxu0 %v285
  %369 = vmatprep.subr.bf16.mxu0 0
  %370 = vmatpush1.bf16.msra.mxu0 %v286
  %371 = vmatprep.subr.bf16.mxu0 0
  %372 = vmatpush1.bf16.msra.mxu0 %v287
  %373 = vmatprep.subr.bf16.mxu0 0
  %374 = vmatpush1.bf16.msra.mxu0 %v288
  %375 = vmatprep.subr.bf16.mxu0 0
  %376 = vmatpush1.bf16.msra.mxu0 %v289
  %377 = vmatprep.subr.bf16.mxu0 0
  %378 = vmatpush1.bf16.msra.mxu0 %v290
  %379 = vmatprep.subr.bf16.mxu0 0
  %380 = vmatpush1.bf16.msra.mxu0 %v291
  %381 = vmatprep.subr.bf16.mxu0 0
  %382 = vmatpush1.bf16.msra.mxu0 %v292
  %383 = vmatprep.subr.bf16.mxu0 0
  %384 = vmatpush1.bf16.msra.mxu0 %v293
  %385 = vmatprep.subr.bf16.mxu0 0
  %386 = vmatpush1.bf16.msra.mxu0 %v294
  %387 = vmatprep.subr.bf16.mxu0 0
  %388 = vmatpush1.bf16.msra.mxu0 %v295
  %389 = vmatprep.subr.bf16.mxu0 0
  %390 = vmatpush1.bf16.msra.mxu0 %v296
  %391 = vmatprep.subr.bf16.mxu0 0
  %392 = vmatpush1.bf16.msra.mxu0 %v297
  %393 = vmatprep.subr.bf16.mxu0 0
  %394 = vmatpush1.bf16.msra.mxu0 %v298
  %395 = vmatprep.mubr.bf16.mxu0 %v114
  %396 = vmatmul.mubr.bf16.gmra.mrb[0].mxu0 %v113
  %v397 = vpop.f32.mrb[0].mxu0
  %v398 = vadd.f32 %v103, %v397
  %v399 = vpop.f32.mrb[0].mxu0
  %v400 = vpop.f32.mrb[0].mxu0
  %v401 = vpop.f32.mrb[0].mxu0
  %402 = vdwg.mxu0
  %403 = vmatprep.subr.bf16.mxu0 0
  %404 = vmatpush1.bf16.msra.mxu0 %v299
  %405 = vmatprep.subr.bf16.mxu0 0
  %406 = vmatpush1.bf16.msra.mxu0 %v300
  %407 = vmatprep.subr.bf16.mxu0 0
  %408 = vmatpush1.bf16.msra.mxu0 %v301
  %409 = vmatprep.subr.bf16.mxu0 0
  %410 = vmatpush1.bf16.msra.mxu0 %v302
  %411 = vmatprep.subr.bf16.mxu0 0
  %412 = vmatpush1.bf16.msra.mxu0 %v303
  %413 = vmatprep.subr.bf16.mxu0 0
  %414 = vmatpush1.bf16.msra.mxu0 %v304
  %415 = vmatprep.subr.bf16.mxu0 0
  %416 = vmatpush1.bf16.msra.mxu0 %v305
  %417 = vmatprep.subr.bf16.mxu0 0
  %418 = vmatpush1.bf16.msra.mxu0 %v306
  %419 = vmatprep.subr.bf16.mxu0 0
  %420 = vmatpush1.bf16.msra.mxu0 %v307
  %421 = vmatprep.subr.bf16.mxu0 0
  %422 = vmatpush1.bf16.msra.mxu0 %v308
  %423 = vmatprep.subr.bf16.mxu0 0
  %424 = vmatpush1.bf16.msra.mxu0 %v309
  %425 = vmatprep.subr.bf16.mxu0 0
  %426 = vmatpush1.bf16.msra.mxu0 %v310
  %427 = vmatprep.subr.bf16.mxu0 0
  %428 = vmatpush1.bf16.msra.mxu0 %v311
  %429 = vmatprep.subr.bf16.mxu0 0
  %430 = vmatpush1.bf16.msra.mxu0 %v312
  %431 = vmatprep.subr.bf16.mxu0 0
  %432 = vmatpush1.bf16.msra.mxu0 %v313
  %433 = vmatprep.subr.bf16.mxu0 0
  %434 = vmatpush1.bf16.msra.mxu0 %v314
  %435 = vmatprep.mubr.bf16.mxu0 %v116
  %436 = vmatmul.mubr.bf16.gmra.mrb[0].mxu0 %v115
  %v437 = vpop.f32.mrb[0].mxu0
  %v438 = vadd.f32 %v398, %v437
  %v439 = vpop.f32.mrb[0].mxu0
  %v440 = vpop.f32.mrb[0].mxu0
  %v441 = vpop.f32.mrb[0].mxu0
  %442 = vdwg.mxu0
  %443 = vmatprep.subr.bf16.mxu0 0
  %444 = vmatpush1.bf16.msra.mxu0 %v315
  %445 = vmatprep.subr.bf16.mxu0 0
  %446 = vmatpush1.bf16.msra.mxu0 %v316
  %447 = vmatprep.subr.bf16.mxu0 0
  %448 = vmatpush1.bf16.msra.mxu0 %v317
  %449 = vmatprep.subr.bf16.mxu0 0
  %450 = vmatpush1.bf16.msra.mxu0 %v318
  %451 = vmatprep.subr.bf16.mxu0 0
  %452 = vmatpush1.bf16.msra.mxu0 %v319
  %453 = vmatprep.subr.bf16.mxu0 0
  %454 = vmatpush1.bf16.msra.mxu0 %v320
  %455 = vmatprep.subr.bf16.mxu0 0
  %456 = vmatpush1.bf16.msra.mxu0 %v321
  %457 = vmatprep.subr.bf16.mxu0 0
  %458 = vmatpush1.bf16.msra.mxu0 %v322
  %459 = vmatprep.subr.bf16.mxu0 0
  %460 = vmatpush1.bf16.msra.mxu0 0
  %461 = vmatprep.subr.bf16.mxu0 0
  %462 = vmatpush1.bf16.msra.mxu0 0
  %463 = vmatprep.subr.bf16.mxu0 0
  %464 = vmatpush1.bf16.msra.mxu0 0
  %465 = vmatprep.subr.bf16.mxu0 0
  %466 = vmatpush1.bf16.msra.mxu0 0
  %467 = vmatprep.subr.bf16.mxu0 0
  %468 = vmatpush1.bf16.msra.mxu0 0
  %469 = vmatprep.subr.bf16.mxu0 0
  %470 = vmatpush1.bf16.msra.mxu0 0
  %471 = vmatprep.subr.bf16.mxu0 0
  %472 = vmatpush1.bf16.msra.mxu0 0
  %473 = vmatprep.subr.bf16.mxu0 0
  %474 = vmatpush1.bf16.msra.mxu0 0
  %475 = vmatprep.mubr.bf16.mxu0 0
  %476 = vmatmul.mubr.bf16.gmra.mrb[0].mxu0 %v117
  %v477 = vpop.f32.mrb[0].mxu0
  %v478 = vadd.f32 %v438, %v477
  %v479 = vpop.f32.mrb[0].mxu0
  %v480 = vpop.f32.mrb[0].mxu0
  %v481 = vpop.f32.mrb[0].mxu0
  %482 = vdwg.mxu0
  %v483 = vmax.f32 %v478, 0.0
  %v484 = vpack.c.bf16 %v483, %v483
  %485 = vst [vmem:[%s3] sm:$0xf] %v484
  // Predicated region
  $region14: #{_lambda_.34} parent=0 // pred_check
    _
  $region15: #{_lambda_.34} parent=0 // pred_check_branch
    %487 = sbr.rel (0) target = $region17
  $region16: #{_lambda_.34} parent=0 // pred_region
    _
  $region17: #{_lambda_.34} parent=0 // pred_fallthru
    _
  // Predicated region
  $region18: #{_lambda_.34} parent=0 // pred_check
    _
  $region19: #{_lambda_.34} parent=0 // pred_check_branch
    %489 = sbr.rel (0) target = $region21
  $region20: #{_lambda_.34} parent=0 // pred_region
    _
  $region21: #{_lambda_.34} parent=0 // pred_fallthru
    _

// kernel: _lambda_.33
$region0: #{_lambda_.33}
  #allocation0 [shape = 'u32[]', space=smem, size = 0x4, offset = 0x4, fixed_abs, tag = 'smem constant byte address 0x4 - core index']
  #allocation1 [shape = 'u32[144,128]{1,0:T(1,128)}', space=vmem, size = 0x12000, scoped, tag = 'internal scratch']
  %s0 = inlined_call_operand.vmem [shape: bf16[8,640], index: 0, kind: input, shape index: {}]
  %s1 = inlined_call_operand.vmem [shape: bf16[640,128], index: 1, kind: input, shape index: {}]
  %s2 = inlined_call_operand.vmem [shape: f32[1,128], index: 2, kind: input, shape index: {}]
  %s3 = inlined_call_operand.vmem [shape: bf16[8,128], index: 3, kind: input, shape index: {}]
  %s4 = inlined_call_operand.vmem [shape: bf16[8,128], index: 4, kind: output, shape index: {}]
  %s5 = sld [smem:[#allocation0]]
  $region26: #{_lambda_.33} parent=0
    _
  %s7 = ssub.s32 1, %s5
  %s8 = scalar_select 0, %s7, %s5
  // Predicated region
  $region2: #{_lambda_.33} parent=0 // pred_check
    _
  $region3: #{_lambda_.33} parent=0 // pred_check_branch
    %10 = sbr.rel (0) target = $region5
  $region4: #{_lambda_.33} parent=0 // pred_region
    _
  $region5: #{_lambda_.33} parent=0 // pred_fallthru
    _
  // Predicated region
  $region6: #{_lambda_.33} parent=0 // pred_check
    _
  $region7: #{_lambda_.33} parent=0 // pred_check_branch
    %12 = sbr.rel (0) target = $region9
  $region8: #{_lambda_.33} parent=0 // pred_region
    _
  $region9: #{_lambda_.33} parent=0 // pred_fallthru
    _
  // Predicated region
  $region10: #{_lambda_.33} parent=0 // pred_check
    _
  $region11: #{_lambda_.33} parent=0 // pred_check_branch
    %14 = sbr.rel (0) target = $region13
  $region12: #{_lambda_.33} parent=0 // pred_region
    _
  $region13: #{_lambda_.33} parent=0 // pred_fallthru
    _
  // Predicated region
  $region14: #{_lambda_.33} parent=0 // pred_check
    _
  $region15: #{_lambda_.33} parent=0 // pred_check_branch
    %16 = sbr.rel (0) target = $region17
  $region16: #{_lambda_.33} parent=0 // pred_region
    _
  $region17: #{_lambda_.33} parent=0 // pred_fallthru
    _
  %v18 = vld [vmem:[%s0] sm:$0xff]
  %v19 = vld [vmem:[%s0 + $0x8] sm:$0xff]
  %v20 = vld [vmem:[%s0 + $0x10] sm:$0xf]
  %v21 = vld [vmem:[%s1] sm:$0xf]
  %v22 = vld [vmem:[%s1 + $0x4] sm:$0xf]
  %v23 = vld [vmem:[%s1 + $0x8] sm:$0xf]
  %v24 = vld [vmem:[%s1 + $0xc] sm:$0xf]
  %v25 = vld [vmem:[%s1 + $0x10] sm:$0xf]
  %v26 = vld [vmem:[%s1 + $0x14] sm:$0xf]
  %v27 = vld [vmem:[%s1 + $0x18] sm:$0xf]
  %v28 = vld [vmem:[%s1 + $0x1c] sm:$0xf]
  %v29 = vld [vmem:[%s1 + $0x20] sm:$0xf]
  %v30 = vld [vmem:[%s1 + $0x24] sm:$0xf]
  %v31 = vld [vmem:[%s1 + $0x28] sm:$0xf]
  %v32 = vld [vmem:[%s1 + $0x2c] sm:$0xf]
  %v33 = vld [vmem:[%s1 + $0x30] sm:$0xf]
  %v34 = vld [vmem:[%s1 + $0x34] sm:$0xf]
  %v35 = vld [vmem:[%s1 + $0x38] sm:$0xf]
  %v36 = vld [vmem:[%s1 + $0x3c] sm:$0xf]
  %v37 = vld [vmem:[%s1 + $0x40] sm:$0xf]
  %v38 = vld [vmem:[%s1 + $0x44] sm:$0xf]
  %v39 = vld [vmem:[%s1 + $0x48] sm:$0xf]
  %v40 = vld [vmem:[%s1 + $0x4c] sm:$0xf]
  %v41 = vld [vmem:[%s1 + $0x50] sm:$0xf]
  %v42 = vld [vmem:[%s1 + $0x54] sm:$0xf]
  %v43 = vld [vmem:[%s1 + $0x58] sm:$0xf]
  %v44 = vld [vmem:[%s1 + $0x5c] sm:$0xf]
  %v45 = vld [vmem:[%s1 + $0x60] sm:$0xf]
  %v46 = vld [vmem:[%s1 + $0x64] sm:$0xf]
  %v47 = vld [vmem:[%s1 + $0x68] sm:$0xf]
  %v48 = vld [vmem:[%s1 + $0x6c] sm:$0xf]
  %v49 = vld [vmem:[%s1 + $0x70] sm:$0xf]
  %v50 = vld [vmem:[%s1 + $0x74] sm:$0xf]
  %v51 = vld [vmem:[%s1 + $0x78] sm:$0xf]
  %v52 = vld [vmem:[%s1 + $0x7c] sm:$0xf]
  %v53 = vld [vmem:[%s1 + $0x80] sm:$0xf]
  %v54 = vld [vmem:[%s1 + $0x84] sm:$0xf]
  %v55 = vld [vmem:[%s1 + $0x88] sm:$0xf]
  %v56 = vld [vmem:[%s1 + $0x8c] sm:$0xf]
  %v57 = vld [vmem:[%s1 + $0x90] sm:$0xf]
  %v58 = vld [vmem:[%s1 + $0x94] sm:$0xf]
  %v59 = vld [vmem:[%s1 + $0x98] sm:$0xf]
  %v60 = vld [vmem:[%s1 + $0x9c] sm:$0xf]
  %v61 = vld [vmem:[%s1 + $0xa0] sm:$0xf]
  %v62 = vld [vmem:[%s1 + $0xa4] sm:$0xf]
  %v63 = vld [vmem:[%s1 + $0xa8] sm:$0xf]
  %v64 = vld [vmem:[%s1 + $0xac] sm:$0xf]
  %v65 = vld [vmem:[%s1 + $0xb0] sm:$0xf]
  %v66 = vld [vmem:[%s1 + $0xb4] sm:$0xf]
  %v67 = vld [vmem:[%s1 + $0xb8] sm:$0xf]
  %v68 = vld [vmem:[%s1 + $0xbc] sm:$0xf]
  %v69 = vld [vmem:[%s1 + $0xc0] sm:$0xf]
  %v70 = vld [vmem:[%s1 + $0xc4] sm:$0xf]
  %v71 = vld [vmem:[%s1 + $0xc8] sm:$0xf]
  %v72 = vld [vmem:[%s1 + $0xcc] sm:$0xf]
  %v73 = vld [vmem:[%s1 + $0xd0] sm:$0xf]
  %v74 = vld [vmem:[%s1 + $0xd4] sm:$0xf]
  %v75 = vld [vmem:[%s1 + $0xd8] sm:$0xf]
  %v76 = vld [vmem:[%s1 + $0xdc] sm:$0xf]
  %v77 = vld [vmem:[%s1 + $0xe0] sm:$0xf]
  %v78 = vld [vmem:[%s1 + $0xe4] sm:$0xf]
  %v79 = vld [vmem:[%s1 + $0xe8] sm:$0xf]
  %v80 = vld [vmem:[%s1 + $0xec] sm:$0xf]
  %v81 = vld [vmem:[%s1 + $0xf0] sm:$0xf]
  %v82 = vld [vmem:[%s1 + $0xf4] sm:$0xf]
  %v83 = vld [vmem:[%s1 + $0xf8] sm:$0xf]
  %v84 = vld [vmem:[%s1 + $0xfc] sm:$0xf]
  %v85 = vld [vmem:[%s1 + $0x100] sm:$0xf]
  %v86 = vld [vmem:[%s1 + $0x104] sm:$0xf]
  %v87 = vld [vmem:[%s1 + $0x108] sm:$0xf]
  %v88 = vld [vmem:[%s1 + $0x10c] sm:$0xf]
  %v89 = vld [vmem:[%s1 + $0x110] sm:$0xf]
  %v90 = vld [vmem:[%s1 + $0x114] sm:$0xf]
  %v91 = vld [vmem:[%s1 + $0x118] sm:$0xf]
  %v92 = vld [vmem:[%s1 + $0x11c] sm:$0xf]
  %v93 = vld [vmem:[%s1 + $0x120] sm:$0xf]
  %v94 = vld [vmem:[%s1 + $0x124] sm:$0xf]
  %v95 = vld [vmem:[%s1 + $0x128] sm:$0xf]
  %v96 = vld [vmem:[%s1 + $0x12c] sm:$0xf]
  %v97 = vld [vmem:[%s1 + $0x130] sm:$0xf]
  %v98 = vld [vmem:[%s1 + $0x134] sm:$0xf]
  %v99 = vld [vmem:[%s1 + $0x138] sm:$0xf]
  %v100 = vld [vmem:[%s1 + $0x13c] sm:$0xf]
  %v101 = vld [vmem:[%s2] sm:$0x1]
  %v103 = vlaneseq
  %v104 = vshrl.u32 %v103, 7
  %v105 = vsub.s32 0, %v104
  %v106 = vrot.slane %v101, %v105
  %v111 = vunpack.c.l.b16 %v18
  %v112 = vunpack.c.h.b16 %v18
  %v113 = vunpack.c.l.b16 %v19
  %v114 = vunpack.c.h.b16 %v19
  %v115 = vunpack.c.l.b16 %v20
  %v116 = vpack.c.b16 %v111, %v111
  %v117 = vpack.c.b16 %v112, %v112
  %v118 = vpack.c.b16 %v113, %v113
  %v119 = vpack.c.b16 %v114, %v114
  %v120 = vpack.c.b16 %v115, %v115
  %v206 = vunpack.c.l.b16 %v21
  %v207 = vunpack.c.l.b16 %v22
  %v208 = vunpack.c.l.b16 %v23
  %v209 = vunpack.c.l.b16 %v24
  %v210 = vunpack.c.l.b16 %v25
  %v211 = vunpack.c.l.b16 %v26
  %v212 = vunpack.c.l.b16 %v27
  %v213 = vunpack.c.l.b16 %v28
  %v214 = vunpack.c.l.b16 %v29
  %v215 = vunpack.c.l.b16 %v30
  %v216 = vunpack.c.l.b16 %v31
  %v217 = vunpack.c.l.b16 %v32
  %v218 = vunpack.c.l.b16 %v33
  %v219 = vunpack.c.l.b16 %v34
  %v220 = vunpack.c.l.b16 %v35
  %v221 = vunpack.c.l.b16 %v36
  %v222 = vunpack.c.l.b16 %v37
  %v223 = vunpack.c.l.b16 %v38
  %v224 = vunpack.c.l.b16 %v39
  %v225 = vunpack.c.l.b16 %v40
  %v226 = vunpack.c.l.b16 %v41
  %v227 = vunpack.c.l.b16 %v42
  %v228 = vunpack.c.l.b16 %v43
  %v229 = vunpack.c.l.b16 %v44
  %v230 = vunpack.c.l.b16 %v45
  %v231 = vunpack.c.l.b16 %v46
  %v232 = vunpack.c.l.b16 %v47
  %v233 = vunpack.c.l.b16 %v48
  %v234 = vunpack.c.l.b16 %v49
  %v235 = vunpack.c.l.b16 %v50
  %v236 = vunpack.c.l.b16 %v51
  %v237 = vunpack.c.l.b16 %v52
  %v238 = vunpack.c.l.b16 %v53
  %v239 = vunpack.c.l.b16 %v54
  %v240 = vunpack.c.l.b16 %v55
  %v241 = vunpack.c.l.b16 %v56
  %v242 = vunpack.c.l.b16 %v57
  %v243 = vunpack.c.l.b16 %v58
  %v244 = vunpack.c.l.b16 %v59
  %v245 = vunpack.c.l.b16 %v60
  %v246 = vunpack.c.l.b16 %v61
  %v247 = vunpack.c.l.b16 %v62
  %v248 = vunpack.c.l.b16 %v63
  %v249 = vunpack.c.l.b16 %v64
  %v250 = vunpack.c.l.b16 %v65
  %v251 = vunpack.c.l.b16 %v66
  %v252 = vunpack.c.l.b16 %v67
  %v253 = vunpack.c.l.b16 %v68
  %v254 = vunpack.c.l.b16 %v69
  %v255 = vunpack.c.l.b16 %v70
  %v256 = vunpack.c.l.b16 %v71
  %v257 = vunpack.c.l.b16 %v72
  %v258 = vunpack.c.l.b16 %v73
  %v259 = vunpack.c.l.b16 %v74
  %v260 = vunpack.c.l.b16 %v75
  %v261 = vunpack.c.l.b16 %v76
  %v262 = vunpack.c.l.b16 %v77
  %v263 = vunpack.c.l.b16 %v78
  %v264 = vunpack.c.l.b16 %v79
  %v265 = vunpack.c.l.b16 %v80
  %v266 = vunpack.c.l.b16 %v81
  %v267 = vunpack.c.l.b16 %v82
  %v268 = vunpack.c.l.b16 %v83
  %v269 = vunpack.c.l.b16 %v84
  %v270 = vunpack.c.l.b16 %v85
  %v271 = vunpack.c.l.b16 %v86
  %v272 = vunpack.c.l.b16 %v87
  %v273 = vunpack.c.l.b16 %v88
  %v274 = vunpack.c.l.b16 %v89
  %v275 = vunpack.c.l.b16 %v90
  %v276 = vunpack.c.l.b16 %v91
  %v277 = vunpack.c.l.b16 %v92
  %v278 = vunpack.c.l.b16 %v93
  %v279 = vunpack.c.l.b16 %v94
  %v280 = vunpack.c.l.b16 %v95
  %v281 = vunpack.c.l.b16 %v96
  %v282 = vunpack.c.l.b16 %v97
  %v283 = vunpack.c.l.b16 %v98
  %v284 = vunpack.c.l.b16 %v99
  %v285 = vunpack.c.l.b16 %v100
  %v286 = vpack.c.b16 %v207, %v206
  %v287 = vpack.c.b16 %v209, %v208
  %v288 = vpack.c.b16 %v211, %v210
  %v289 = vpack.c.b16 %v213, %v212
  %v290 = vpack.c.b16 %v215, %v214
  %v291 = vpack.c.b16 %v217, %v216
  %v292 = vpack.c.b16 %v219, %v218
  %v293 = vpack.c.b16 %v221, %v220
  %v294 = vpack.c.b16 %v223, %v222
  %v295 = vpack.c.b16 %v225, %v224
  %v296 = vpack.c.b16 %v227, %v226
  %v297 = vpack.c.b16 %v229, %v228
  %v298 = vpack.c.b16 %v231, %v230
  %v299 = vpack.c.b16 %v233, %v232
  %v300 = vpack.c.b16 %v235, %v234
  %v301 = vpack.c.b16 %v237, %v236
  %v302 = vpack.c.b16 %v239, %v238
  %v303 = vpack.c.b16 %v241, %v240
  %v304 = vpack.c.b16 %v243, %v242
  %v305 = vpack.c.b16 %v245, %v244
  %v306 = vpack.c.b16 %v247, %v246
  %v307 = vpack.c.b16 %v249, %v248
  %v308 = vpack.c.b16 %v251, %v250
  %v309 = vpack.c.b16 %v253, %v252
  %v310 = vpack.c.b16 %v255, %v254
  %v311 = vpack.c.b16 %v257, %v256
  %v312 = vpack.c.b16 %v259, %v258
  %v313 = vpack.c.b16 %v261, %v260
  %v314 = vpack.c.b16 %v263, %v262
  %v315 = vpack.c.b16 %v265, %v264
  %v316 = vpack.c.b16 %v267, %v266
  %v317 = vpack.c.b16 %v269, %v268
  %v318 = vpack.c.b16 %v271, %v270
  %v319 = vpack.c.b16 %v273, %v272
  %v320 = vpack.c.b16 %v275, %v274
  %v321 = vpack.c.b16 %v277, %v276
  %v322 = vpack.c.b16 %v279, %v278
  %v323 = vpack.c.b16 %v281, %v280
  %v324 = vpack.c.b16 %v283, %v282
  %v325 = vpack.c.b16 %v285, %v284
  %366 = vmatprep.subr.bf16.mxu0 0
  %367 = vmatpush1.bf16.msra.mxu0 %v286
  %368 = vmatprep.subr.bf16.mxu0 0
  %369 = vmatpush1.bf16.msra.mxu0 %v287
  %370 = vmatprep.subr.bf16.mxu0 0
  %371 = vmatpush1.bf16.msra.mxu0 %v288
  %372 = vmatprep.subr.bf16.mxu0 0
  %373 = vmatpush1.bf16.msra.mxu0 %v289
  %374 = vmatprep.subr.bf16.mxu0 0
  %375 = vmatpush1.bf16.msra.mxu0 %v290
  %376 = vmatprep.subr.bf16.mxu0 0
  %377 = vmatpush1.bf16.msra.mxu0 %v291
  %378 = vmatprep.subr.bf16.mxu0 0
  %379 = vmatpush1.bf16.msra.mxu0 %v292
  %380 = vmatprep.subr.bf16.mxu0 0
  %381 = vmatpush1.bf16.msra.mxu0 %v293
  %382 = vmatprep.subr.bf16.mxu0 0
  %383 = vmatpush1.bf16.msra.mxu0 %v294
  %384 = vmatprep.subr.bf16.mxu0 0
  %385 = vmatpush1.bf16.msra.mxu0 %v295
  %386 = vmatprep.subr.bf16.mxu0 0
  %387 = vmatpush1.bf16.msra.mxu0 %v296
  %388 = vmatprep.subr.bf16.mxu0 0
  %389 = vmatpush1.bf16.msra.mxu0 %v297
  %390 = vmatprep.subr.bf16.mxu0 0
  %391 = vmatpush1.bf16.msra.mxu0 %v298
  %392 = vmatprep.subr.bf16.mxu0 0
  %393 = vmatpush1.bf16.msra.mxu0 %v299
  %394 = vmatprep.subr.bf16.mxu0 0
  %395 = vmatpush1.bf16.msra.mxu0 %v300
  %396 = vmatprep.subr.bf16.mxu0 0
  %397 = vmatpush1.bf16.msra.mxu0 %v301
  %398 = vmatprep.mubr.bf16.mxu0 %v117
  %399 = vmatmul.mubr.bf16.gmra.mrb[0].mxu0 %v116
  %v400 = vpop.f32.mrb[0].mxu0
  %v401 = vadd.f32 %v106, %v400
  %v402 = vpop.f32.mrb[0].mxu0
  %v403 = vpop.f32.mrb[0].mxu0
  %v404 = vpop.f32.mrb[0].mxu0
  %405 = vdwg.mxu0
  %406 = vmatprep.subr.bf16.mxu0 0
  %407 = vmatpush1.bf16.msra.mxu0 %v302
  %408 = vmatprep.subr.bf16.mxu0 0
  %409 = vmatpush1.bf16.msra.mxu0 %v303
  %410 = vmatprep.subr.bf16.mxu0 0
  %411 = vmatpush1.bf16.msra.mxu0 %v304
  %412 = vmatprep.subr.bf16.mxu0 0
  %413 = vmatpush1.bf16.msra.mxu0 %v305
  %414 = vmatprep.subr.bf16.mxu0 0
  %415 = vmatpush1.bf16.msra.mxu0 %v306
  %416 = vmatprep.subr.bf16.mxu0 0
  %417 = vmatpush1.bf16.msra.mxu0 %v307
  %418 = vmatprep.subr.bf16.mxu0 0
  %419 = vmatpush1.bf16.msra.mxu0 %v308
  %420 = vmatprep.subr.bf16.mxu0 0
  %421 = vmatpush1.bf16.msra.mxu0 %v309
  %422 = vmatprep.subr.bf16.mxu0 0
  %423 = vmatpush1.bf16.msra.mxu0 %v310
  %424 = vmatprep.subr.bf16.mxu0 0
  %425 = vmatpush1.bf16.msra.mxu0 %v311
  %426 = vmatprep.subr.bf16.mxu0 0
  %427 = vmatpush1.bf16.msra.mxu0 %v312
  %428 = vmatprep.subr.bf16.mxu0 0
  %429 = vmatpush1.bf16.msra.mxu0 %v313
  %430 = vmatprep.subr.bf16.mxu0 0
  %431 = vmatpush1.bf16.msra.mxu0 %v314
  %432 = vmatprep.subr.bf16.mxu0 0
  %433 = vmatpush1.bf16.msra.mxu0 %v315
  %434 = vmatprep.subr.bf16.mxu0 0
  %435 = vmatpush1.bf16.msra.mxu0 %v316
  %436 = vmatprep.subr.bf16.mxu0 0
  %437 = vmatpush1.bf16.msra.mxu0 %v317
  %438 = vmatprep.mubr.bf16.mxu0 %v119
  %439 = vmatmul.mubr.bf16.gmra.mrb[0].mxu0 %v118
  %v440 = vpop.f32.mrb[0].mxu0
  %v441 = vadd.f32 %v401, %v440
  %v442 = vpop.f32.mrb[0].mxu0
  %v443 = vpop.f32.mrb[0].mxu0
  %v444 = vpop.f32.mrb[0].mxu0
  %445 = vdwg.mxu0
  %446 = vmatprep.subr.bf16.mxu0 0
  %447 = vmatpush1.bf16.msra.mxu0 %v318
  %448 = vmatprep.subr.bf16.mxu0 0
  %449 = vmatpush1.bf16.msra.mxu0 %v319
  %450 = vmatprep.subr.bf16.mxu0 0
  %451 = vmatpush1.bf16.msra.mxu0 %v320
  %452 = vmatprep.subr.bf16.mxu0 0
  %453 = vmatpush1.bf16.msra.mxu0 %v321
  %454 = vmatprep.subr.bf16.mxu0 0
  %455 = vmatpush1.bf16.msra.mxu0 %v322
  %456 = vmatprep.subr.bf16.mxu0 0
  %457 = vmatpush1.bf16.msra.mxu0 %v323
  %458 = vmatprep.subr.bf16.mxu0 0
  %459 = vmatpush1.bf16.msra.mxu0 %v324
  %460 = vmatprep.subr.bf16.mxu0 0
  %461 = vmatpush1.bf16.msra.mxu0 %v325
  %462 = vmatprep.subr.bf16.mxu0 0
  %463 = vmatpush1.bf16.msra.mxu0 0
  %464 = vmatprep.subr.bf16.mxu0 0
  %465 = vmatpush1.bf16.msra.mxu0 0
  %466 = vmatprep.subr.bf16.mxu0 0
  %467 = vmatpush1.bf16.msra.mxu0 0
  %468 = vmatprep.subr.bf16.mxu0 0
  %469 = vmatpush1.bf16.msra.mxu0 0
  %470 = vmatprep.subr.bf16.mxu0 0
  %471 = vmatpush1.bf16.msra.mxu0 0
  %472 = vmatprep.subr.bf16.mxu0 0
  %473 = vmatpush1.bf16.msra.mxu0 0
  %474 = vmatprep.subr.bf16.mxu0 0
  %475 = vmatpush1.bf16.msra.mxu0 0
  %476 = vmatprep.subr.bf16.mxu0 0
  %477 = vmatpush1.bf16.msra.mxu0 0
  %478 = vmatprep.mubr.bf16.mxu0 0
  %479 = vmatmul.mubr.bf16.gmra.mrb[0].mxu0 %v120
  %v480 = vpop.f32.mrb[0].mxu0
  %v481 = vadd.f32 %v441, %v480
  %v482 = vpop.f32.mrb[0].mxu0
  %v483 = vpop.f32.mrb[0].mxu0
  %v484 = vpop.f32.mrb[0].mxu0
  %485 = vdwg.mxu0
  %v486 = vld [vmem:[%s3] sm:$0xf]
  %v487 = vunpack.c.l.bf16 %v486
  %v488 = vadd.f32 %v481, %v487
  %v489 = vmax.f32 %v488, 0.0
  %v490 = vpack.c.bf16 %v489, %v489
  %491 = vst [vmem:[%s4] sm:$0xf] %v490
  // Predicated region
  $region18: #{_lambda_.33} parent=0 // pred_check
    _
  $region19: #{_lambda_.33} parent=0 // pred_check_branch
    %493 = sbr.rel (0) target = $region21
  $region20: #{_lambda_.33} parent=0 // pred_region
    _
  $region21: #{_lambda_.33} parent=0 // pred_fallthru
    _
  // Predicated region
  $region22: #{_lambda_.33} parent=0 // pred_check
    _
  $region23: #{_lambda_.33} parent=0 // pred_check_branch
    %495 = sbr.rel (0) target = $region25
  $region24: #{_lambda_.33} parent=0 // pred_region
    _
  $region25: #{_lambda_.33} parent=0 // pred_fallthru
    _

</llo_original>
